<compile_context>
chip_gen: v7x
topology: tpu7x:2x2x1
jax: 0.10.0
libtpu: 0.0.40
codegen_flags: <defaults>
</compile_context>

<pallas_src>
import functools

import jax
import jax.numpy as jnp
import numpy as np
from jax.experimental import pallas as pl
from jax.experimental.pallas import tpu as pltpu

EXPANSION = 4
BN_EPS = 1e-5
LANE = 128


# --------------------------------------------------------------------------
# VMEM budgeting (generation-aware, with a conservative fallback)
# --------------------------------------------------------------------------
@functools.lru_cache(maxsize=None)
def _vmem_capacity_bytes():
    try:
        cap = int(pltpu.get_tpu_info().vmem_capacity_bytes)
    except Exception:
        cap = 64 << 20              # conservative: v7x per-TensorCore VMEM
    return min(cap, 128 << 20)


def _vmem_limit_bytes():
    return (_vmem_capacity_bytes() * 3) // 4


def _tile_budget_bytes():
    # Per-kernel working-set budget; leaves room for double buffering.
    return _vmem_capacity_bytes() // 8


def _choose_h_tile(h, bytes_per_row, budget):
    """Largest divisor of h whose per-tile bytes fit the budget (>= 1)."""
    best = 1
    for t in range(1, h + 1):
        if h % t == 0 and t * bytes_per_row <= budget:
            best = t
    return best


def _round_up(x, m):
    return ((x + m - 1) // m) * m


def _pad_to(a, shape):
    pads = [(0, t - s) for s, t in zip(a.shape, shape)]
    if all(p == (0, 0) for p in pads):
        return a
    return jnp.pad(a, pads)


# --------------------------------------------------------------------------
# Kernel 1: fused  relu(bn1(conv1(x)))  ->  relu(bn2(conv2(.)))
# The full image stays resident in VMEM across its row tiles; each grid step
# computes conv1 for its rows plus the two halo rows into a zero-bordered
# (tr+2, W+2, C) scratch slab, then runs the 3x3 conv as three K=3C matmuls.
# --------------------------------------------------------------------------
def _fused_conv12_kernel(x_ref, w1_ref, b1_ref, w2_ref, b2_ref, o_ref,
                         y1pad_ref, *, tr):
    # x_ref   : (1, H, W, Cin)  bf16   full image (resident across row tiles)
    # w1_ref  : (Cin, C)        bf16   bn1 scale folded
    # b1_ref  : (1, C)          f32
    # w2_ref  : (3, 3C, C)      bf16   per-ky grouped 3x3 weights, bn2 folded
    # b2_ref  : (1, C)          f32
    # o_ref   : (1, tr, W, C)   bf16
    # y1pad   : (tr+2, W+2, C)  bf16 scratch, zero-padded conv1 output slab
    w = x_ref.shape[2]
    cin = x_ref.shape[3]
    c = o_ref.shape[3]
    r = pl.program_id(1)
    last = pl.num_programs(1) - 1
    r0 = pl.multiple_of(r * tr, tr)

    def conv1_rows(x_rows):
        # (rows, W, Cin) bf16 -> (rows, W, C) bf16 : relu(x @ w1 + b1)
        rows = x_rows.shape[0]
        a = jnp.dot(x_rows.reshape(rows * w, cin), w1_ref[...],
                    preferred_element_type=jnp.float32)
        a = jnp.maximum(a + b1_ref[...], 0.0)
        return a.reshape(rows, w, c).astype(y1pad_ref.dtype)

    # Interior rows of the halo slab.
    y1pad_ref[pl.ds(1, tr), pl.ds(1, w), :] = conv1_rows(
        x_ref[0, pl.ds(r0, tr), :, :])

    # Zero only the border (1-wide left/right columns, and the top/bottom halo
    # rows when at an image boundary) -- never the whole slab.
    zcol = jnp.zeros((tr + 2, 1, c), y1pad_ref.dtype)
    y1pad_ref[:, pl.ds(0, 1), :] = zcol
    y1pad_ref[:, pl.ds(w + 1, 1), :] = zcol

    @pl.when(r > 0)
    def _():
        y1pad_ref[pl.ds(0, 1), pl.ds(1, w), :] = conv1_rows(
            x_ref[0, pl.ds(r0 - 1, 1), :, :])

    @pl.when(r == 0)
    def _():
        y1pad_ref[pl.ds(0, 1), :, :] = jnp.zeros((1, w + 2, c),
                                                 y1pad_ref.dtype)

    @pl.when(r < last)
    def _():
        y1pad_ref[pl.ds(tr + 1, 1), pl.ds(1, w), :] = conv1_rows(
            x_ref[0, pl.ds(r0 + tr, 1), :, :])

    @pl.when(r == last)
    def _():
        y1pad_ref[pl.ds(tr + 1, 1), :, :] = jnp.zeros((1, w + 2, c),
                                                      y1pad_ref.dtype)

    # 3x3 conv: one K=3C matmul per ky; the three kx-shifted windows are
    # concatenated along the 128-aligned lane axis.
    acc = jnp.zeros((tr * w, c), jnp.float32) + b2_ref[...]
    for dy in range(3):
        op = jnp.concatenate(
            [y1pad_ref[pl.ds(dy, tr), pl.ds(dx, w), :] for dx in range(3)],
            axis=-1)                                       # (tr, W, 3C)
        acc = acc + jnp.dot(op.reshape(tr * w, 3 * c), w2_ref[dy],
                            preferred_element_type=jnp.float32)
    out = jnp.maximum(acc, 0.0)
    o_ref[...] = out.reshape(1, tr, w, c).astype(o_ref.dtype)


def fused_conv12(x, w1, b1, w2g, b2):
    n, h, w, cin = x.shape
    c = w1.shape[1]
    bpr = ((w + 2) * c * 2          # halo-slab scratch
           + 2 * w * c * 2          # double-buffered output block
           + w * 3 * c * 2          # per-ky concatenated operand
           + w * c * 4)             # f32 accumulator
    fixed = 2 * h * w * cin * 2 + 2 * (cin * c + 9 * c * c + 2 * c) * 2
    budget = max(_tile_budget_bytes() - fixed, bpr)
    tr = _choose_h_tile(h, bpr, budget)
    kern = functools.partial(_fused_conv12_kernel, tr=tr)
    return pl.pallas_call(
        kern,
        out_shape=jax.ShapeDtypeStruct((n, h, w, c), jnp.bfloat16),
        grid_spec=pltpu.PrefetchScalarGridSpec(
            num_scalar_prefetch=0,
            grid=(n, h // tr),
            in_specs=[
                pl.BlockSpec((1, h, w, cin), lambda i, r: (i, 0, 0, 0)),
                pl.BlockSpec((cin, c), lambda i, r: (0, 0)),
                pl.BlockSpec((1, c), lambda i, r: (0, 0)),
                pl.BlockSpec((3, 3 * c, c), lambda i, r: (0, 0, 0)),
                pl.BlockSpec((1, c), lambda i, r: (0, 0)),
            ],
            out_specs=pl.BlockSpec((1, tr, w, c), lambda i, r: (i, r, 0, 0)),
            scratch_shapes=[pltpu.VMEM((tr + 2, w + 2, c), jnp.bfloat16)],
        ),
        compiler_params=pltpu.CompilerParams(
            dimension_semantics=("parallel", "parallel"),
            vmem_limit_bytes=_vmem_limit_bytes()),
    )(x, w1, b1.reshape(1, c), w2g, b2.reshape(1, c))


# --------------------------------------------------------------------------
# Kernel 2: fused tail.
#   main path : AvgPool2d(stride) -> conv3 (1x1) -> bn3
#   identity  : AvgPool2d(stride) -> downsample 1x1 conv -> bn   (or the raw
#               residual when the module has no downsample branch)
#   out = relu(main + identity)
# The stride-wide column grouping is a free row-major reshape in the wrapper;
# with padded channels every pooling slice is 128-lane aligned.
# --------------------------------------------------------------------------
def _pool_block(blk, s, tro, wo, c):
    # blk: (s*tro, wo, s*c) bf16 -> (tro*wo, c) bf16 average-pooled (f32 math)
    if s == 1:
        return blk.reshape(tro * wo, c)
    b4 = blk.astype(jnp.float32).reshape(tro, s, wo, s * c)   # leading split
    acc = None
    for i in range(s):
        for j in range(s):
            part = b4[:, i, :, j * c:(j + 1) * c]             # 128-aligned
            acc = part if acc is None else acc + part
    acc = acc * (1.0 / (s * s))
    return acc.astype(blk.dtype).reshape(tro * wo, c)


def _tail_kernel(y2_ref, x_ref, w3_ref, b3_ref, *rest, stride, tro, wo, has_ds):
    if has_ds:
        wd_ref, bd_ref, o_ref = rest
    else:
        (o_ref,) = rest
    cp = y2_ref.shape[3] // stride
    cin = x_ref.shape[3] // stride
    cout = o_ref.shape[3]

    main = _pool_block(y2_ref[0], stride, tro, wo, cp)
    main = jnp.dot(main, w3_ref[...],
                   preferred_element_type=jnp.float32) + b3_ref[...]

    idn = _pool_block(x_ref[0], stride, tro, wo, cin)
    if has_ds:
        idn = jnp.dot(idn, wd_ref[...],
                      preferred_element_type=jnp.float32) + bd_ref[...]
    else:
        idn = idn.astype(jnp.float32)

    out = jnp.maximum(main + idn, 0.0)
    o_ref[...] = out.reshape(1, tro, wo, cout).astype(o_ref.dtype)


def tail_fused(y2g, xg, w3, b3, wd, bd, *, stride, has_ds):
    n, h, wo, scp = y2g.shape
    scin = xg.shape[3]
    cout = w3.shape[1]
    ho = h // stride
    bpr = (2 * stride * wo * (scp + scin) * 2      # double-buffered inputs
           + 2 * wo * cout * 2                     # double-buffered output
           + wo * (scp + scin + 2 * cout) * 4)     # f32 pool/acc temporaries
    budget = max(_tile_budget_bytes(), bpr)
    tro = _choose_h_tile(ho, bpr, budget)

    kern = functools.partial(_tail_kernel, stride=stride, tro=tro, wo=wo,
                             has_ds=has_ds)
    in_specs = [
        pl.BlockSpec((1, stride * tro, wo, scp), lambda i, r: (i, r, 0, 0)),
        pl.BlockSpec((1, stride * tro, wo, scin), lambda i, r: (i, r, 0, 0)),
        pl.BlockSpec((scp // stride, cout), lambda i, r: (0, 0)),
        pl.BlockSpec((1, cout), lambda i, r: (0, 0)),
    ]
    args = [y2g, xg, w3, b3.reshape(1, cout)]
    if has_ds:
        in_specs += [
            pl.BlockSpec((scin // stride, cout), lambda i, r: (0, 0)),
            pl.BlockSpec((1, cout), lambda i, r: (0, 0)),
        ]
        args += [wd, bd.reshape(1, cout)]

    return pl.pallas_call(
        kern,
        out_shape=jax.ShapeDtypeStruct((n, ho, wo, cout), jnp.bfloat16),
        grid_spec=pltpu.PrefetchScalarGridSpec(
            num_scalar_prefetch=0,
            grid=(n, ho // tro),
            in_specs=in_specs,
            out_specs=pl.BlockSpec((1, tro, wo, cout),
                                   lambda i, r: (i, r, 0, 0)),
        ),
        compiler_params=pltpu.CompilerParams(
            dimension_semantics=("parallel", "parallel"),
            vmem_limit_bytes=_vmem_limit_bytes()),
    )(*args)


# --------------------------------------------------------------------------
# Parameter setup (eval-mode BN folded into per-channel scale/bias)
# --------------------------------------------------------------------------
def _fold_bn(gamma, beta, mean, var):
    scale = gamma / jnp.sqrt(var + BN_EPS)
    return scale, beta - mean * scale


def init_params(key, inplanes, planes):
    cout = planes * EXPANSION
    ks = jax.random.split(key, 8)

    def conv_w(k, shape, fan_in):
        return jax.random.normal(k, shape, jnp.float32) * (1.0 / np.sqrt(fan_in))

    def bn(k, c):
        k1, k2, k3, k4 = jax.random.split(k, 4)
        gamma = jax.random.uniform(k1, (c,), jnp.float32, 0.5, 1.5)
        beta = jax.random.normal(k2, (c,), jnp.float32) * 0.1
        mean = jax.random.normal(k3, (c,), jnp.float32) * 0.1
        var = jax.random.uniform(k4, (c,), jnp.float32, 0.5, 1.5)
        return _fold_bn(gamma, beta, mean, var)

    p = {}
    p["w1"] = conv_w(ks[0], (inplanes, planes), inplanes)        # 1x1: [Cin, Cout]
    p["s1"], p["b1"] = bn(ks[1], planes)
    p["w2"] = conv_w(ks[2], (9, planes, planes), 9 * planes)     # 3x3: [ky*3+kx, Cin, Cout]
    p["s2"], p["b2"] = bn(ks[3], planes)
    p["w3"] = conv_w(ks[4], (planes, cout), planes)
    p["s3"], p["b3"] = bn(ks[5], cout)
    p["wd"] = conv_w(ks[6], (inplanes, cout), inplanes)          # downsample 1x1
    p["sd"], p["bd"] = bn(ks[7], cout)
    return p


# --------------------------------------------------------------------------
# Full forward pass
# --------------------------------------------------------------------------
def bottleneck_forward_nhwc(x_nhwc, params, inplanes, planes, stride):
    """NHWC f32 in -> NHWC f32 out.  Call this directly when chaining blocks
    to keep activations NHWC end-to-end (no per-block NCHW relayout)."""
    cout = planes * EXPANSION
    has_ds = stride > 1 or inplanes != cout
    n, h, w, _ = x_nhwc.shape
    assert h % stride == 0 and w % stride == 0, "spatial dims must divide stride"

    cin_p = _round_up(inplanes, LANE)
    cp = _round_up(planes, LANE)
    cout_p = _round_up(cout, LANE)

    # bf16 activations at the kernel boundary (f32 accumulation inside).
    x = _pad_to(x_nhwc, (n, h, w, cin_p)).astype(jnp.bfloat16)

    # Fold eval-mode BN scale into the conv weights; pad channels to 128 lanes.
    w1 = _pad_to(params["w1"] * params["s1"][None, :], (cin_p, cp))
    w1 = w1.astype(jnp.bfloat16)
    b1 = _pad_to(params["b1"], (cp,))
    w2 = _pad_to(params["w2"] * params["s2"][None, None, :], (9, cp, cp))
    w2g = w2.reshape(3, 3, cp, cp).reshape(3, 3 * cp, cp).astype(jnp.bfloat16)
    b2 = _pad_to(params["b2"], (cp,))
    w3 = _pad_to(params["w3"] * params["s3"][None, :], (cp, cout_p))
    w3 = w3.astype(jnp.bfloat16)
    b3 = _pad_to(params["b3"], (cout_p,))

    # relu(bn2(conv2(relu(bn1(conv1(x)))))) in one fused kernel (y1 never hits HBM).
    y2 = fused_conv12(x, w1, b1, w2g, b2)                    # (n,h,w,cp) bf16

    # avgpool + conv3/bn3 (+ avgpool + downsample conv/bn) + residual + relu.
    wo = w // stride
    y2g = y2.reshape(n, h, wo, stride * cp)                  # free reshape
    xg = x.reshape(n, h, wo, stride * cin_p)                 # free reshape
    if has_ds:
        wd = _pad_to(params["wd"] * params["sd"][None, :], (cin_p, cout_p))
        wd = wd.astype(jnp.bfloat16)
        bd = _pad_to(params["bd"], (cout_p,))
        out = tail_fused(y2g, xg, w3, b3, wd, bd, stride=stride, has_ds=True)
    else:
        out = tail_fused(y2g, xg, w3, b3, None, None, stride=stride,
                         has_ds=False)
    return out[..., :cout].astype(jnp.float32)               # drop pad channels


def bottleneck_forward(x_nchw, params, inplanes, planes, stride):
    x = jnp.transpose(x_nchw, (0, 2, 3, 1))                  # NCHW -> NHWC
    out = bottleneck_forward_nhwc(x, params, inplanes, planes, stride)
    return jnp.transpose(out, (0, 3, 1, 2))                  # NHWC -> NCHW


# --------------------------------------------------------------------------
# Pure-JAX reference with the same bf16 rounding points (eval-mode BN)
# --------------------------------------------------------------------------
def bottleneck_ref(x_nchw, params, inplanes, planes, stride):
    bf = jnp.bfloat16
    cout = planes * EXPANSION
    has_ds = stride > 1 or inplanes != cout
    x = jnp.transpose(x_nchw, (0, 2, 3, 1)).astype(bf).astype(jnp.float32)
    n, h, w, _ = x.shape
    w1 = (params["w1"] * params["s1"][None, :]).astype(bf).astype(jnp.float32)
    w2 = (params["w2"] * params["s2"][None, None, :]).astype(bf).astype(jnp.float32)
    w3 = (params["w3"] * params["s3"][None, :]).astype(bf).astype(jnp.float32)

    y1 = jnp.maximum(jnp.einsum("nhwc,cd->nhwd", x, w1) + params["b1"], 0.0)
    y1 = y1.astype(bf).astype(jnp.float32)
    yp = jnp.pad(y1, ((0, 0), (1, 1), (1, 1), (0, 0)))
    acc = jnp.zeros((n, h, w, planes), jnp.float32)
    for dy in range(3):
        for dx in range(3):
            acc = acc + jnp.einsum("nhwc,cd->nhwd",
                                   yp[:, dy:dy + h, dx:dx + w, :],
                                   w2[dy * 3 + dx])
    y2 = jnp.maximum(acc + params["b2"], 0.0).astype(bf).astype(jnp.float32)
    ho, wo = h // stride, w // stride

    def pool(t):
        if stride == 1:
            return t
        cc = t.shape[-1]
        p = t.reshape(n, ho, stride, wo, stride, cc).mean(axis=(2, 4))
        return p.astype(bf).astype(jnp.float32)

    main = jnp.einsum("nhwc,cd->nhwd", pool(y2), w3) + params["b3"]
    idn = pool(x)
    if has_ds:
        wd = (params["wd"] * params["sd"][None, :]).astype(bf).astype(jnp.float32)
        idn = jnp.einsum("nhwc,cd->nhwd", idn, wd) + params["bd"]
    out = jnp.maximum(main + idn, 0.0).astype(bf).astype(jnp.float32)
    return jnp.transpose(out, (0, 3, 1, 2))


if __name__ == "__main__":
    key = jax.random.PRNGKey(0)
    N, H, W = 2, 16, 16
    # (inplanes, planes, stride): with downsample (stride 2) and without
    # (stride 1, inplanes == planes * expansion).
    configs = [(4, 4, 2), (16, 4, 1)]
    for inplanes, planes, stride in configs:
        key, kx, kp = jax.random.split(key, 3)
        x = jax.random.normal(kx, (N, inplanes, H, W), jnp.float32)
        params = init_params(kp, inplanes, planes)

        out = bottleneck_forward(x, params, inplanes, planes, stride)
        out = jax.block_until_ready(out)

        exp_shape = (N, planes * EXPANSION, H // stride, W // stride)
        assert out.shape == exp_shape, (out.shape, exp_shape)
        ref = bottleneck_ref(x, params, inplanes, planes, stride)
        np.testing.assert_allclose(np.asarray(out, dtype=np.float32),
                                   np.asarray(ref, dtype=np.float32),
                                   rtol=2e-2, atol=2e-2)
    print("KERNEL_OK")
</pallas_src>

<mosaic_0001>
module attributes {stable_mosaic.version = 11 : i64} {
  func.func @_fused_conv12_kernel(%arg0: i32, %arg1: i32, %arg2: memref<1x16x16x128xbf16, #tpu.memory_space<vmem>>, %arg3: memref<128x128xbf16, #tpu.memory_space<vmem>>, %arg4: memref<1x128xf32, #tpu.memory_space<vmem>>, %arg5: memref<3x384x128xbf16, #tpu.memory_space<vmem>>, %arg6: memref<1x128xf32, #tpu.memory_space<vmem>>, %arg7: memref<1x16x16x128xbf16, #tpu.memory_space<vmem>>, %arg8: memref<18x18x128xbf16, #tpu.memory_space<vmem>>) attributes {dimension_semantics = [#tpu.dimension_semantics<parallel>, #tpu.dimension_semantics<parallel>], iteration_bounds = array<i64: 2, 1>, scalar_prefetch = 0 : i64, scratch_operands = 1 : i64, tpu.core_type = #tpu.core_type<tc>, window_params = [{transform_indices = @transform_0, window_bounds = array<i64: 1, 16, 16, 128>}, {pipeline_mode = #tpu.pipeline_mode<synchronous>, transform_indices = @transform_1, window_bounds = array<i64: 128, 128>}, {pipeline_mode = #tpu.pipeline_mode<synchronous>, transform_indices = @transform_2, window_bounds = array<i64: 1, 128>}, {pipeline_mode = #tpu.pipeline_mode<synchronous>, transform_indices = @transform_3, window_bounds = array<i64: 3, 384, 128>}, {pipeline_mode = #tpu.pipeline_mode<synchronous>, transform_indices = @transform_4, window_bounds = array<i64: 1, 128>}, {transform_indices = @transform_5, window_bounds = array<i64: 1, 16, 16, 128>}]} {
    %c16_i32 = arith.constant 16 : i32
    %0 = arith.muli %arg1, %c16_i32 : i32
    %1 = tpu.assume_multiple %0, 16 : i32
    %c0 = arith.constant 0 : index
    %2 = arith.index_cast %1 : i32 to index
    %c0_0 = arith.constant 0 : index
    %c0_1 = arith.constant 0 : index
    %3 = vector.load %arg2[%c0, %2, %c0_0, %c0_1] : memref<1x16x16x128xbf16, #tpu.memory_space<vmem>>, vector<1x16x16x128xbf16>
    %4 = vector.shape_cast %3 : vector<1x16x16x128xbf16> to vector<16x16x128xbf16>
    %5 = vector.shape_cast %4 : vector<16x16x128xbf16> to vector<256x128xbf16>
    %c0_2 = arith.constant 0 : index
    %c0_3 = arith.constant 0 : index
    %6 = vector.load %arg3[%c0_2, %c0_3] : memref<128x128xbf16, #tpu.memory_space<vmem>>, vector<128x128xbf16>
    %cst = arith.constant dense<0.000000e+00> : vector<256x128xf32>
    %7 = tpu.matmul %5, %6, %cst {dimension_numbers = #tpu.dot_dimension_numbers<[1], [0], [0], [1], [0, 0, 1, 1], [], []>} : vector<256x128xbf16>, vector<128x128xbf16>, vector<256x128xf32> -> vector<256x128xf32>
    %c0_4 = arith.constant 0 : index
    %c0_5 = arith.constant 0 : index
    %8 = vector.load %arg4[%c0_4, %c0_5] : memref<1x128xf32, #tpu.memory_space<vmem>>, vector<1x128xf32>
    %9 = vector.broadcast %8 : vector<1x128xf32> to vector<256x128xf32>
    %10 = arith.addf %7, %9 : vector<256x128xf32>
    %cst_6 = arith.constant 0.000000e+00 : f32
    %11 = vector.broadcast %cst_6 : f32 to vector<256x128xf32>
    %12 = arith.maximumf %10, %11 : vector<256x128xf32>
    %13 = vector.shape_cast %12 : vector<256x128xf32> to vector<16x16x128xf32>
    %14 = arith.truncf %13 : vector<16x16x128xf32> to vector<16x16x128xbf16>
    %c1 = arith.constant 1 : index
    %c1_7 = arith.constant 1 : index
    %c0_8 = arith.constant 0 : index
    %15 = vector.load %arg8[%c1, %c1_7, %c0_8] : memref<18x18x128xbf16, #tpu.memory_space<vmem>>, vector<16x16x128xbf16>
    tpu.vector_store %arg8[%c1, %c1_7, %c0_8], %14 {strides = array<i32>} : memref<18x18x128xbf16, #tpu.memory_space<vmem>>, vector<16x16x128xbf16>,
    %cst_9 = arith.constant 0.000000e+00 : bf16
    %16 = vector.broadcast %cst_9 : bf16 to vector<18x1x128xbf16>
    %c0_10 = arith.constant 0 : index
    %c0_11 = arith.constant 0 : index
    %c0_12 = arith.constant 0 : index
    %17 = vector.load %arg8[%c0_10, %c0_11, %c0_12] : memref<18x18x128xbf16, #tpu.memory_space<vmem>>, vector<18x1x128xbf16>
    tpu.vector_store %arg8[%c0_10, %c0_11, %c0_12], %16 {strides = array<i32>} : memref<18x18x128xbf16, #tpu.memory_space<vmem>>, vector<18x1x128xbf16>,
    %c0_13 = arith.constant 0 : index
    %c17 = arith.constant 17 : index
    %c0_14 = arith.constant 0 : index
    %18 = vector.load %arg8[%c0_13, %c17, %c0_14] : memref<18x18x128xbf16, #tpu.memory_space<vmem>>, vector<18x1x128xbf16>
    tpu.vector_store %arg8[%c0_13, %c17, %c0_14], %16 {strides = array<i32>} : memref<18x18x128xbf16, #tpu.memory_space<vmem>>, vector<18x1x128xbf16>,
    %c0_i32 = arith.constant 0 : i32
    %19 = arith.cmpi sgt, %arg1, %c0_i32 : i32
    %20 = arith.extui %19 : i1 to i32
    %c0_i32_15 = arith.constant 0 : i32
    %21 = arith.cmpi ne, %20, %c0_i32_15 : i32
    scf.if %21 {
      %c1_i32 = arith.constant 1 : i32
      %67 = arith.subi %1, %c1_i32 : i32
      %c0_68 = arith.constant 0 : index
      %68 = arith.index_cast %67 : i32 to index
      %c0_69 = arith.constant 0 : index
      %c0_70 = arith.constant 0 : index
      %69 = vector.load %arg2[%c0_68, %68, %c0_69, %c0_70] : memref<1x16x16x128xbf16, #tpu.memory_space<vmem>>, vector<1x1x16x128xbf16>
      %70 = vector.shape_cast %69 : vector<1x1x16x128xbf16> to vector<1x16x128xbf16>
      %71 = vector.shape_cast %70 : vector<1x16x128xbf16> to vector<16x128xbf16>
      %c0_71 = arith.constant 0 : index
      %c0_72 = arith.constant 0 : index
      %72 = vector.load %arg3[%c0_71, %c0_72] : memref<128x128xbf16, #tpu.memory_space<vmem>>, vector<128x128xbf16>
      %cst_73 = arith.constant dense<0.000000e+00> : vector<16x128xf32>
      %73 = tpu.matmul %71, %72, %cst_73 {dimension_numbers = #tpu.dot_dimension_numbers<[1], [0], [0], [1], [0, 0, 1, 1], [], []>} : vector<16x128xbf16>, vector<128x128xbf16>, vector<16x128xf32> -> vector<16x128xf32>
      %c0_74 = arith.constant 0 : index
      %c0_75 = arith.constant 0 : index
      %74 = vector.load %arg4[%c0_74, %c0_75] : memref<1x128xf32, #tpu.memory_space<vmem>>, vector<1x128xf32>
      %75 = vector.broadcast %74 : vector<1x128xf32> to vector<16x128xf32>
      %76 = arith.addf %73, %75 : vector<16x128xf32>
      %cst_76 = arith.constant 0.000000e+00 : f32
      %77 = vector.broadcast %cst_76 : f32 to vector<16x128xf32>
      %78 = arith.maximumf %76, %77 : vector<16x128xf32>
      %79 = vector.shape_cast %78 : vector<16x128xf32> to vector<1x16x128xf32>
      %80 = arith.truncf %79 : vector<1x16x128xf32> to vector<1x16x128xbf16>
      %c0_77 = arith.constant 0 : index
      %c1_78 = arith.constant 1 : index
      %c0_79 = arith.constant 0 : index
      %81 = vector.load %arg8[%c0_77, %c1_78, %c0_79] : memref<18x18x128xbf16, #tpu.memory_space<vmem>>, vector<1x16x128xbf16>
      tpu.vector_store %arg8[%c0_77, %c1_78, %c0_79], %80 {strides = array<i32>} : memref<18x18x128xbf16, #tpu.memory_space<vmem>>, vector<1x16x128xbf16>,
    } else {
    }
    %c0_i32_16 = arith.constant 0 : i32
    %22 = arith.cmpi eq, %arg1, %c0_i32_16 : i32
    %23 = arith.extui %22 : i1 to i32
    %c0_i32_17 = arith.constant 0 : i32
    %24 = arith.cmpi ne, %23, %c0_i32_17 : i32
    scf.if %24 {
      %cst_68 = arith.constant 0.000000e+00 : bf16
      %67 = vector.broadcast %cst_68 : bf16 to vector<1x18x128xbf16>
      %c0_69 = arith.constant 0 : index
      %c0_70 = arith.constant 0 : index
      %c0_71 = arith.constant 0 : index
      %68 = vector.load %arg8[%c0_69, %c0_70, %c0_71] : memref<18x18x128xbf16, #tpu.memory_space<vmem>>, vector<1x18x128xbf16>
      tpu.vector_store %arg8[%c0_69, %c0_70, %c0_71], %67 {strides = array<i32>} : memref<18x18x128xbf16, #tpu.memory_space<vmem>>, vector<1x18x128xbf16>,
    } else {
    }
    %c0_i32_18 = arith.constant 0 : i32
    %25 = arith.cmpi slt, %arg1, %c0_i32_18 : i32
    %26 = arith.extui %25 : i1 to i32
    %c0_i32_19 = arith.constant 0 : i32
    %27 = arith.cmpi ne, %26, %c0_i32_19 : i32
    scf.if %27 {
      %c16_i32_68 = arith.constant 16 : i32
      %67 = arith.addi %1, %c16_i32_68 : i32
      %c0_69 = arith.constant 0 : index
      %68 = arith.index_cast %67 : i32 to index
      %c0_70 = arith.constant 0 : index
      %c0_71 = arith.constant 0 : index
      %69 = vector.load %arg2[%c0_69, %68, %c0_70, %c0_71] : memref<1x16x16x128xbf16, #tpu.memory_space<vmem>>, vector<1x1x16x128xbf16>
      %70 = vector.shape_cast %69 : vector<1x1x16x128xbf16> to vector<1x16x128xbf16>
      %71 = vector.shape_cast %70 : vector<1x16x128xbf16> to vector<16x128xbf16>
      %c0_72 = arith.constant 0 : index
      %c0_73 = arith.constant 0 : index
      %72 = vector.load %arg3[%c0_72, %c0_73] : memref<128x128xbf16, #tpu.memory_space<vmem>>, vector<128x128xbf16>
      %cst_74 = arith.constant dense<0.000000e+00> : vector<16x128xf32>
      %73 = tpu.matmul %71, %72, %cst_74 {dimension_numbers = #tpu.dot_dimension_numbers<[1], [0], [0], [1], [0, 0, 1, 1], [], []>} : vector<16x128xbf16>, vector<128x128xbf16>, vector<16x128xf32> -> vector<16x128xf32>
      %c0_75 = arith.constant 0 : index
      %c0_76 = arith.constant 0 : index
      %74 = vector.load %arg4[%c0_75, %c0_76] : memref<1x128xf32, #tpu.memory_space<vmem>>, vector<1x128xf32>
      %75 = vector.broadcast %74 : vector<1x128xf32> to vector<16x128xf32>
      %76 = arith.addf %73, %75 : vector<16x128xf32>
      %cst_77 = arith.constant 0.000000e+00 : f32
      %77 = vector.broadcast %cst_77 : f32 to vector<16x128xf32>
      %78 = arith.maximumf %76, %77 : vector<16x128xf32>
      %79 = vector.shape_cast %78 : vector<16x128xf32> to vector<1x16x128xf32>
      %80 = arith.truncf %79 : vector<1x16x128xf32> to vector<1x16x128xbf16>
      %c17_78 = arith.constant 17 : index
      %c1_79 = arith.constant 1 : index
      %c0_80 = arith.constant 0 : index
      %81 = vector.load %arg8[%c17_78, %c1_79, %c0_80] : memref<18x18x128xbf16, #tpu.memory_space<vmem>>, vector<1x16x128xbf16>
      tpu.vector_store %arg8[%c17_78, %c1_79, %c0_80], %80 {strides = array<i32>} : memref<18x18x128xbf16, #tpu.memory_space<vmem>>, vector<1x16x128xbf16>,
    } else {
    }
    %c0_i32_20 = arith.constant 0 : i32
    %28 = arith.cmpi eq, %arg1, %c0_i32_20 : i32
    %29 = arith.extui %28 : i1 to i32
    %c0_i32_21 = arith.constant 0 : i32
    %30 = arith.cmpi ne, %29, %c0_i32_21 : i32
    scf.if %30 {
      %cst_68 = arith.constant 0.000000e+00 : bf16
      %67 = vector.broadcast %cst_68 : bf16 to vector<1x18x128xbf16>
      %c17_69 = arith.constant 17 : index
      %c0_70 = arith.constant 0 : index
      %c0_71 = arith.constant 0 : index
      %68 = vector.load %arg8[%c17_69, %c0_70, %c0_71] : memref<18x18x128xbf16, #tpu.memory_space<vmem>>, vector<1x18x128xbf16>
      tpu.vector_store %arg8[%c17_69, %c0_70, %c0_71], %67 {strides = array<i32>} : memref<18x18x128xbf16, #tpu.memory_space<vmem>>, vector<1x18x128xbf16>,
    } else {
    }
    %cst_22 = arith.constant 0.000000e+00 : f32
    %31 = vector.broadcast %cst_22 : f32 to vector<256x128xf32>
    %c0_23 = arith.constant 0 : index
    %c0_24 = arith.constant 0 : index
    %32 = vector.load %arg6[%c0_23, %c0_24] : memref<1x128xf32, #tpu.memory_space<vmem>>, vector<1x128xf32>
    %33 = vector.broadcast %32 : vector<1x128xf32> to vector<256x128xf32>
    %34 = arith.addf %31, %33 : vector<256x128xf32>
    %c0_25 = arith.constant 0 : index
    %c0_26 = arith.constant 0 : index
    %c0_27 = arith.constant 0 : index
    %35 = vector.load %arg8[%c0_25, %c0_26, %c0_27] : memref<18x18x128xbf16, #tpu.memory_space<vmem>>, vector<16x16x128xbf16>
    %c0_28 = arith.constant 0 : index
    %c1_29 = arith.constant 1 : index
    %c0_30 = arith.constant 0 : index
    %36 = vector.load %arg8[%c0_28, %c1_29, %c0_30] : memref<18x18x128xbf16, #tpu.memory_space<vmem>>, vector<16x16x128xbf16>
    %c0_31 = arith.constant 0 : index
    %c2 = arith.constant 2 : index
    %c0_32 = arith.constant 0 : index
    %37 = vector.load %arg8[%c0_31, %c2, %c0_32] : memref<18x18x128xbf16, #tpu.memory_space<vmem>>, vector<16x16x128xbf16>
    %38 = tpu.concatenate %35, %36, %37 in 2 : vector<16x16x128xbf16>, vector<16x16x128xbf16>, vector<16x16x128xbf16> -> vector<16x16x384xbf16>
    %39 = vector.shape_cast %38 : vector<16x16x384xbf16> to vector<256x384xbf16>
    %c0_33 = arith.constant 0 : index
    %c0_34 = arith.constant 0 : index
    %c0_35 = arith.constant 0 : index
    %40 = vector.load %arg5[%c0_33, %c0_34, %c0_35] : memref<3x384x128xbf16, #tpu.memory_space<vmem>>, vector<1x384x128xbf16>
    %41 = vector.shape_cast %40 : vector<1x384x128xbf16> to vector<384x128xbf16>
    %cst_36 = arith.constant dense<0.000000e+00> : vector<256x128xf32>
    %42 = tpu.matmul %39, %41, %cst_36 {dimension_numbers = #tpu.dot_dimension_numbers<[1], [0], [0], [1], [0, 0, 1, 1], [], []>} : vector<256x384xbf16>, vector<384x128xbf16>, vector<256x128xf32> -> vector<256x128xf32>
    %43 = arith.addf %34, %42 : vector<256x128xf32>
    %c1_37 = arith.constant 1 : index
    %c0_38 = arith.constant 0 : index
    %c0_39 = arith.constant 0 : index
    %44 = vector.load %arg8[%c1_37, %c0_38, %c0_39] : memref<18x18x128xbf16, #tpu.memory_space<vmem>>, vector<16x16x128xbf16>
    %c1_40 = arith.constant 1 : index
    %c1_41 = arith.constant 1 : index
    %c0_42 = arith.constant 0 : index
    %45 = vector.load %arg8[%c1_40, %c1_41, %c0_42] : memref<18x18x128xbf16, #tpu.memory_space<vmem>>, vector<16x16x128xbf16>
    %c1_43 = arith.constant 1 : index
    %c2_44 = arith.constant 2 : index
    %c0_45 = arith.constant 0 : index
    %46 = vector.load %arg8[%c1_43, %c2_44, %c0_45] : memref<18x18x128xbf16, #tpu.memory_space<vmem>>, vector<16x16x128xbf16>
    %47 = tpu.concatenate %44, %45, %46 in 2 : vector<16x16x128xbf16>, vector<16x16x128xbf16>, vector<16x16x128xbf16> -> vector<16x16x384xbf16>
    %48 = vector.shape_cast %47 : vector<16x16x384xbf16> to vector<256x384xbf16>
    %c1_46 = arith.constant 1 : index
    %c0_47 = arith.constant 0 : index
    %c0_48 = arith.constant 0 : index
    %49 = vector.load %arg5[%c1_46, %c0_47, %c0_48] : memref<3x384x128xbf16, #tpu.memory_space<vmem>>, vector<1x384x128xbf16>
    %50 = vector.shape_cast %49 : vector<1x384x128xbf16> to vector<384x128xbf16>
    %cst_49 = arith.constant dense<0.000000e+00> : vector<256x128xf32>
    %51 = tpu.matmul %48, %50, %cst_49 {dimension_numbers = #tpu.dot_dimension_numbers<[1], [0], [0], [1], [0, 0, 1, 1], [], []>} : vector<256x384xbf16>, vector<384x128xbf16>, vector<256x128xf32> -> vector<256x128xf32>
    %52 = arith.addf %43, %51 : vector<256x128xf32>
    %c2_50 = arith.constant 2 : index
    %c0_51 = arith.constant 0 : index
    %c0_52 = arith.constant 0 : index
    %53 = vector.load %arg8[%c2_50, %c0_51, %c0_52] : memref<18x18x128xbf16, #tpu.memory_space<vmem>>, vector<16x16x128xbf16>
    %c2_53 = arith.constant 2 : index
    %c1_54 = arith.constant 1 : index
    %c0_55 = arith.constant 0 : index
    %54 = vector.load %arg8[%c2_53, %c1_54, %c0_55] : memref<18x18x128xbf16, #tpu.memory_space<vmem>>, vector<16x16x128xbf16>
    %c2_56 = arith.constant 2 : index
    %c2_57 = arith.constant 2 : index
    %c0_58 = arith.constant 0 : index
    %55 = vector.load %arg8[%c2_56, %c2_57, %c0_58] : memref<18x18x128xbf16, #tpu.memory_space<vmem>>, vector<16x16x128xbf16>
    %56 = tpu.concatenate %53, %54, %55 in 2 : vector<16x16x128xbf16>, vector<16x16x128xbf16>, vector<16x16x128xbf16> -> vector<16x16x384xbf16>
    %57 = vector.shape_cast %56 : vector<16x16x384xbf16> to vector<256x384xbf16>
    %c2_59 = arith.constant 2 : index
    %c0_60 = arith.constant 0 : index
    %c0_61 = arith.constant 0 : index
    %58 = vector.load %arg5[%c2_59, %c0_60, %c0_61] : memref<3x384x128xbf16, #tpu.memory_space<vmem>>, vector<1x384x128xbf16>
    %59 = vector.shape_cast %58 : vector<1x384x128xbf16> to vector<384x128xbf16>
    %cst_62 = arith.constant dense<0.000000e+00> : vector<256x128xf32>
    %60 = tpu.matmul %57, %59, %cst_62 {dimension_numbers = #tpu.dot_dimension_numbers<[1], [0], [0], [1], [0, 0, 1, 1], [], []>} : vector<256x384xbf16>, vector<384x128xbf16>, vector<256x128xf32> -> vector<256x128xf32>
    %61 = arith.addf %52, %60 : vector<256x128xf32>
    %cst_63 = arith.constant 0.000000e+00 : f32
    %62 = vector.broadcast %cst_63 : f32 to vector<256x128xf32>
    %63 = arith.maximumf %61, %62 : vector<256x128xf32>
    %64 = vector.shape_cast %63 : vector<256x128xf32> to vector<1x16x16x128xf32>
    %65 = arith.truncf %64 : vector<1x16x16x128xf32> to vector<1x16x16x128xbf16>
    %c0_64 = arith.constant 0 : index
    %c0_65 = arith.constant 0 : index
    %c0_66 = arith.constant 0 : index
    %c0_67 = arith.constant 0 : index
    %66 = vector.load %arg7[%c0_64, %c0_65, %c0_66, %c0_67] : memref<1x16x16x128xbf16, #tpu.memory_space<vmem>>, vector<1x16x16x128xbf16>
    tpu.vector_store %arg7[%c0_64, %c0_65, %c0_66, %c0_67], %65 {strides = array<i32>} : memref<1x16x16x128xbf16, #tpu.memory_space<vmem>>, vector<1x16x16x128xbf16>,
    return
  }
  func.func @transform_0(%arg0: i32, %arg1: i32) -> (i32, i32, i32, i32) {
    %c0_i32 = arith.constant 0 : i32
    %c0_i32_0 = arith.constant 0 : i32
    %c0_i32_1 = arith.constant 0 : i32
    %c0_i32_2 = arith.constant 0 : i32
    return %arg0, %c0_i32, %c0_i32_0, %c0_i32_1 : i32, i32, i32, i32
  }
  func.func @transform_1(%arg0: i32, %arg1: i32) -> (i32, i32) {
    %c0_i32 = arith.constant 0 : i32
    %c0_i32_0 = arith.constant 0 : i32
    %c0_i32_1 = arith.constant 0 : i32
    return %c0_i32, %c0_i32_0 : i32, i32
  }
  func.func @transform_2(%arg0: i32, %arg1: i32) -> (i32, i32) {
    %c0_i32 = arith.constant 0 : i32
    %c0_i32_0 = arith.constant 0 : i32
    %c0_i32_1 = arith.constant 0 : i32
    return %c0_i32, %c0_i32_0 : i32, i32
  }
  func.func @transform_3(%arg0: i32, %arg1: i32) -> (i32, i32, i32) {
    %c0_i32 = arith.constant 0 : i32
    %c0_i32_0 = arith.constant 0 : i32
    %c0_i32_1 = arith.constant 0 : i32
    %c0_i32_2 = arith.constant 0 : i32
    return %c0_i32, %c0_i32_0, %c0_i32_1 : i32, i32, i32
  }
  func.func @transform_4(%arg0: i32, %arg1: i32) -> (i32, i32) {
    %c0_i32 = arith.constant 0 : i32
    %c0_i32_0 = arith.constant 0 : i32
    %c0_i32_1 = arith.constant 0 : i32
    return %c0_i32, %c0_i32_0 : i32, i32
  }
  func.func @transform_5(%arg0: i32, %arg1: i32) -> (i32, i32, i32, i32) {
    %c0_i32 = arith.constant 0 : i32
    %c0_i32_0 = arith.constant 0 : i32
    %c0_i32_1 = arith.constant 0 : i32
    return %arg0, %arg1, %c0_i32, %c0_i32_0 : i32, i32, i32, i32
  }
}

</mosaic_0001>

<llo_original>
// kernel: tpu_custom_call.1
$region0: #{tpu_custom_call.1}
  #allocation0 [shape = 'u32[]', space=smem, size = 0x4, offset = 0x4, fixed_abs, tag = 'smem constant byte address 0x4 - core index']
  #allocation1 [shape = 'u32[144,128]{1,0:T(1,128)}', space=vmem, size = 0x12000, scoped, tag = 'internal scratch']
  #allocation2 [shape = 'bf16[18,18,128]{2,1,0:T(8,128)(2,1)}', space=vmem, size = 0x1b000, scoped, tag = 'scratch operand']
  %s0 = inlined_call_operand.hbm [shape: bf16[2,16,16,128], index: 0, kind: input, shape index: {}]
  %s1 = inlined_call_operand.hbm [shape: bf16[128,128], index: 1, kind: input, shape index: {}]
  %s2 = inlined_call_operand.vmem [shape: f32[1,128], index: 2, kind: input, shape index: {}]
  %s3 = inlined_call_operand.hbm [shape: bf16[3,384,128], index: 3, kind: input, shape index: {}]
  %s4 = inlined_call_operand.vmem [shape: f32[1,128], index: 4, kind: input, shape index: {}]
  %s5 = inlined_call_operand.hbm [shape: bf16[2,16,16,128], index: 5, kind: output, shape index: {}]
  %s6 = sld [smem:[#allocation0]]
  $region81: #{tpu_custom_call.1} parent=0
    _
  %s8 = ssub.s32 1, %s6
  %s9 = scalar_select 0, %s8, %s6
  $region1: #{tpu_custom_call.1} parent=0
    #allocation3 [shape = 'u8[131072]{0}', space=vmem, size = 0x20000, scoped, tag = 'input window, operand 0']
    #allocation4 [shape = 's32[2]{0}', space=sflag, size = 0x8, scoped, tag = 'scoped memory for tpu_custom_call.1']
    #allocation5 [shape = 's32[2]{0}', space=sflag, size = 0x8, scoped, tag = 'scoped memory for tpu_custom_call.1']
    #allocation6 [shape = 'u8[32768]{0}', space=vmem, size = 0x8000, scoped, tag = 'input window, operand 1, single buffered']
    #allocation7 [shape = 's32[1]{0}', space=sflag, size = 0x4, scoped, tag = 'scoped memory for tpu_custom_call.1']
    #allocation8 [shape = 'u8[294912]{0}', space=vmem, size = 0x48000, scoped, tag = 'input window, operand 3, single buffered']
    #allocation9 [shape = 'u8[131072]{0}', space=vmem, size = 0x20000, scoped, tag = 'output window, operand 0']
    %10 = vsyncpa [#allocation4], 0
    %s11 = scalar_lea.sflag [#allocation4], 1
    %12 = vsyncpa %s11, 0
    %13 = vsyncpa [#allocation7], 0
    %14 = vsyncpa [#allocation5], 0
    %s15 = scalar_lea.sflag [#allocation5], 1
    %16 = vsyncpa %s15, 0
    loop: start=0, step=1, limit=4
    $region2: #{tpu_custom_call.1} parent=1 // loop_pre_header
      _
    $region3: #{tpu_custom_call.1} parent=1 // loop_header
      %s18 = sphi 0, %s22
      %p19 = scmp.ge.s32.totalorder %s18, 4
      %s25 = sphi 0, %s37
      %s26 = sphi 0, %s33
      %s27 = sphi 0, %s25
      %s28 = sphi 0, %s26
      %s29 = sphi 0, %s27
      %s30 = sphi 0, %s28
      %s40 = sphi 0, %s42
      %s43 = sphi 0, %s40
      %s44 = sphi 0, %s43
      %s60 = sphi 0, %s44
      %s64 = sphi 0, %s64
      %s66 = sphi 0, %s64
      %s67 = sphi 0, %s66
      %s81 = sphi 0, %s67
      %s85 = sphi 0, %s85
      %s87 = sphi 0, %s85
      %s88 = sphi 0, %s87
      %s102 = sphi 0, %s88
      %s106 = sphi 0, %s106
      %s108 = sphi 0, %s106
      %s109 = sphi 0, %s108
      %s123 = sphi 0, %s109
      %s127 = sphi 0, %s127
      %s129 = sphi 0, %s127
      %s130 = sphi 0, %s129
      %s144 = sphi 0, %s130
      %s152 = sphi 0, %s154
      %s155 = sphi 0, %s152
      %s156 = sphi 0, %s155
      %s172 = sphi 0, %s156
    $region4: #{tpu_custom_call.1} parent=1 // loop_header_branch
      %21 = sbr.rel (%p19) target = $region8
    $region5: #{tpu_custom_call.1} parent=1 // loop_body
      %s23 = ssub.s32 %s18, 1
      %s24 = ssub.s32 %s18, 2
      %s31 = sadd.s32 1, %s26
      %p32 = scmp.ge.s32.totalorder %s31, 1
      %s33 = scalar_select %p32, 0, %s31
      %s34 = sadd.s32 1, %s25
      %s35 = scalar_select %p32, %s34, %s25
      %p36 = scmp.ge.s32.totalorder %s35, 2
      %s37 = scalar_select %p36, 0, %s35
      %s38 = ssub.s32 %s25, %s37
      %p39 = scmp.eq.s32.totalorder %s38, 0
      %s41 = sadd.s32 %s40, 1
      %s42 = scalar_select %p39, %s40, %s41
      %p45 = pneg %p39
      %p46 = scmp.eq.s32.totalorder %s18, 1
      %p47 = por %p45, %p46
      %p48 = scmp.ne.s32.totalorder %s40, %s43
      %p49 = scmp.eq.s32.totalorder %s18, 0
      %p50 = por %p48, %p49
      %p51 = scmp.ne.s32.totalorder %s40, %s43
      %p52 = scmp.eq.s32.totalorder %s23, 1
      %p53 = por %p51, %p52
      %p54 = scmp.ne.s32.totalorder %s43, %s44
      %p55 = scmp.eq.s32.totalorder %s23, 0
      %p56 = por %p54, %p55
      %p57 = scmp.ne.s32.totalorder %s43, %s44
      %p58 = scmp.eq.s32.totalorder %s24, 1
      %p59 = por %p57, %p58
      %p61 = scmp.ne.s32.totalorder %s44, %s60
      %p62 = scmp.eq.s32.totalorder %s24, 0
      %p63 = por %p61, %p62
      %s65 = sadd.s32 %s64, 1
      %p68 = scmp.eq.s32.totalorder %s18, 1
      %p69 = scmp.ne.s32.totalorder %s64, %s66
      %p70 = scmp.eq.s32.totalorder %s18, 0
      %p71 = por %p69, %p70
      %p72 = scmp.ne.s32.totalorder %s64, %s66
      %p73 = scmp.eq.s32.totalorder %s23, 1
      %p74 = por %p72, %p73
      %p75 = scmp.ne.s32.totalorder %s66, %s67
      %p76 = scmp.eq.s32.totalorder %s23, 0
      %p77 = por %p75, %p76
      %p78 = scmp.ne.s32.totalorder %s66, %s67
      %p79 = scmp.eq.s32.totalorder %s24, 1
      %p80 = por %p78, %p79
      %p82 = scmp.ne.s32.totalorder %s67, %s81
      %p83 = scmp.eq.s32.totalorder %s24, 0
      %p84 = por %p82, %p83
      %s86 = sadd.s32 %s85, 1
      %p89 = scmp.eq.s32.totalorder %s18, 1
      %p90 = scmp.ne.s32.totalorder %s85, %s87
      %p91 = scmp.eq.s32.totalorder %s18, 0
      %p92 = por %p90, %p91
      %p93 = scmp.ne.s32.totalorder %s85, %s87
      %p94 = scmp.eq.s32.totalorder %s23, 1
      %p95 = por %p93, %p94
      %p96 = scmp.ne.s32.totalorder %s87, %s88
      %p97 = scmp.eq.s32.totalorder %s23, 0
      %p98 = por %p96, %p97
      %p99 = scmp.ne.s32.totalorder %s87, %s88
      %p100 = scmp.eq.s32.totalorder %s24, 1
      %p101 = por %p99, %p100
      %p103 = scmp.ne.s32.totalorder %s88, %s102
      %p104 = scmp.eq.s32.totalorder %s24, 0
      %p105 = por %p103, %p104
      %s107 = sadd.s32 %s106, 1
      %p110 = scmp.eq.s32.totalorder %s18, 1
      %p111 = scmp.ne.s32.totalorder %s106, %s108
      %p112 = scmp.eq.s32.totalorder %s18, 0
      %p113 = por %p111, %p112
      %p114 = scmp.ne.s32.totalorder %s106, %s108
      %p115 = scmp.eq.s32.totalorder %s23, 1
      %p116 = por %p114, %p115
      %p117 = scmp.ne.s32.totalorder %s108, %s109
      %p118 = scmp.eq.s32.totalorder %s23, 0
      %p119 = por %p117, %p118
      %p120 = scmp.ne.s32.totalorder %s108, %s109
      %p121 = scmp.eq.s32.totalorder %s24, 1
      %p122 = por %p120, %p121
      %p124 = scmp.ne.s32.totalorder %s109, %s123
      %p125 = scmp.eq.s32.totalorder %s24, 0
      %p126 = por %p124, %p125
      %s128 = sadd.s32 %s127, 1
      %p131 = scmp.eq.s32.totalorder %s18, 1
      %p132 = scmp.ne.s32.totalorder %s127, %s129
      %p133 = scmp.eq.s32.totalorder %s18, 0
      %p134 = por %p132, %p133
      %p135 = scmp.ne.s32.totalorder %s127, %s129
      %p136 = scmp.eq.s32.totalorder %s23, 1
      %p137 = por %p135, %p136
      %p138 = scmp.ne.s32.totalorder %s129, %s130
      %p139 = scmp.eq.s32.totalorder %s23, 0
      %p140 = por %p138, %p139
      %p141 = scmp.ne.s32.totalorder %s129, %s130
      %p142 = scmp.eq.s32.totalorder %s24, 1
      %p143 = por %p141, %p142
      %p145 = scmp.ne.s32.totalorder %s130, %s144
      %p146 = scmp.eq.s32.totalorder %s24, 0
      %p147 = por %p145, %p146
      %s148 = ssub.s32 %s25, %s37
      %s149 = ssub.s32 %s26, %s33
      %s150 = sor.u32 %s148, %s149
      %p151 = scmp.eq.s32.totalorder %s150, 0
      %s153 = sadd.s32 %s152, 1
      %s154 = scalar_select %p151, %s152, %s153
      %p157 = pneg %p151
      %p158 = scmp.eq.s32.totalorder %s18, 1
      %p159 = por %p157, %p158
      %p160 = scmp.ne.s32.totalorder %s152, %s155
      %p161 = scmp.eq.s32.totalorder %s18, 0
      %p162 = por %p160, %p161
      %p163 = scmp.ne.s32.totalorder %s152, %s155
      %p164 = scmp.eq.s32.totalorder %s23, 1
      %p165 = por %p163, %p164
      %p166 = scmp.ne.s32.totalorder %s155, %s156
      %p167 = scmp.eq.s32.totalorder %s23, 0
      %p168 = por %p166, %p167
      %p169 = scmp.ne.s32.totalorder %s155, %s156
      %p170 = scmp.eq.s32.totalorder %s24, 1
      %p171 = por %p169, %p170
      %p173 = scmp.ne.s32.totalorder %s156, %s172
      %p174 = scmp.eq.s32.totalorder %s24, 0
      %p175 = por %p173, %p174
      %p176 = scmp.le.s32.totalorder 1, %s18
      %p177 = scmp.lt.s32.totalorder %s18, 3
      %p178 = pnand %p176, %p177
      %p179 = pneg %p178
      // Predicated region
      $region9: #{tpu_custom_call.1} parent=5 // pred_check
        _
      $region10: #{tpu_custom_call.1} parent=5 // pred_check_branch
        %181 = sbr.rel (%p178) target = $region12
      $region11: #{tpu_custom_call.1} parent=5 // pred_region
        %s182 = ssub.s32 %s18, 1
        // Predicated region
        $region13: #{tpu_custom_call.1} parent=11 // pred_check
          %p183 = pneg %p77
        $region14: #{tpu_custom_call.1} parent=11 // pred_check_branch
          %185 = sbr.rel (%p183) target = $region16
        $region15: #{tpu_custom_call.1} parent=11 // pred_region
          %s187 = ssub.s32 1024, 1024
          %188 = vsyncadd [#allocation7], %s187
          %s189 = sshll.u32 [#allocation6], 4
          %s190 = int_to_ptr.vmem [resolvable:$true] %s189
          %195 = dma.hbm_to_vmem [thread:$0]  %s1, 1024, %s190, [#allocation7], 64, 64, 4
        $region16: #{tpu_custom_call.1} parent=11 // pred_fallthru
          _
        // Predicated region
        $region17: #{tpu_custom_call.1} parent=11 // pred_check
          %p196 = pneg %p98
        $region18: #{tpu_custom_call.1} parent=11 // pred_check_branch
          %198 = sbr.rel (%p196) target = $region20
        $region19: #{tpu_custom_call.1} parent=11 // pred_region
          _
        $region20: #{tpu_custom_call.1} parent=11 // pred_fallthru
          _
        // Predicated region
        $region21: #{tpu_custom_call.1} parent=11 // pred_check
          %p199 = pneg %p119
        $region22: #{tpu_custom_call.1} parent=11 // pred_check_branch
          %201 = sbr.rel (%p199) target = $region24
        $region23: #{tpu_custom_call.1} parent=11 // pred_region
          %s203 = ssub.s32 9216, 9216
          %204 = vsyncadd [#allocation7], %s203
          %s205 = sshll.u32 [#allocation8], 4
          %s206 = int_to_ptr.vmem [resolvable:$true] %s205
          %211 = dma.hbm_to_vmem [thread:$0]  %s3, 9216, %s206, [#allocation7], 64, 64, 4
        $region24: #{tpu_custom_call.1} parent=11 // pred_fallthru
          _
        // Predicated region
        $region25: #{tpu_custom_call.1} parent=11 // pred_check
          %p212 = pneg %p140
        $region26: #{tpu_custom_call.1} parent=11 // pred_check_branch
          %214 = sbr.rel (%p212) target = $region28
        $region27: #{tpu_custom_call.1} parent=11 // pred_region
          _
        $region28: #{tpu_custom_call.1} parent=11 // pred_fallthru
          _
      $region12: #{tpu_custom_call.1} parent=5 // pred_fallthru
        _
      %p215 = scmp.lt.s32.totalorder %s18, 2
      // Predicated region
      $region29: #{tpu_custom_call.1} parent=5 // pred_check
        %p216 = pneg %p215
      $region30: #{tpu_custom_call.1} parent=5 // pred_check_branch
        %218 = sbr.rel (%p216) target = $region32
      $region31: #{tpu_custom_call.1} parent=5 // pred_region
        // Predicated region
        $region33: #{tpu_custom_call.1} parent=31 // pred_check
          %p219 = pneg %p50
        $region34: #{tpu_custom_call.1} parent=31 // pred_check_branch
          %221 = sbr.rel (%p219) target = $region36
        $region35: #{tpu_custom_call.1} parent=31 // pred_region
          %s222 = sand.u32 %s40, 1
          %s223 = scalar_lea.sflag [#allocation4], %s222
          %s224 = sand.u32 %s40, 1
          %s225 = smul.addr %s224, 128
          %s226 = scalar_lea.vmem [#allocation3], %s225
          %s228 = ssub.s32 2048, 2048
          %229 = vsyncadd %s223, %s228
          %s230 = smul.addr %s25, 32
          %s231 = smul.addr %s230, 64
          %s232 = scalar_lea.hbm %s0, %s231
          %s233 = sshll.u32 %s226, 4
          %s234 = int_to_ptr.vmem [resolvable:$true] %s233
          %239 = dma.hbm_to_vmem [thread:$0]  %s232, 2048, %s234, %s223, 64, 64, 4
        $region36: #{tpu_custom_call.1} parent=31 // pred_fallthru
          _
      $region32: #{tpu_custom_call.1} parent=5 // pred_fallthru
        _
      %p240 = scmp.le.s32.totalorder 1, %s18
      %p241 = scmp.lt.s32.totalorder %s18, 3
      %p242 = pnand %p240, %p241
      %p243 = pneg %p242
      // Predicated region
      $region37: #{tpu_custom_call.1} parent=5 // pred_check
        _
      $region38: #{tpu_custom_call.1} parent=5 // pred_check_branch
        %245 = sbr.rel (%p242) target = $region40
      $region39: #{tpu_custom_call.1} parent=5 // pred_region
        %s246 = ssub.s32 %s18, 1
        %s247 = sand.u32 %s43, 1
        %s248 = scalar_lea.sflag [#allocation4], %s247
        %s249 = sand.u32 %s43, 1
        %s250 = smul.addr %s249, 128
        %s251 = scalar_lea.vmem [#allocation3], %s250
        // Predicated region
        $region41: #{tpu_custom_call.1} parent=39 // pred_check
          %p252 = pneg %p56
        $region42: #{tpu_custom_call.1} parent=39 // pred_check_branch
          %254 = sbr.rel (%p252) target = $region44
        $region43: #{tpu_custom_call.1} parent=39 // pred_region
          %255 = dma.done %s248, 2048
        $region44: #{tpu_custom_call.1} parent=39 // pred_fallthru
          _
        // Predicated region
        $region45: #{tpu_custom_call.1} parent=39 // pred_check
          %p256 = pneg %p77
        $region46: #{tpu_custom_call.1} parent=39 // pred_check_branch
          %258 = sbr.rel (%p256) target = $region48
        $region47: #{tpu_custom_call.1} parent=39 // pred_region
          %259 = dma.done [#allocation7], 1024
        $region48: #{tpu_custom_call.1} parent=39 // pred_fallthru
          _
        // Predicated region
        $region49: #{tpu_custom_call.1} parent=39 // pred_check
          %p260 = pneg %p119
        $region50: #{tpu_custom_call.1} parent=39 // pred_check_branch
          %262 = sbr.rel (%p260) target = $region52
        $region51: #{tpu_custom_call.1} parent=39 // pred_region
          %263 = dma.done [#allocation7], 9216
        $region52: #{tpu_custom_call.1} parent=39 // pred_fallthru
          _
        %s264 = sand.u32 %s43, 1
        %s265 = scalar_lea.sflag [#allocation4], %s264
        %s266 = sand.u32 %s43, 1
        %s267 = smul.addr %s266, 128
        %s268 = scalar_lea.vmem [#allocation3], %s267
        %p269 = pneg %p56
        %p270 = pneg %p53
        %p271 = pneg %p77
        %p272 = pneg %p74
        %p273 = pneg %p98
        %p274 = pneg %p95
        %p275 = pneg %p119
        %p276 = pneg %p116
        %p277 = pneg %p140
        %p278 = pneg %p137
        %p279 = pneg %p168
        %p280 = pneg %p165
        %s281 = sand.u32 %s155, 1
        %s282 = scalar_lea.sflag [#allocation5], %s281
        %s283 = sand.u32 %s155, 1
        %s284 = smul.addr %s283, 128
        %s285 = scalar_lea.vmem [#allocation9], %s284
        %s286 = smul.u32 16, %s28
        %s288 = smul.u32 %s28, 16
        %s289 = smul.u32 %s288, 2
        %s290 = smul.addr %s289, 4
        %s291 = scalar_lea.vmem %s251, %s290 [#allocation3]
        %v292 = vld [vmem:[%s291] sm:$0xf]
        %v293 = vld [vmem:[%s291 + $0x4] sm:$0xf]
        %v294 = vld [vmem:[%s291 + $0x8] sm:$0xf]
        %v295 = vld [vmem:[%s291 + $0xc] sm:$0xf]
        %v296 = vld [vmem:[%s291 + $0x10] sm:$0xf]
        %v297 = vld [vmem:[%s291 + $0x14] sm:$0xf]
        %v298 = vld [vmem:[%s291 + $0x18] sm:$0xf]
        %v299 = vld [vmem:[%s291 + $0x1c] sm:$0xf]
        %v300 = vld [vmem:[%s291 + $0x20] sm:$0xf]
        %v301 = vld [vmem:[%s291 + $0x24] sm:$0xf]
        %v302 = vld [vmem:[%s291 + $0x28] sm:$0xf]
        %v303 = vld [vmem:[%s291 + $0x2c] sm:$0xf]
        %v304 = vld [vmem:[%s291 + $0x30] sm:$0xf]
        %v305 = vld [vmem:[%s291 + $0x34] sm:$0xf]
        %v306 = vld [vmem:[%s291 + $0x38] sm:$0xf]
        %v307 = vld [vmem:[%s291 + $0x3c] sm:$0xf]
        %v308 = vld [vmem:[%s291 + $0x40] sm:$0xf]
        %v309 = vld [vmem:[%s291 + $0x44] sm:$0xf]
        %v310 = vld [vmem:[%s291 + $0x48] sm:$0xf]
        %v311 = vld [vmem:[%s291 + $0x4c] sm:$0xf]
        %v312 = vld [vmem:[%s291 + $0x50] sm:$0xf]
        %v313 = vld [vmem:[%s291 + $0x54] sm:$0xf]
        %v314 = vld [vmem:[%s291 + $0x58] sm:$0xf]
        %v315 = vld [vmem:[%s291 + $0x5c] sm:$0xf]
        %v316 = vld [vmem:[%s291 + $0x60] sm:$0xf]
        %v317 = vld [vmem:[%s291 + $0x64] sm:$0xf]
        %v318 = vld [vmem:[%s291 + $0x68] sm:$0xf]
        %v319 = vld [vmem:[%s291 + $0x6c] sm:$0xf]
        %v320 = vld [vmem:[%s291 + $0x70] sm:$0xf]
        %v321 = vld [vmem:[%s291 + $0x74] sm:$0xf]
        %v322 = vld [vmem:[%s291 + $0x78] sm:$0xf]
        %v323 = vld [vmem:[%s291 + $0x7c] sm:$0xf]
        %v324 = vld [vmem:[#allocation6] sm:$0xf]
        %v325 = vld [vmem:[#allocation6 + $0x4] sm:$0xf]
        %v326 = vld [vmem:[#allocation6 + $0x8] sm:$0xf]
        %v327 = vld [vmem:[#allocation6 + $0xc] sm:$0xf]
        %v328 = vld [vmem:[#allocation6 + $0x10] sm:$0xf]
        %v329 = vld [vmem:[#allocation6 + $0x14] sm:$0xf]
        %v330 = vld [vmem:[#allocation6 + $0x18] sm:$0xf]
        %v331 = vld [vmem:[#allocation6 + $0x1c] sm:$0xf]
        %v332 = vld [vmem:[#allocation6 + $0x20] sm:$0xf]
        %v333 = vld [vmem:[#allocation6 + $0x24] sm:$0xf]
        %v334 = vld [vmem:[#allocation6 + $0x28] sm:$0xf]
        %v335 = vld [vmem:[#allocation6 + $0x2c] sm:$0xf]
        %v336 = vld [vmem:[#allocation6 + $0x30] sm:$0xf]
        %v337 = vld [vmem:[#allocation6 + $0x34] sm:$0xf]
        %v338 = vld [vmem:[#allocation6 + $0x38] sm:$0xf]
        %v339 = vld [vmem:[#allocation6 + $0x3c] sm:$0xf]
        %v340 = vld [vmem:[%s2] sm:$0x1]
        %v342 = vlaneseq
        %v343 = vshrl.u32 %v342, 7
        %v344 = vsub.s32 0, %v343
        %v345 = vrot.slane %v340, %v344
        %v379 = vunpack.c.l.b16 %v292
        %v380 = vunpack.c.l.b16 %v293
        %v381 = vunpack.c.l.b16 %v294
        %v382 = vunpack.c.l.b16 %v295
        %v383 = vunpack.c.l.b16 %v296
        %v384 = vunpack.c.l.b16 %v297
        %v385 = vunpack.c.l.b16 %v298
        %v386 = vunpack.c.l.b16 %v299
        %v387 = vunpack.c.l.b16 %v300
        %v388 = vunpack.c.l.b16 %v301
        %v389 = vunpack.c.l.b16 %v302
        %v390 = vunpack.c.l.b16 %v303
        %v391 = vunpack.c.l.b16 %v304
        %v392 = vunpack.c.l.b16 %v305
        %v393 = vunpack.c.l.b16 %v306
        %v394 = vunpack.c.l.b16 %v307
        %v395 = vunpack.c.l.b16 %v308
        %v396 = vunpack.c.l.b16 %v309
        %v397 = vunpack.c.l.b16 %v310
        %v398 = vunpack.c.l.b16 %v311
        %v399 = vunpack.c.l.b16 %v312
        %v400 = vunpack.c.l.b16 %v313
        %v401 = vunpack.c.l.b16 %v314
        %v402 = vunpack.c.l.b16 %v315
        %v403 = vunpack.c.l.b16 %v316
        %v404 = vunpack.c.l.b16 %v317
        %v405 = vunpack.c.l.b16 %v318
        %v406 = vunpack.c.l.b16 %v319
        %v407 = vunpack.c.l.b16 %v320
        %v408 = vunpack.c.l.b16 %v321
        %v409 = vunpack.c.l.b16 %v322
        %v410 = vunpack.c.l.b16 %v323
        %v411 = vpack.c.b16 %v380, %v379
        %v412 = vpack.c.b16 %v382, %v381
        %v413 = vpack.c.b16 %v384, %v383
        %v414 = vpack.c.b16 %v386, %v385
        %v415 = vpack.c.b16 %v388, %v387
        %v416 = vpack.c.b16 %v390, %v389
        %v417 = vpack.c.b16 %v392, %v391
        %v418 = vpack.c.b16 %v394, %v393
        %v419 = vpack.c.b16 %v396, %v395
        %v420 = vpack.c.b16 %v398, %v397
        %v421 = vpack.c.b16 %v400, %v399
        %v422 = vpack.c.b16 %v402, %v401
        %v423 = vpack.c.b16 %v404, %v403
        %v424 = vpack.c.b16 %v406, %v405
        %v425 = vpack.c.b16 %v408, %v407
        %v426 = vpack.c.b16 %v410, %v409
        %v459 = vunpack.c.l.b16 %v324
        %v460 = vunpack.c.l.b16 %v325
        %v461 = vunpack.c.l.b16 %v326
        %v462 = vunpack.c.l.b16 %v327
        %v463 = vunpack.c.l.b16 %v328
        %v464 = vunpack.c.l.b16 %v329
        %v465 = vunpack.c.l.b16 %v330
        %v466 = vunpack.c.l.b16 %v331
        %v467 = vunpack.c.l.b16 %v332
        %v468 = vunpack.c.l.b16 %v333
        %v469 = vunpack.c.l.b16 %v334
        %v470 = vunpack.c.l.b16 %v335
        %v471 = vunpack.c.l.b16 %v336
        %v472 = vunpack.c.l.b16 %v337
        %v473 = vunpack.c.l.b16 %v338
        %v474 = vunpack.c.l.b16 %v339
        %v475 = vpack.c.b16 %v460, %v459
        %v476 = vpack.c.b16 %v462, %v461
        %v477 = vpack.c.b16 %v464, %v463
        %v478 = vpack.c.b16 %v466, %v465
        %v479 = vpack.c.b16 %v468, %v467
        %v480 = vpack.c.b16 %v470, %v469
        %v481 = vpack.c.b16 %v472, %v471
        %v482 = vpack.c.b16 %v474, %v473
        %491 = vmatprep.subr.bf16.mxu0 0
        %492 = vmatpush1.bf16.msra.mxu0 %v475
        %493 = vmatprep.subr.bf16.mxu0 0
        %494 = vmatpush1.bf16.msra.mxu0 %v476
        %495 = vmatprep.subr.bf16.mxu0 0
        %496 = vmatpush1.bf16.msra.mxu0 %v477
        %497 = vmatprep.subr.bf16.mxu0 0
        %498 = vmatpush1.bf16.msra.mxu0 %v478
        %499 = vmatprep.subr.bf16.mxu0 0
        %500 = vmatpush1.bf16.msra.mxu0 %v479
        %501 = vmatprep.subr.bf16.mxu0 0
        %502 = vmatpush1.bf16.msra.mxu0 %v480
        %503 = vmatprep.subr.bf16.mxu0 0
        %504 = vmatpush1.bf16.msra.mxu0 %v481
        %505 = vmatprep.subr.bf16.mxu0 0
        %506 = vmatpush1.bf16.msra.mxu0 %v482
        %507 = vmatprep.subr.bf16.mxu0 0
        %508 = vmatpush1.bf16.msra.mxu0 0
        %509 = vmatprep.subr.bf16.mxu0 0
        %510 = vmatpush1.bf16.msra.mxu0 0
        %511 = vmatprep.subr.bf16.mxu0 0
        %512 = vmatpush1.bf16.msra.mxu0 0
        %513 = vmatprep.subr.bf16.mxu0 0
        %514 = vmatpush1.bf16.msra.mxu0 0
        %515 = vmatprep.subr.bf16.mxu0 0
        %516 = vmatpush1.bf16.msra.mxu0 0
        %517 = vmatprep.subr.bf16.mxu0 0
        %518 = vmatpush1.bf16.msra.mxu0 0
        %519 = vmatprep.subr.bf16.mxu0 0
        %520 = vmatpush1.bf16.msra.mxu0 0
        %521 = vmatprep.subr.bf16.mxu0 0
        %522 = vmatpush1.bf16.msra.mxu0 0
        %523 = vmatprep.mubr.bf16.mxu0 0
        %524 = vmatmul.mubr.bf16.gmra.mrb[0].mxu0 %v411
        %v525 = vpop.f32.mrb[0].mxu0
        %v526 = vadd.f32 %v345, %v525
        %v527 = vpop.f32.mrb[0].mxu0
        %v528 = vpop.f32.mrb[0].mxu0
        %v529 = vadd.f32 %v345, %v528
        %v530 = vpop.f32.mrb[0].mxu0
        %531 = vmatprep.mubr.bf16.mxu0 0
        %532 = vmatmul.mubr.bf16.gmra.mrb[0].mxu0 %v412
        %v533 = vpop.f32.mrb[0].mxu0
        %v534 = vadd.f32 %v345, %v533
        %v535 = vpop.f32.mrb[0].mxu0
        %v536 = vpop.f32.mrb[0].mxu0
        %v537 = vadd.f32 %v345, %v536
        %v538 = vpop.f32.mrb[0].mxu0
        %539 = vmatprep.mubr.bf16.mxu0 0
        %540 = vmatmul.mubr.bf16.gmra.mrb[0].mxu0 %v413
        %v541 = vpop.f32.mrb[0].mxu0
        %v542 = vadd.f32 %v345, %v541
        %v543 = vpop.f32.mrb[0].mxu0
        %v544 = vpop.f32.mrb[0].mxu0
        %v545 = vadd.f32 %v345, %v544
        %v546 = vpop.f32.mrb[0].mxu0
        %547 = vmatprep.mubr.bf16.mxu0 0
        %548 = vmatmul.mubr.bf16.gmra.mrb[0].mxu0 %v414
        %v549 = vpop.f32.mrb[0].mxu0
        %v550 = vadd.f32 %v345, %v549
        %v551 = vpop.f32.mrb[0].mxu0
        %v552 = vpop.f32.mrb[0].mxu0
        %v553 = vadd.f32 %v345, %v552
        %v554 = vpop.f32.mrb[0].mxu0
        %555 = vmatprep.mubr.bf16.mxu0 0
        %556 = vmatmul.mubr.bf16.gmra.mrb[0].mxu0 %v415
        %v557 = vpop.f32.mrb[0].mxu0
        %v558 = vadd.f32 %v345, %v557
        %v559 = vpop.f32.mrb[0].mxu0
        %v560 = vpop.f32.mrb[0].mxu0
        %v561 = vadd.f32 %v345, %v560
        %v562 = vpop.f32.mrb[0].mxu0
        %563 = vmatprep.mubr.bf16.mxu0 0
        %564 = vmatmul.mubr.bf16.gmra.mrb[0].mxu0 %v416
        %v565 = vpop.f32.mrb[0].mxu0
        %v566 = vadd.f32 %v345, %v565
        %v567 = vpop.f32.mrb[0].mxu0
        %v568 = vpop.f32.mrb[0].mxu0
        %v569 = vadd.f32 %v345, %v568
        %v570 = vpop.f32.mrb[0].mxu0
        %571 = vmatprep.mubr.bf16.mxu0 0
        %572 = vmatmul.mubr.bf16.gmra.mrb[0].mxu0 %v417
        %v573 = vpop.f32.mrb[0].mxu0
        %v574 = vadd.f32 %v345, %v573
        %v575 = vpop.f32.mrb[0].mxu0
        %v576 = vpop.f32.mrb[0].mxu0
        %v577 = vadd.f32 %v345, %v576
        %v578 = vpop.f32.mrb[0].mxu0
        %579 = vmatprep.mubr.bf16.mxu0 0
        %580 = vmatmul.mubr.bf16.gmra.mrb[0].mxu0 %v418
        %v581 = vpop.f32.mrb[0].mxu0
        %v582 = vadd.f32 %v345, %v581
        %v583 = vpop.f32.mrb[0].mxu0
        %v584 = vpop.f32.mrb[0].mxu0
        %v585 = vadd.f32 %v345, %v584
        %v586 = vpop.f32.mrb[0].mxu0
        %587 = vmatprep.mubr.bf16.mxu0 0
        %588 = vmatmul.mubr.bf16.gmra.mrb[0].mxu0 %v419
        %v589 = vpop.f32.mrb[0].mxu0
        %v590 = vadd.f32 %v345, %v589
        %v591 = vpop.f32.mrb[0].mxu0
        %v592 = vpop.f32.mrb[0].mxu0
        %v593 = vadd.f32 %v345, %v592
        %v594 = vpop.f32.mrb[0].mxu0
        %595 = vmatprep.mubr.bf16.mxu0 0
        %596 = vmatmul.mubr.bf16.gmra.mrb[0].mxu0 %v420
        %v597 = vpop.f32.mrb[0].mxu0
        %v598 = vadd.f32 %v345, %v597
        %v599 = vpop.f32.mrb[0].mxu0
        %v600 = vpop.f32.mrb[0].mxu0
        %v601 = vadd.f32 %v345, %v600
        %v602 = vpop.f32.mrb[0].mxu0
        %603 = vmatprep.mubr.bf16.mxu0 0
        %604 = vmatmul.mubr.bf16.gmra.mrb[0].mxu0 %v421
        %v605 = vpop.f32.mrb[0].mxu0
        %v606 = vadd.f32 %v345, %v605
        %v607 = vpop.f32.mrb[0].mxu0
        %v608 = vpop.f32.mrb[0].mxu0
        %v609 = vadd.f32 %v345, %v608
        %v610 = vpop.f32.mrb[0].mxu0
        %611 = vmatprep.mubr.bf16.mxu0 0
        %612 = vmatmul.mubr.bf16.gmra.mrb[0].mxu0 %v422
        %v613 = vpop.f32.mrb[0].mxu0
        %v614 = vadd.f32 %v345, %v613
        %v615 = vpop.f32.mrb[0].mxu0
        %v616 = vpop.f32.mrb[0].mxu0
        %v617 = vadd.f32 %v345, %v616
        %v618 = vpop.f32.mrb[0].mxu0
        %619 = vmatprep.mubr.bf16.mxu0 0
        %620 = vmatmul.mubr.bf16.gmra.mrb[0].mxu0 %v423
        %v621 = vpop.f32.mrb[0].mxu0
        %v622 = vadd.f32 %v345, %v621
        %v623 = vpop.f32.mrb[0].mxu0
        %v624 = vpop.f32.mrb[0].mxu0
        %v625 = vadd.f32 %v345, %v624
        %v626 = vpop.f32.mrb[0].mxu0
        %627 = vmatprep.mubr.bf16.mxu0 0
        %628 = vmatmul.mubr.bf16.gmra.mrb[0].mxu0 %v424
        %v629 = vpop.f32.mrb[0].mxu0
        %v630 = vadd.f32 %v345, %v629
        %v631 = vpop.f32.mrb[0].mxu0
        %v632 = vpop.f32.mrb[0].mxu0
        %v633 = vadd.f32 %v345, %v632
        %v634 = vpop.f32.mrb[0].mxu0
        %635 = vmatprep.mubr.bf16.mxu0 0
        %636 = vmatmul.mubr.bf16.gmra.mrb[0].mxu0 %v425
        %v637 = vpop.f32.mrb[0].mxu0
        %v638 = vadd.f32 %v345, %v637
        %v639 = vpop.f32.mrb[0].mxu0
        %v640 = vpop.f32.mrb[0].mxu0
        %v641 = vadd.f32 %v345, %v640
        %v642 = vpop.f32.mrb[0].mxu0
        %643 = vmatprep.mubr.bf16.mxu0 0
        %644 = vmatmul.mubr.bf16.gmra.mrb[0].mxu0 %v426
        %v645 = vpop.f32.mrb[0].mxu0
        %v646 = vadd.f32 %v345, %v645
        %v647 = vpop.f32.mrb[0].mxu0
        %v648 = vpop.f32.mrb[0].mxu0
        %v649 = vadd.f32 %v345, %v648
        %v650 = vpop.f32.mrb[0].mxu0
        %651 = vdwg.mxu0
        %v652 = vmax.f32 %v526, 0.0
        %v653 = vmax.f32 %v529, 0.0
        %v654 = vmax.f32 %v534, 0.0
        %v655 = vmax.f32 %v537, 0.0
        %v656 = vmax.f32 %v542, 0.0
        %v657 = vmax.f32 %v545, 0.0
        %v658 = vmax.f32 %v550, 0.0
        %v659 = vmax.f32 %v553, 0.0
        %v660 = vmax.f32 %v558, 0.0
        %v661 = vmax.f32 %v561, 0.0
        %v662 = vmax.f32 %v566, 0.0
        %v663 = vmax.f32 %v569, 0.0
        %v664 = vmax.f32 %v574, 0.0
        %v665 = vmax.f32 %v577, 0.0
        %v666 = vmax.f32 %v582, 0.0
        %v667 = vmax.f32 %v585, 0.0
        %v668 = vmax.f32 %v590, 0.0
        %v669 = vmax.f32 %v593, 0.0
        %v670 = vmax.f32 %v598, 0.0
        %v671 = vmax.f32 %v601, 0.0
        %v672 = vmax.f32 %v606, 0.0
        %v673 = vmax.f32 %v609, 0.0
        %v674 = vmax.f32 %v614, 0.0
        %v675 = vmax.f32 %v617, 0.0
        %v676 = vmax.f32 %v622, 0.0
        %v677 = vmax.f32 %v625, 0.0
        %v678 = vmax.f32 %v630, 0.0
        %v679 = vmax.f32 %v633, 0.0
        %v680 = vmax.f32 %v638, 0.0
        %v681 = vmax.f32 %v641, 0.0
        %v682 = vmax.f32 %v646, 0.0
        %v683 = vmax.f32 %v649, 0.0
        %v684 = vpack.c.bf16 %v653, %v652
        %v685 = vpack.c.bf16 %v655, %v654
        %v686 = vpack.c.bf16 %v657, %v656
        %v687 = vpack.c.bf16 %v659, %v658
        %v688 = vpack.c.bf16 %v661, %v660
        %v689 = vpack.c.bf16 %v663, %v662
        %v690 = vpack.c.bf16 %v665, %v664
        %v691 = vpack.c.bf16 %v667, %v666
        %v692 = vpack.c.bf16 %v669, %v668
        %v693 = vpack.c.bf16 %v671, %v670
        %v694 = vpack.c.bf16 %v673, %v672
        %v695 = vpack.c.bf16 %v675, %v674
        %v696 = vpack.c.bf16 %v677, %v676
        %v697 = vpack.c.bf16 %v679, %v678
        %v698 = vpack.c.bf16 %v681, %v680
        %v699 = vpack.c.bf16 %v683, %v682
        %v716 = vunpack.c.l.b16 %v684
        %v717 = vunpack.c.h.b16 %v684
        %v718 = vunpack.c.l.b16 %v685
        %v719 = vunpack.c.h.b16 %v685
        %v720 = vunpack.c.l.b16 %v686
        %v721 = vunpack.c.h.b16 %v686
        %v722 = vunpack.c.l.b16 %v687
        %v723 = vunpack.c.h.b16 %v687
        %v724 = vunpack.c.l.b16 %v688
        %v725 = vunpack.c.h.b16 %v688
        %v726 = vunpack.c.l.b16 %v689
        %v727 = vunpack.c.h.b16 %v689
        %v728 = vunpack.c.l.b16 %v690
        %v729 = vunpack.c.h.b16 %v690
        %v730 = vunpack.c.l.b16 %v691
        %v731 = vunpack.c.h.b16 %v691
        %v732 = vunpack.c.l.b16 %v692
        %v733 = vunpack.c.h.b16 %v692
        %v734 = vunpack.c.l.b16 %v693
        %v735 = vunpack.c.h.b16 %v693
        %v736 = vunpack.c.l.b16 %v694
        %v737 = vunpack.c.h.b16 %v694
        %v738 = vunpack.c.l.b16 %v695
        %v739 = vunpack.c.h.b16 %v695
        %v740 = vunpack.c.l.b16 %v696
        %v741 = vunpack.c.h.b16 %v696
        %v742 = vunpack.c.l.b16 %v697
        %v743 = vunpack.c.h.b16 %v697
        %v744 = vunpack.c.l.b16 %v698
        %v745 = vunpack.c.h.b16 %v698
        %v746 = vunpack.c.l.b16 %v699
        %v747 = vunpack.c.h.b16 %v699
        %v748 = vpack.c.b16 %v716, %v716
        %v749 = vpack.c.b16 %v717, %v717
        %v750 = vpack.c.b16 %v718, %v718
        %v751 = vpack.c.b16 %v719, %v719
        %v752 = vpack.c.b16 %v720, %v720
        %v753 = vpack.c.b16 %v721, %v721
        %v754 = vpack.c.b16 %v722, %v722
        %v755 = vpack.c.b16 %v723, %v723
        %v756 = vpack.c.b16 %v724, %v724
        %v757 = vpack.c.b16 %v725, %v725
        %v758 = vpack.c.b16 %v726, %v726
        %v759 = vpack.c.b16 %v727, %v727
        %v760 = vpack.c.b16 %v728, %v728
        %v761 = vpack.c.b16 %v729, %v729
        %v762 = vpack.c.b16 %v730, %v730
        %v763 = vpack.c.b16 %v731, %v731
        %v764 = vpack.c.b16 %v732, %v732
        %v765 = vpack.c.b16 %v733, %v733
        %v766 = vpack.c.b16 %v734, %v734
        %v767 = vpack.c.b16 %v735, %v735
        %v768 = vpack.c.b16 %v736, %v736
        %v769 = vpack.c.b16 %v737, %v737
        %v770 = vpack.c.b16 %v738, %v738
        %v771 = vpack.c.b16 %v739, %v739
        %v772 = vpack.c.b16 %v740, %v740
        %v773 = vpack.c.b16 %v741, %v741
        %v774 = vpack.c.b16 %v742, %v742
        %v775 = vpack.c.b16 %v743, %v743
        %v776 = vpack.c.b16 %v744, %v744
        %v777 = vpack.c.b16 %v745, %v745
        %v778 = vpack.c.b16 %v746, %v746
        %v779 = vpack.c.b16 %v747, %v747
        %vm780 = vsmask.f32 256
        %vm781 = vsmask.f32 4368
        %vm782 = vmor %vm780, %vm781
        %v784 = vshrl.u32 %v748, 16
        %v786 = vrot.slane %v784, 7
        %v787 = vshll.u32 %v748, 16
        %v789 = vor.u32 %v786, %v787
        %v790 = vrot.slane %v786, 4
        %v792 = vshrl.u32 %v749, 16
        %v794 = vrot.slane %v792, 7
        %v795 = vshll.u32 %v749, 16
        %v797 = vor.u32 %v794, %v795
        %v798 = vsel %vm782, %v790, %v797
        %v799 = vrot.slane %v794, 4
        %v801 = vshrl.u32 %v750, 16
        %v803 = vrot.slane %v801, 7
        %v804 = vshll.u32 %v750, 16
        %v806 = vor.u32 %v803, %v804
        %v807 = vrot.slane %v803, 4
        %v809 = vshrl.u32 %v751, 16
        %v811 = vrot.slane %v809, 7
        %v812 = vshll.u32 %v751, 16
        %v814 = vor.u32 %v811, %v812
        %v815 = vsel %vm782, %v807, %v814
        %v816 = vrot.slane %v811, 4
        %v818 = vshrl.u32 %v752, 16
        %v820 = vrot.slane %v818, 7
        %v821 = vshll.u32 %v752, 16
        %v823 = vor.u32 %v820, %v821
        %v824 = vrot.slane %v820, 4
        %v826 = vshrl.u32 %v753, 16
        %v828 = vrot.slane %v826, 7
        %v829 = vshll.u32 %v753, 16
        %v831 = vor.u32 %v828, %v829
        %v832 = vsel %vm782, %v824, %v831
        %v833 = vrot.slane %v828, 4
        %v835 = vshrl.u32 %v754, 16
        %v837 = vrot.slane %v835, 7
        %v838 = vshll.u32 %v754, 16
        %v840 = vor.u32 %v837, %v838
        %v841 = vrot.slane %v837, 4
        %v843 = vshrl.u32 %v755, 16
        %v845 = vrot.slane %v843, 7
        %v846 = vshll.u32 %v755, 16
        %v848 = vor.u32 %v845, %v846
        %v849 = vsel %vm782, %v841, %v848
        %v850 = vrot.slane %v845, 4
        %v852 = vshrl.u32 %v756, 16
        %v854 = vrot.slane %v852, 7
        %v855 = vshll.u32 %v756, 16
        %v857 = vor.u32 %v854, %v855
        %v858 = vrot.slane %v854, 4
        %v860 = vshrl.u32 %v757, 16
        %v862 = vrot.slane %v860, 7
        %v863 = vshll.u32 %v757, 16
        %v865 = vor.u32 %v862, %v863
        %v866 = vsel %vm782, %v858, %v865
        %v867 = vrot.slane %v862, 4
        %v869 = vshrl.u32 %v758, 16
        %v871 = vrot.slane %v869, 7
        %v872 = vshll.u32 %v758, 16
        %v874 = vor.u32 %v871, %v872
        %v875 = vrot.slane %v871, 4
        %v877 = vshrl.u32 %v759, 16
        %v879 = vrot.slane %v877, 7
        %v880 = vshll.u32 %v759, 16
        %v882 = vor.u32 %v879, %v880
        %v883 = vsel %vm782, %v875, %v882
        %v884 = vrot.slane %v879, 4
        %v886 = vshrl.u32 %v760, 16
        %v888 = vrot.slane %v886, 7
        %v889 = vshll.u32 %v760, 16
        %v891 = vor.u32 %v888, %v889
        %v892 = vrot.slane %v888, 4
        %v894 = vshrl.u32 %v761, 16
        %v896 = vrot.slane %v894, 7
        %v897 = vshll.u32 %v761, 16
        %v899 = vor.u32 %v896, %v897
        %v900 = vsel %vm782, %v892, %v899
        %v901 = vrot.slane %v896, 4
        %v903 = vshrl.u32 %v762, 16
        %v905 = vrot.slane %v903, 7
        %v906 = vshll.u32 %v762, 16
        %v908 = vor.u32 %v905, %v906
        %v909 = vrot.slane %v905, 4
        %v911 = vshrl.u32 %v763, 16
        %v913 = vrot.slane %v911, 7
        %v914 = vshll.u32 %v763, 16
        %v916 = vor.u32 %v913, %v914
        %v917 = vsel %vm782, %v909, %v916
        %v918 = vrot.slane %v913, 4
        %v920 = vshrl.u32 %v764, 16
        %v922 = vrot.slane %v920, 7
        %v923 = vshll.u32 %v764, 16
        %v925 = vor.u32 %v922, %v923
        %v926 = vrot.slane %v922, 4
        %v928 = vshrl.u32 %v765, 16
        %v930 = vrot.slane %v928, 7
        %v931 = vshll.u32 %v765, 16
        %v933 = vor.u32 %v930, %v931
        %v934 = vsel %vm782, %v926, %v933
        %v935 = vrot.slane %v930, 4
        %v937 = vshrl.u32 %v766, 16
        %v939 = vrot.slane %v937, 7
        %v940 = vshll.u32 %v766, 16
        %v942 = vor.u32 %v939, %v940
        %v943 = vrot.slane %v939, 4
        %v945 = vshrl.u32 %v767, 16
        %v947 = vrot.slane %v945, 7
        %v948 = vshll.u32 %v767, 16
        %v950 = vor.u32 %v947, %v948
        %v951 = vsel %vm782, %v943, %v950
        %v952 = vrot.slane %v947, 4
        %v954 = vshrl.u32 %v768, 16
        %v956 = vrot.slane %v954, 7
        %v957 = vshll.u32 %v768, 16
        %v959 = vor.u32 %v956, %v957
        %v960 = vrot.slane %v956, 4
        %v962 = vshrl.u32 %v769, 16
        %v964 = vrot.slane %v962, 7
        %v965 = vshll.u32 %v769, 16
        %v967 = vor.u32 %v964, %v965
        %v968 = vsel %vm782, %v960, %v967
        %v969 = vrot.slane %v964, 4
        %v971 = vshrl.u32 %v770, 16
        %v973 = vrot.slane %v971, 7
        %v974 = vshll.u32 %v770, 16
        %v976 = vor.u32 %v973, %v974
        %v977 = vrot.slane %v973, 4
        %v979 = vshrl.u32 %v771, 16
        %v981 = vrot.slane %v979, 7
        %v982 = vshll.u32 %v771, 16
        %v984 = vor.u32 %v981, %v982
        %v985 = vsel %vm782, %v977, %v984
        %v986 = vrot.slane %v981, 4
        %v988 = vshrl.u32 %v772, 16
        %v990 = vrot.slane %v988, 7
        %v991 = vshll.u32 %v772, 16
        %v993 = vor.u32 %v990, %v991
        %v994 = vrot.slane %v990, 4
        %v996 = vshrl.u32 %v773, 16
        %v998 = vrot.slane %v996, 7
        %v999 = vshll.u32 %v773, 16
        %v1001 = vor.u32 %v998, %v999
        %v1002 = vsel %vm782, %v994, %v1001
        %v1003 = vrot.slane %v998, 4
        %v1005 = vshrl.u32 %v774, 16
        %v1007 = vrot.slane %v1005, 7
        %v1008 = vshll.u32 %v774, 16
        %v1010 = vor.u32 %v1007, %v1008
        %v1011 = vrot.slane %v1007, 4
        %v1013 = vshrl.u32 %v775, 16
        %v1015 = vrot.slane %v1013, 7
        %v1016 = vshll.u32 %v775, 16
        %v1018 = vor.u32 %v1015, %v1016
        %v1019 = vsel %vm782, %v1011, %v1018
        %v1020 = vrot.slane %v1015, 4
        %v1022 = vshrl.u32 %v776, 16
        %v1024 = vrot.slane %v1022, 7
        %v1025 = vshll.u32 %v776, 16
        %v1027 = vor.u32 %v1024, %v1025
        %v1028 = vrot.slane %v1024, 4
        %v1030 = vshrl.u32 %v777, 16
        %v1032 = vrot.slane %v1030, 7
        %v1033 = vshll.u32 %v777, 16
        %v1035 = vor.u32 %v1032, %v1033
        %v1036 = vsel %vm782, %v1028, %v1035
        %v1037 = vrot.slane %v1032, 4
        %v1039 = vshrl.u32 %v778, 16
        %v1041 = vrot.slane %v1039, 7
        %v1042 = vshll.u32 %v778, 16
        %v1044 = vor.u32 %v1041, %v1042
        %v1045 = vrot.slane %v1041, 4
        %v1047 = vshrl.u32 %v779, 16
        %v1049 = vrot.slane %v1047, 7
        %v1050 = vshll.u32 %v779, 16
        %v1052 = vor.u32 %v1049, %v1050
        %v1053 = vsel %vm782, %v1045, %v1052
        %v1054 = vrot.slane %v1049, 4
        %s1103 = scalar_lea.vmem [#allocation2], 12
        %vm1104 = vcmask 1043456
        %vm1105 = vsmask.f32 7938
        %vm1106 = vmand %vm1104, %vm1105
        %v1107 = vld [vmem:[%s1103] sm:$0xf]
        %v1108 = vsel %vm1106, %v789, %v1107
        %1109 = vst [vmem:[%s1103] sm:$0xf] %v1108
        %1110 = vst [vmem:[%s1103 + $0x4] sm:$0xf] %v798
        %vm1111 = vcmask 1040384
        %vm1112 = vmand %vm1111, %vm780
        %v1113 = vld [vmem:[%s1103 + $0x8] sm:$0x1]
        %v1114 = vsel %vm1112, %v799, %v1113
        %1115 = vst [vmem:[%s1103 + $0x8] sm:$0x1] %v1114
        %v1116 = vld [vmem:[%s1103 + $0xc] sm:$0xf]
        %v1117 = vsel %vm1106, %v806, %v1116
        %1118 = vst [vmem:[%s1103 + $0xc] sm:$0xf] %v1117
        %1119 = vst [vmem:[%s1103 + $0x10] sm:$0xf] %v815
        %v1120 = vld [vmem:[%s1103 + $0x14] sm:$0x1]
        %v1121 = vsel %vm1112, %v816, %v1120
        %1122 = vst [vmem:[%s1103 + $0x14] sm:$0x1] %v1121
        %v1123 = vld [vmem:[%s1103 + $0x18] sm:$0xf]
        %v1124 = vsel %vm1106, %v823, %v1123
        %1125 = vst [vmem:[%s1103 + $0x18] sm:$0xf] %v1124
        %1126 = vst [vmem:[%s1103 + $0x1c] sm:$0xf] %v832
        %v1127 = vld [vmem:[%s1103 + $0x20] sm:$0x1]
        %v1128 = vsel %vm1112, %v833, %v1127
        %1129 = vst [vmem:[%s1103 + $0x20] sm:$0x1] %v1128
        %v1130 = vld [vmem:[%s1103 + $0x24] sm:$0xf]
        %v1131 = vsel %vm1106, %v840, %v1130
        %1132 = vst [vmem:[%s1103 + $0x24] sm:$0xf] %v1131
        %1133 = vst [vmem:[%s1103 + $0x28] sm:$0xf] %v849
        %v1134 = vld [vmem:[%s1103 + $0x2c] sm:$0x1]
        %v1135 = vsel %vm1112, %v850, %v1134
        %1136 = vst [vmem:[%s1103 + $0x2c] sm:$0x1] %v1135
        %v1137 = vld [vmem:[%s1103 + $0x30] sm:$0xf]
        %v1138 = vsel %vm1106, %v857, %v1137
        %1139 = vst [vmem:[%s1103 + $0x30] sm:$0xf] %v1138
        %1140 = vst [vmem:[%s1103 + $0x34] sm:$0xf] %v866
        %v1141 = vld [vmem:[%s1103 + $0x38] sm:$0x1]
        %v1142 = vsel %vm1112, %v867, %v1141
        %1143 = vst [vmem:[%s1103 + $0x38] sm:$0x1] %v1142
        %v1144 = vld [vmem:[%s1103 + $0x3c] sm:$0xf]
        %v1145 = vsel %vm1106, %v874, %v1144
        %1146 = vst [vmem:[%s1103 + $0x3c] sm:$0xf] %v1145
        %1147 = vst [vmem:[%s1103 + $0x40] sm:$0xf] %v883
        %v1148 = vld [vmem:[%s1103 + $0x44] sm:$0x1]
        %v1149 = vsel %vm1112, %v884, %v1148
        %1150 = vst [vmem:[%s1103 + $0x44] sm:$0x1] %v1149
        %v1151 = vld [vmem:[%s1103 + $0x48] sm:$0xf]
        %v1152 = vsel %vm1106, %v891, %v1151
        %1153 = vst [vmem:[%s1103 + $0x48] sm:$0xf] %v1152
        %1154 = vst [vmem:[%s1103 + $0x4c] sm:$0xf] %v900
        %v1155 = vld [vmem:[%s1103 + $0x50] sm:$0x1]
        %v1156 = vsel %vm1112, %v901, %v1155
        %1157 = vst [vmem:[%s1103 + $0x50] sm:$0x1] %v1156
        %v1158 = vld [vmem:[%s1103 + $0x54] sm:$0xf]
        %v1159 = vsel %vm1106, %v908, %v1158
        %1160 = vst [vmem:[%s1103 + $0x54] sm:$0xf] %v1159
        %1161 = vst [vmem:[%s1103 + $0x58] sm:$0xf] %v917
        %v1162 = vld [vmem:[%s1103 + $0x5c] sm:$0x1]
        %v1163 = vsel %vm1112, %v918, %v1162
        %1164 = vst [vmem:[%s1103 + $0x5c] sm:$0x1] %v1163
        %v1165 = vld [vmem:[%s1103 + $0x60] sm:$0xf]
        %v1166 = vsel %vm1106, %v925, %v1165
        %1167 = vst [vmem:[%s1103 + $0x60] sm:$0xf] %v1166
        %1168 = vst [vmem:[%s1103 + $0x64] sm:$0xf] %v934
        %v1169 = vld [vmem:[%s1103 + $0x68] sm:$0x1]
        %v1170 = vsel %vm1112, %v935, %v1169
        %1171 = vst [vmem:[%s1103 + $0x68] sm:$0x1] %v1170
        %v1172 = vld [vmem:[%s1103 + $0x6c] sm:$0xf]
        %v1173 = vsel %vm1106, %v942, %v1172
        %1174 = vst [vmem:[%s1103 + $0x6c] sm:$0xf] %v1173
        %1175 = vst [vmem:[%s1103 + $0x70] sm:$0xf] %v951
        %v1176 = vld [vmem:[%s1103 + $0x74] sm:$0x1]
        %v1177 = vsel %vm1112, %v952, %v1176
        %1178 = vst [vmem:[%s1103 + $0x74] sm:$0x1] %v1177
        %v1179 = vld [vmem:[%s1103 + $0x78] sm:$0xf]
        %v1180 = vsel %vm1106, %v959, %v1179
        %1181 = vst [vmem:[%s1103 + $0x78] sm:$0xf] %v1180
        %1182 = vst [vmem:[%s1103 + $0x7c] sm:$0xf] %v968
        %v1183 = vld [vmem:[%s1103 + $0x80] sm:$0x1]
        %v1184 = vsel %vm1112, %v969, %v1183
        %1185 = vst [vmem:[%s1103 + $0x80] sm:$0x1] %v1184
        %v1186 = vld [vmem:[%s1103 + $0x84] sm:$0xf]
        %v1187 = vsel %vm1106, %v976, %v1186
        %1188 = vst [vmem:[%s1103 + $0x84] sm:$0xf] %v1187
        %1189 = vst [vmem:[%s1103 + $0x88] sm:$0xf] %v985
        %v1190 = vld [vmem:[%s1103 + $0x8c] sm:$0x1]
        %v1191 = vsel %vm1112, %v986, %v1190
        %1192 = vst [vmem:[%s1103 + $0x8c] sm:$0x1] %v1191
        %v1193 = vld [vmem:[%s1103 + $0x90] sm:$0xf]
        %v1194 = vsel %vm1106, %v993, %v1193
        %1195 = vst [vmem:[%s1103 + $0x90] sm:$0xf] %v1194
        %1196 = vst [vmem:[%s1103 + $0x94] sm:$0xf] %v1002
        %v1197 = vld [vmem:[%s1103 + $0x98] sm:$0x1]
        %v1198 = vsel %vm1112, %v1003, %v1197
        %1199 = vst [vmem:[%s1103 + $0x98] sm:$0x1] %v1198
        %v1200 = vld [vmem:[%s1103 + $0x9c] sm:$0xf]
        %v1201 = vsel %vm1106, %v1010, %v1200
        %1202 = vst [vmem:[%s1103 + $0x9c] sm:$0xf] %v1201
        %1203 = vst [vmem:[%s1103 + $0xa0] sm:$0xf] %v1019
        %v1204 = vld [vmem:[%s1103 + $0xa4] sm:$0x1]
        %v1205 = vsel %vm1112, %v1020, %v1204
        %1206 = vst [vmem:[%s1103 + $0xa4] sm:$0x1] %v1205
        %v1207 = vld [vmem:[%s1103 + $0xa8] sm:$0xf]
        %v1208 = vsel %vm1106, %v1027, %v1207
        %1209 = vst [vmem:[%s1103 + $0xa8] sm:$0xf] %v1208
        %1210 = vst [vmem:[%s1103 + $0xac] sm:$0xf] %v1036
        %v1211 = vld [vmem:[%s1103 + $0xb0] sm:$0x1]
        %v1212 = vsel %vm1112, %v1037, %v1211
        %1213 = vst [vmem:[%s1103 + $0xb0] sm:$0x1] %v1212
        %v1214 = vld [vmem:[%s1103 + $0xb4] sm:$0xf]
        %v1215 = vsel %vm1106, %v1044, %v1214
        %1216 = vst [vmem:[%s1103 + $0xb4] sm:$0xf] %v1215
        %1217 = vst [vmem:[%s1103 + $0xb8] sm:$0xf] %v1053
        %v1218 = vld [vmem:[%s1103 + $0xbc] sm:$0x1]
        %v1219 = vsel %vm1112, %v1054, %v1218
        %1220 = vst [vmem:[%s1103 + $0xbc] sm:$0x1] %v1219
        %v1221 = vld [vmem:[#allocation2] sm:$0x1]
        %v1222 = vsel %vm1112, 0, %v1221
        %1223 = vst [vmem:[#allocation2] sm:$0x1] %v1222
        %v1224 = vld [vmem:[#allocation2 + $0xc] sm:$0x1]
        %v1225 = vsel %vm1112, 0, %v1224
        %1226 = vst [vmem:[#allocation2 + $0xc] sm:$0x1] %v1225
        %v1227 = vld [vmem:[#allocation2 + $0x18] sm:$0x1]
        %v1228 = vsel %vm1112, 0, %v1227
        %1229 = vst [vmem:[#allocation2 + $0x18] sm:$0x1] %v1228
        %v1230 = vld [vmem:[#allocation2 + $0x24] sm:$0x1]
        %v1231 = vsel %vm1112, 0, %v1230
        %1232 = vst [vmem:[#allocation2 + $0x24] sm:$0x1] %v1231
        %v1233 = vld [vmem:[#allocation2 + $0x30] sm:$0x1]
        %v1234 = vsel %vm1112, 0, %v1233
        %1235 = vst [vmem:[#allocation2 + $0x30] sm:$0x1] %v1234
        %v1236 = vld [vmem:[#allocation2 + $0x3c] sm:$0x1]
        %v1237 = vsel %vm1112, 0, %v1236
        %1238 = vst [vmem:[#allocation2 + $0x3c] sm:$0x1] %v1237
        %v1239 = vld [vmem:[#allocation2 + $0x48] sm:$0x1]
        %v1240 = vsel %vm1112, 0, %v1239
        %1241 = vst [vmem:[#allocation2 + $0x48] sm:$0x1] %v1240
        %v1242 = vld [vmem:[#allocation2 + $0x54] sm:$0x1]
        %v1243 = vsel %vm1112, 0, %v1242
        %1244 = vst [vmem:[#allocation2 + $0x54] sm:$0x1] %v1243
        %v1245 = vld [vmem:[#allocation2 + $0x60] sm:$0x1]
        %v1246 = vsel %vm1112, 0, %v1245
        %1247 = vst [vmem:[#allocation2 + $0x60] sm:$0x1] %v1246
        %v1248 = vld [vmem:[#allocation2 + $0x6c] sm:$0x1]
        %v1249 = vsel %vm1112, 0, %v1248
        %1250 = vst [vmem:[#allocation2 + $0x6c] sm:$0x1] %v1249
        %v1251 = vld [vmem:[#allocation2 + $0x78] sm:$0x1]
        %v1252 = vsel %vm1112, 0, %v1251
        %1253 = vst [vmem:[#allocation2 + $0x78] sm:$0x1] %v1252
        %v1254 = vld [vmem:[#allocation2 + $0x84] sm:$0x1]
        %v1255 = vsel %vm1112, 0, %v1254
        %1256 = vst [vmem:[#allocation2 + $0x84] sm:$0x1] %v1255
        %v1257 = vld [vmem:[#allocation2 + $0x90] sm:$0x1]
        %v1258 = vsel %vm1112, 0, %v1257
        %1259 = vst [vmem:[#allocation2 + $0x90] sm:$0x1] %v1258
        %v1260 = vld [vmem:[#allocation2 + $0x9c] sm:$0x1]
        %v1261 = vsel %vm1112, 0, %v1260
        %1262 = vst [vmem:[#allocation2 + $0x9c] sm:$0x1] %v1261
        %v1263 = vld [vmem:[#allocation2 + $0xa8] sm:$0x1]
        %v1264 = vsel %vm1112, 0, %v1263
        %1265 = vst [vmem:[#allocation2 + $0xa8] sm:$0x1] %v1264
        %v1266 = vld [vmem:[#allocation2 + $0xb4] sm:$0x1]
        %v1267 = vsel %vm1112, 0, %v1266
        %1268 = vst [vmem:[#allocation2 + $0xb4] sm:$0x1] %v1267
        %v1269 = vld [vmem:[#allocation2 + $0xc0] sm:$0x1]
        %v1270 = vsel %vm1112, 0, %v1269
        %1271 = vst [vmem:[#allocation2 + $0xc0] sm:$0x1] %v1270
        %v1272 = vld [vmem:[#allocation2 + $0xcc] sm:$0x1]
        %v1273 = vsel %vm1112, 0, %v1272
        %1274 = vst [vmem:[#allocation2 + $0xcc] sm:$0x1] %v1273
        %vm1275 = vmand %vm1111, %vm1105
        %v1276 = vld [vmem:[#allocation2 + $0x8] sm:$0x1]
        %v1277 = vsel %vm1275, 0, %v1276
        %1278 = vst [vmem:[#allocation2 + $0x8] sm:$0x1] %v1277
        %v1279 = vld [vmem:[#allocation2 + $0x14] sm:$0x1]
        %v1280 = vsel %vm1275, 0, %v1279
        %1281 = vst [vmem:[#allocation2 + $0x14] sm:$0x1] %v1280
        %v1282 = vld [vmem:[#allocation2 + $0x20] sm:$0x1]
        %v1283 = vsel %vm1275, 0, %v1282
        %1284 = vst [vmem:[#allocation2 + $0x20] sm:$0x1] %v1283
        %v1285 = vld [vmem:[#allocation2 + $0x2c] sm:$0x1]
        %v1286 = vsel %vm1275, 0, %v1285
        %1287 = vst [vmem:[#allocation2 + $0x2c] sm:$0x1] %v1286
        %v1288 = vld [vmem:[#allocation2 + $0x38] sm:$0x1]
        %v1289 = vsel %vm1275, 0, %v1288
        %1290 = vst [vmem:[#allocation2 + $0x38] sm:$0x1] %v1289
        %v1291 = vld [vmem:[#allocation2 + $0x44] sm:$0x1]
        %v1292 = vsel %vm1275, 0, %v1291
        %1293 = vst [vmem:[#allocation2 + $0x44] sm:$0x1] %v1292
        %v1294 = vld [vmem:[#allocation2 + $0x50] sm:$0x1]
        %v1295 = vsel %vm1275, 0, %v1294
        %1296 = vst [vmem:[#allocation2 + $0x50] sm:$0x1] %v1295
        %v1297 = vld [vmem:[#allocation2 + $0x5c] sm:$0x1]
        %v1298 = vsel %vm1275, 0, %v1297
        %1299 = vst [vmem:[#allocation2 + $0x5c] sm:$0x1] %v1298
        %v1300 = vld [vmem:[#allocation2 + $0x68] sm:$0x1]
        %v1301 = vsel %vm1275, 0, %v1300
        %1302 = vst [vmem:[#allocation2 + $0x68] sm:$0x1] %v1301
        %v1303 = vld [vmem:[#allocation2 + $0x74] sm:$0x1]
        %v1304 = vsel %vm1275, 0, %v1303
        %1305 = vst [vmem:[#allocation2 + $0x74] sm:$0x1] %v1304
        %v1306 = vld [vmem:[#allocation2 + $0x80] sm:$0x1]
        %v1307 = vsel %vm1275, 0, %v1306
        %1308 = vst [vmem:[#allocation2 + $0x80] sm:$0x1] %v1307
        %v1309 = vld [vmem:[#allocation2 + $0x8c] sm:$0x1]
        %v1310 = vsel %vm1275, 0, %v1309
        %1311 = vst [vmem:[#allocation2 + $0x8c] sm:$0x1] %v1310
        %v1312 = vld [vmem:[#allocation2 + $0x98] sm:$0x1]
        %v1313 = vsel %vm1275, 0, %v1312
        %1314 = vst [vmem:[#allocation2 + $0x98] sm:$0x1] %v1313
        %v1315 = vld [vmem:[#allocation2 + $0xa4] sm:$0x1]
        %v1316 = vsel %vm1275, 0, %v1315
        %1317 = vst [vmem:[#allocation2 + $0xa4] sm:$0x1] %v1316
        %v1318 = vld [vmem:[#allocation2 + $0xb0] sm:$0x1]
        %v1319 = vsel %vm1275, 0, %v1318
        %1320 = vst [vmem:[#allocation2 + $0xb0] sm:$0x1] %v1319
        %v1321 = vld [vmem:[#allocation2 + $0xbc] sm:$0x1]
        %v1322 = vsel %vm1275, 0, %v1321
        %1323 = vst [vmem:[#allocation2 + $0xbc] sm:$0x1] %v1322
        %v1324 = vld [vmem:[#allocation2 + $0xc8] sm:$0x1]
        %v1325 = vsel %vm1275, 0, %v1324
        %1326 = vst [vmem:[#allocation2 + $0xc8] sm:$0x1] %v1325
        %v1327 = vld [vmem:[#allocation2 + $0xd4] sm:$0x1]
        %v1328 = vsel %vm1275, 0, %v1327
        %1329 = vst [vmem:[#allocation2 + $0xd4] sm:$0x1] %v1328
        %p1330 = scmp.gt.s32.totalorder %s28, 0
        // Predicated region
        $region53: #{tpu_custom_call.1} parent=39 // pred_check
          %p1331 = pneg %p1330
        $region54: #{tpu_custom_call.1} parent=39 // pred_check_branch
          %1333 = sbr.rel (%p1331) target = $region56
        $region55: #{tpu_custom_call.1} parent=39 // pred_region
          %s1334 = ssub.s32 %s288, 1
          %s1335 = smul.u32 %s1334, 2
          %s1336 = smul.addr %s1335, 4
          %s1337 = scalar_lea.vmem %s251, %s1336 [#allocation3]
          %v1338 = vld [vmem:[%s1337] sm:$0xf]
          %v1339 = vld [vmem:[%s1337 + $0x4] sm:$0xf]
          %v1340 = vld [vmem:[#allocation6] sm:$0xf]
          %v1341 = vld [vmem:[#allocation6 + $0x4] sm:$0xf]
          %v1342 = vld [vmem:[#allocation6 + $0x8] sm:$0xf]
          %v1343 = vld [vmem:[#allocation6 + $0xc] sm:$0xf]
          %v1344 = vld [vmem:[#allocation6 + $0x10] sm:$0xf]
          %v1345 = vld [vmem:[#allocation6 + $0x14] sm:$0xf]
          %v1346 = vld [vmem:[#allocation6 + $0x18] sm:$0xf]
          %v1347 = vld [vmem:[#allocation6 + $0x1c] sm:$0xf]
          %v1348 = vld [vmem:[#allocation6 + $0x20] sm:$0xf]
          %v1349 = vld [vmem:[#allocation6 + $0x24] sm:$0xf]
          %v1350 = vld [vmem:[#allocation6 + $0x28] sm:$0xf]
          %v1351 = vld [vmem:[#allocation6 + $0x2c] sm:$0xf]
          %v1352 = vld [vmem:[#allocation6 + $0x30] sm:$0xf]
          %v1353 = vld [vmem:[#allocation6 + $0x34] sm:$0xf]
          %v1354 = vld [vmem:[#allocation6 + $0x38] sm:$0xf]
          %v1355 = vld [vmem:[#allocation6 + $0x3c] sm:$0xf]
          %v1356 = vld [vmem:[%s2] sm:$0x1]
          %v1358 = vlaneseq
          %v1359 = vshrl.u32 %v1358, 7
          %v1360 = vsub.s32 0, %v1359
          %v1361 = vrot.slane %v1356, %v1360
          %v1365 = vunpack.c.l.b16 %v1338
          %v1366 = vunpack.c.l.b16 %v1339
          %v1367 = vpack.c.b16 %v1366, %v1365
          %v1385 = vunpack.c.l.b16 %v1340
          %v1386 = vunpack.c.l.b16 %v1341
          %v1387 = vunpack.c.l.b16 %v1342
          %v1388 = vunpack.c.l.b16 %v1343
          %v1389 = vunpack.c.l.b16 %v1344
          %v1390 = vunpack.c.l.b16 %v1345
          %v1391 = vunpack.c.l.b16 %v1346
          %v1392 = vunpack.c.l.b16 %v1347
          %v1393 = vunpack.c.l.b16 %v1348
          %v1394 = vunpack.c.l.b16 %v1349
          %v1395 = vunpack.c.l.b16 %v1350
          %v1396 = vunpack.c.l.b16 %v1351
          %v1397 = vunpack.c.l.b16 %v1352
          %v1398 = vunpack.c.l.b16 %v1353
          %v1399 = vunpack.c.l.b16 %v1354
          %v1400 = vunpack.c.l.b16 %v1355
          %v1401 = vpack.c.b16 %v1386, %v1385
          %v1402 = vpack.c.b16 %v1388, %v1387
          %v1403 = vpack.c.b16 %v1390, %v1389
          %v1404 = vpack.c.b16 %v1392, %v1391
          %v1405 = vpack.c.b16 %v1394, %v1393
          %v1406 = vpack.c.b16 %v1396, %v1395
          %v1407 = vpack.c.b16 %v1398, %v1397
          %v1408 = vpack.c.b16 %v1400, %v1399
          %1417 = vmatprep.subr.bf16.mxu0 0
          %1418 = vmatpush1.bf16.msra.mxu0 %v1401
          %1419 = vmatprep.subr.bf16.mxu0 0
          %1420 = vmatpush1.bf16.msra.mxu0 %v1402
          %1421 = vmatprep.subr.bf16.mxu0 0
          %1422 = vmatpush1.bf16.msra.mxu0 %v1403
          %1423 = vmatprep.subr.bf16.mxu0 0
          %1424 = vmatpush1.bf16.msra.mxu0 %v1404
          %1425 = vmatprep.subr.bf16.mxu0 0
          %1426 = vmatpush1.bf16.msra.mxu0 %v1405
          %1427 = vmatprep.subr.bf16.mxu0 0
          %1428 = vmatpush1.bf16.msra.mxu0 %v1406
          %1429 = vmatprep.subr.bf16.mxu0 0
          %1430 = vmatpush1.bf16.msra.mxu0 %v1407
          %1431 = vmatprep.subr.bf16.mxu0 0
          %1432 = vmatpush1.bf16.msra.mxu0 %v1408
          %1433 = vmatprep.subr.bf16.mxu0 0
          %1434 = vmatpush1.bf16.msra.mxu0 0
          %1435 = vmatprep.subr.bf16.mxu0 0
          %1436 = vmatpush1.bf16.msra.mxu0 0
          %1437 = vmatprep.subr.bf16.mxu0 0
          %1438 = vmatpush1.bf16.msra.mxu0 0
          %1439 = vmatprep.subr.bf16.mxu0 0
          %1440 = vmatpush1.bf16.msra.mxu0 0
          %1441 = vmatprep.subr.bf16.mxu0 0
          %1442 = vmatpush1.bf16.msra.mxu0 0
          %1443 = vmatprep.subr.bf16.mxu0 0
          %1444 = vmatpush1.bf16.msra.mxu0 0
          %1445 = vmatprep.subr.bf16.mxu0 0
          %1446 = vmatpush1.bf16.msra.mxu0 0
          %1447 = vmatprep.subr.bf16.mxu0 0
          %1448 = vmatpush1.bf16.msra.mxu0 0
          %1449 = vmatprep.mubr.bf16.mxu0 0
          %1450 = vmatmul.mubr.bf16.gmra.mrb[0].mxu0 %v1367
          %v1451 = vpop.f32.mrb[0].mxu0
          %v1452 = vadd.f32 %v1361, %v1451
          %v1453 = vpop.f32.mrb[0].mxu0
          %v1454 = vpop.f32.mrb[0].mxu0
          %v1455 = vadd.f32 %v1361, %v1454
          %v1456 = vpop.f32.mrb[0].mxu0
          %1457 = vdwg.mxu0
          %v1458 = vmax.f32 %v1452, 0.0
          %v1459 = vmax.f32 %v1455, 0.0
          %v1460 = vpack.c.bf16 %v1459, %v1458
          %v1462 = vunpack.c.l.b16 %v1460
          %v1463 = vunpack.c.h.b16 %v1460
          %v1464 = vpack.c.b16 %v1462, %v1462
          %v1465 = vpack.c.b16 %v1463, %v1463
          %v1467 = vshrl.u32 %v1464, 16
          %v1469 = vrot.slane %v1467, 7
          %v1470 = vshll.u32 %v1464, 16
          %v1472 = vor.u32 %v1469, %v1470
          %v1473 = vrot.slane %v1469, 4
          %v1475 = vshrl.u32 %v1465, 16
          %v1477 = vrot.slane %v1475, 7
          %v1478 = vshll.u32 %v1465, 16
          %v1480 = vor.u32 %v1477, %v1478
          %v1481 = vsel %vm782, %v1473, %v1480
          %v1482 = vrot.slane %v1477, 4
          %v1486 = vld [vmem:[#allocation2] sm:$0xf]
          %v1487 = vsel %vm1106, %v1472, %v1486
          %1488 = vst [vmem:[#allocation2] sm:$0xf] %v1487
          %1489 = vst [vmem:[#allocation2 + $0x4] sm:$0xf] %v1481
          %v1490 = vld [vmem:[#allocation2 + $0x8] sm:$0x1]
          %v1491 = vsel %vm1112, %v1482, %v1490
          %1492 = vst [vmem:[#allocation2 + $0x8] sm:$0x1] %v1491
        $region56: #{tpu_custom_call.1} parent=39 // pred_fallthru
          _
        %p1493 = scmp.eq.s32.totalorder %s28, 0
        // Predicated region
        $region57: #{tpu_custom_call.1} parent=39 // pred_check
          %p1494 = pneg %p1493
        $region58: #{tpu_custom_call.1} parent=39 // pred_check_branch
          %1496 = sbr.rel (%p1494) target = $region60
        $region59: #{tpu_custom_call.1} parent=39 // pred_region
          %1497 = vst [vmem:[#allocation2] sm:$0xf] 0
          %1498 = vst [vmem:[#allocation2 + $0x4] sm:$0xf] 0
          %1499 = vst [vmem:[#allocation2 + $0x8] sm:$0x1] 0
        $region60: #{tpu_custom_call.1} parent=39 // pred_fallthru
          _
        %p1500 = scmp.lt.s32.totalorder %s28, 0
        // Predicated region
        $region61: #{tpu_custom_call.1} parent=39 // pred_check
          %p1501 = pneg %p1500
        $region62: #{tpu_custom_call.1} parent=39 // pred_check_branch
          %1503 = sbr.rel (%p1501) target = $region64
        $region63: #{tpu_custom_call.1} parent=39 // pred_region
          %s1504 = sadd.s32 %s288, 16
          %s1505 = smul.u32 %s1504, 2
          %s1506 = smul.addr %s1505, 4
          %s1507 = scalar_lea.vmem %s251, %s1506 [#allocation3]
          %v1508 = vld [vmem:[%s1507] sm:$0xf]
          %v1509 = vld [vmem:[%s1507 + $0x4] sm:$0xf]
          %v1510 = vld [vmem:[#allocation6] sm:$0xf]
          %v1511 = vld [vmem:[#allocation6 + $0x4] sm:$0xf]
          %v1512 = vld [vmem:[#allocation6 + $0x8] sm:$0xf]
          %v1513 = vld [vmem:[#allocation6 + $0xc] sm:$0xf]
          %v1514 = vld [vmem:[#allocation6 + $0x10] sm:$0xf]
          %v1515 = vld [vmem:[#allocation6 + $0x14] sm:$0xf]
          %v1516 = vld [vmem:[#allocation6 + $0x18] sm:$0xf]
          %v1517 = vld [vmem:[#allocation6 + $0x1c] sm:$0xf]
          %v1518 = vld [vmem:[#allocation6 + $0x20] sm:$0xf]
          %v1519 = vld [vmem:[#allocation6 + $0x24] sm:$0xf]
          %v1520 = vld [vmem:[#allocation6 + $0x28] sm:$0xf]
          %v1521 = vld [vmem:[#allocation6 + $0x2c] sm:$0xf]
          %v1522 = vld [vmem:[#allocation6 + $0x30] sm:$0xf]
          %v1523 = vld [vmem:[#allocation6 + $0x34] sm:$0xf]
          %v1524 = vld [vmem:[#allocation6 + $0x38] sm:$0xf]
          %v1525 = vld [vmem:[#allocation6 + $0x3c] sm:$0xf]
          %v1526 = vld [vmem:[%s2] sm:$0x1]
          %v1528 = vlaneseq
          %v1529 = vshrl.u32 %v1528, 7
          %v1530 = vsub.s32 0, %v1529
          %v1531 = vrot.slane %v1526, %v1530
          %v1535 = vunpack.c.l.b16 %v1508
          %v1536 = vunpack.c.l.b16 %v1509
          %v1537 = vpack.c.b16 %v1536, %v1535
          %v1555 = vunpack.c.l.b16 %v1510
          %v1556 = vunpack.c.l.b16 %v1511
          %v1557 = vunpack.c.l.b16 %v1512
          %v1558 = vunpack.c.l.b16 %v1513
          %v1559 = vunpack.c.l.b16 %v1514
          %v1560 = vunpack.c.l.b16 %v1515
          %v1561 = vunpack.c.l.b16 %v1516
          %v1562 = vunpack.c.l.b16 %v1517
          %v1563 = vunpack.c.l.b16 %v1518
          %v1564 = vunpack.c.l.b16 %v1519
          %v1565 = vunpack.c.l.b16 %v1520
          %v1566 = vunpack.c.l.b16 %v1521
          %v1567 = vunpack.c.l.b16 %v1522
          %v1568 = vunpack.c.l.b16 %v1523
          %v1569 = vunpack.c.l.b16 %v1524
          %v1570 = vunpack.c.l.b16 %v1525
          %v1571 = vpack.c.b16 %v1556, %v1555
          %v1572 = vpack.c.b16 %v1558, %v1557
          %v1573 = vpack.c.b16 %v1560, %v1559
          %v1574 = vpack.c.b16 %v1562, %v1561
          %v1575 = vpack.c.b16 %v1564, %v1563
          %v1576 = vpack.c.b16 %v1566, %v1565
          %v1577 = vpack.c.b16 %v1568, %v1567
          %v1578 = vpack.c.b16 %v1570, %v1569
          %1587 = vmatprep.subr.bf16.mxu0 0
          %1588 = vmatpush1.bf16.msra.mxu0 %v1571
          %1589 = vmatprep.subr.bf16.mxu0 0
          %1590 = vmatpush1.bf16.msra.mxu0 %v1572
          %1591 = vmatprep.subr.bf16.mxu0 0
          %1592 = vmatpush1.bf16.msra.mxu0 %v1573
          %1593 = vmatprep.subr.bf16.mxu0 0
          %1594 = vmatpush1.bf16.msra.mxu0 %v1574
          %1595 = vmatprep.subr.bf16.mxu0 0
          %1596 = vmatpush1.bf16.msra.mxu0 %v1575
          %1597 = vmatprep.subr.bf16.mxu0 0
          %1598 = vmatpush1.bf16.msra.mxu0 %v1576
          %1599 = vmatprep.subr.bf16.mxu0 0
          %1600 = vmatpush1.bf16.msra.mxu0 %v1577
          %1601 = vmatprep.subr.bf16.mxu0 0
          %1602 = vmatpush1.bf16.msra.mxu0 %v1578
          %1603 = vmatprep.subr.bf16.mxu0 0
          %1604 = vmatpush1.bf16.msra.mxu0 0
          %1605 = vmatprep.subr.bf16.mxu0 0
          %1606 = vmatpush1.bf16.msra.mxu0 0
          %1607 = vmatprep.subr.bf16.mxu0 0
          %1608 = vmatpush1.bf16.msra.mxu0 0
          %1609 = vmatprep.subr.bf16.mxu0 0
          %1610 = vmatpush1.bf16.msra.mxu0 0
          %1611 = vmatprep.subr.bf16.mxu0 0
          %1612 = vmatpush1.bf16.msra.mxu0 0
          %1613 = vmatprep.subr.bf16.mxu0 0
          %1614 = vmatpush1.bf16.msra.mxu0 0
          %1615 = vmatprep.subr.bf16.mxu0 0
          %1616 = vmatpush1.bf16.msra.mxu0 0
          %1617 = vmatprep.subr.bf16.mxu0 0
          %1618 = vmatpush1.bf16.msra.mxu0 0
          %1619 = vmatprep.mubr.bf16.mxu0 0
          %1620 = vmatmul.mubr.bf16.gmra.mrb[0].mxu0 %v1537
          %v1621 = vpop.f32.mrb[0].mxu0
          %v1622 = vadd.f32 %v1531, %v1621
          %v1623 = vpop.f32.mrb[0].mxu0
          %v1624 = vpop.f32.mrb[0].mxu0
          %v1625 = vadd.f32 %v1531, %v1624
          %v1626 = vpop.f32.mrb[0].mxu0
          %1627 = vdwg.mxu0
          %v1628 = vmax.f32 %v1622, 0.0
          %v1629 = vmax.f32 %v1625, 0.0
          %v1630 = vpack.c.bf16 %v1629, %v1628
          %v1632 = vunpack.c.l.b16 %v1630
          %v1633 = vunpack.c.h.b16 %v1630
          %v1634 = vpack.c.b16 %v1632, %v1632
          %v1635 = vpack.c.b16 %v1633, %v1633
          %v1637 = vshrl.u32 %v1634, 16
          %v1639 = vrot.slane %v1637, 7
          %v1640 = vshll.u32 %v1634, 16
          %v1642 = vor.u32 %v1639, %v1640
          %v1643 = vrot.slane %v1639, 4
          %v1645 = vshrl.u32 %v1635, 16
          %v1647 = vrot.slane %v1645, 7
          %v1648 = vshll.u32 %v1635, 16
          %v1650 = vor.u32 %v1647, %v1648
          %v1651 = vsel %vm782, %v1643, %v1650
          %v1652 = vrot.slane %v1647, 4
          %s1656 = scalar_lea.vmem [#allocation2], 204
          %v1657 = vld [vmem:[%s1656] sm:$0xf]
          %v1658 = vsel %vm1106, %v1642, %v1657
          %1659 = vst [vmem:[%s1656] sm:$0xf] %v1658
          %1660 = vst [vmem:[%s1656 + $0x4] sm:$0xf] %v1651
          %v1661 = vld [vmem:[%s1656 + $0x8] sm:$0x1]
          %v1662 = vsel %vm1112, %v1652, %v1661
          %1663 = vst [vmem:[%s1656 + $0x8] sm:$0x1] %v1662
        $region64: #{tpu_custom_call.1} parent=39 // pred_fallthru
          _
        // Predicated region
        $region65: #{tpu_custom_call.1} parent=39 // pred_check
          %p1664 = pneg %p1493
        $region66: #{tpu_custom_call.1} parent=39 // pred_check_branch
          %1666 = sbr.rel (%p1664) target = $region68
        $region67: #{tpu_custom_call.1} parent=39 // pred_region
          %s1667 = scalar_lea.vmem [#allocation2], 204
          %1668 = vst [vmem:[%s1667] sm:$0xf] 0
          %1669 = vst [vmem:[%s1667 + $0x4] sm:$0xf] 0
          %1670 = vst [vmem:[%s1667 + $0x8] sm:$0x1] 0
        $region68: #{tpu_custom_call.1} parent=39 // pred_fallthru
          _
        %v1671 = vld [vmem:[%s4] sm:$0x1]
        %v1673 = vlaneseq
        %v1674 = vshrl.u32 %v1673, 7
        %v1675 = vsub.s32 0, %v1674
        %v1676 = vrot.slane %v1671, %v1675
        %v1678 = vadd.f32 %v1676, 0.0
        %v1679 = vld [vmem:[#allocation2] sm:$0xf]
        %v1680 = vld [vmem:[#allocation2 + $0x4] sm:$0xf]
        %v1681 = vld [vmem:[#allocation2 + $0xc] sm:$0xf]
        %v1682 = vld [vmem:[#allocation2 + $0x10] sm:$0xf]
        %v1683 = vld [vmem:[#allocation2 + $0x18] sm:$0xf]
        %v1684 = vld [vmem:[#allocation2 + $0x1c] sm:$0xf]
        %v1685 = vld [vmem:[#allocation2 + $0x24] sm:$0xf]
        %v1686 = vld [vmem:[#allocation2 + $0x28] sm:$0xf]
        %v1687 = vld [vmem:[#allocation2 + $0x30] sm:$0xf]
        %v1688 = vld [vmem:[#allocation2 + $0x34] sm:$0xf]
        %v1689 = vld [vmem:[#allocation2 + $0x3c] sm:$0xf]
        %v1690 = vld [vmem:[#allocation2 + $0x40] sm:$0xf]
        %v1691 = vld [vmem:[#allocation2 + $0x48] sm:$0xf]
        %v1692 = vld [vmem:[#allocation2 + $0x4c] sm:$0xf]
        %v1693 = vld [vmem:[#allocation2 + $0x54] sm:$0xf]
        %v1694 = vld [vmem:[#allocation2 + $0x58] sm:$0xf]
        %v1695 = vld [vmem:[#allocation2 + $0x60] sm:$0xf]
        %v1696 = vld [vmem:[#allocation2 + $0x64] sm:$0xf]
        %v1697 = vld [vmem:[#allocation2 + $0x6c] sm:$0xf]
        %v1698 = vld [vmem:[#allocation2 + $0x70] sm:$0xf]
        %v1699 = vld [vmem:[#allocation2 + $0x78] sm:$0xf]
        %v1700 = vld [vmem:[#allocation2 + $0x7c] sm:$0xf]
        %v1701 = vld [vmem:[#allocation2 + $0x84] sm:$0xf]
        %v1702 = vld [vmem:[#allocation2 + $0x88] sm:$0xf]
        %v1703 = vld [vmem:[#allocation2 + $0x90] sm:$0xf]
        %v1704 = vld [vmem:[#allocation2 + $0x94] sm:$0xf]
        %v1705 = vld [vmem:[#allocation2 + $0x9c] sm:$0xf]
        %v1706 = vld [vmem:[#allocation2 + $0xa0] sm:$0xf]
        %v1707 = vld [vmem:[#allocation2 + $0xa8] sm:$0xf]
        %v1708 = vld [vmem:[#allocation2 + $0xac] sm:$0xf]
        %v1709 = vld [vmem:[#allocation2 + $0xb4] sm:$0xf]
        %v1710 = vld [vmem:[#allocation2 + $0xb8] sm:$0xf]
        %v1711 = vld [vmem:[#allocation2 + $0x8] sm:$0x1]
        %v1712 = vld [vmem:[#allocation2 + $0x14] sm:$0x1]
        %v1713 = vld [vmem:[#allocation2 + $0x20] sm:$0x1]
        %v1714 = vld [vmem:[#allocation2 + $0x2c] sm:$0x1]
        %v1715 = vld [vmem:[#allocation2 + $0x38] sm:$0x1]
        %v1716 = vld [vmem:[#allocation2 + $0x44] sm:$0x1]
        %v1717 = vld [vmem:[#allocation2 + $0x50] sm:$0x1]
        %v1718 = vld [vmem:[#allocation2 + $0x5c] sm:$0x1]
        %v1719 = vld [vmem:[#allocation2 + $0x68] sm:$0x1]
        %v1720 = vld [vmem:[#allocation2 + $0x74] sm:$0x1]
        %v1721 = vld [vmem:[#allocation2 + $0x80] sm:$0x1]
        %v1722 = vld [vmem:[#allocation2 + $0x8c] sm:$0x1]
        %v1723 = vld [vmem:[#allocation2 + $0x98] sm:$0x1]
        %v1724 = vld [vmem:[#allocation2 + $0xa4] sm:$0x1]
        %v1725 = vld [vmem:[#allocation2 + $0xb0] sm:$0x1]
        %v1726 = vld [vmem:[#allocation2 + $0xbc] sm:$0x1]
        %v1727 = vld [vmem:[#allocation2] sm:$0xe]
        %v1728 = vld [vmem:[#allocation2 + $0xc] sm:$0xe]
        %v1729 = vld [vmem:[#allocation2 + $0x18] sm:$0xe]
        %v1730 = vld [vmem:[#allocation2 + $0x24] sm:$0xe]
        %v1731 = vld [vmem:[#allocation2 + $0x30] sm:$0xe]
        %v1732 = vld [vmem:[#allocation2 + $0x3c] sm:$0xe]
        %v1733 = vld [vmem:[#allocation2 + $0x48] sm:$0xe]
        %v1734 = vld [vmem:[#allocation2 + $0x54] sm:$0xe]
        %v1735 = vld [vmem:[#allocation2 + $0x60] sm:$0xe]
        %v1736 = vld [vmem:[#allocation2 + $0x6c] sm:$0xe]
        %v1737 = vld [vmem:[#allocation2 + $0x78] sm:$0xe]
        %v1738 = vld [vmem:[#allocation2 + $0x84] sm:$0xe]
        %v1739 = vld [vmem:[#allocation2 + $0x90] sm:$0xe]
        %v1740 = vld [vmem:[#allocation2 + $0x9c] sm:$0xe]
        %v1741 = vld [vmem:[#allocation2 + $0xa8] sm:$0xe]
        %v1742 = vld [vmem:[#allocation2 + $0xb4] sm:$0xe]
        %v1775 = vunpack.c.l.b16 %v1679
        %v1776 = vunpack.c.l.b16 %v1680
        %v1777 = vunpack.c.l.b16 %v1681
        %v1778 = vunpack.c.l.b16 %v1682
        %v1779 = vunpack.c.l.b16 %v1683
        %v1780 = vunpack.c.l.b16 %v1684
        %v1781 = vunpack.c.l.b16 %v1685
        %v1782 = vunpack.c.l.b16 %v1686
        %v1783 = vunpack.c.l.b16 %v1687
        %v1784 = vunpack.c.l.b16 %v1688
        %v1785 = vunpack.c.l.b16 %v1689
        %v1786 = vunpack.c.l.b16 %v1690
        %v1787 = vunpack.c.l.b16 %v1691
        %v1788 = vunpack.c.l.b16 %v1692
        %v1789 = vunpack.c.l.b16 %v1693
        %v1790 = vunpack.c.l.b16 %v1694
        %v1791 = vunpack.c.l.b16 %v1695
        %v1792 = vunpack.c.l.b16 %v1696
        %v1793 = vunpack.c.l.b16 %v1697
        %v1794 = vunpack.c.l.b16 %v1698
        %v1795 = vunpack.c.l.b16 %v1699
        %v1796 = vunpack.c.l.b16 %v1700
        %v1797 = vunpack.c.l.b16 %v1701
        %v1798 = vunpack.c.l.b16 %v1702
        %v1799 = vunpack.c.l.b16 %v1703
        %v1800 = vunpack.c.l.b16 %v1704
        %v1801 = vunpack.c.l.b16 %v1705
        %v1802 = vunpack.c.l.b16 %v1706
        %v1803 = vunpack.c.l.b16 %v1707
        %v1804 = vunpack.c.l.b16 %v1708
        %v1805 = vunpack.c.l.b16 %v1709
        %v1806 = vunpack.c.l.b16 %v1710
        %v1807 = vpack.c.b16 %v1776, %v1775
        %v1808 = vpack.c.b16 %v1778, %v1777
        %v1809 = vpack.c.b16 %v1780, %v1779
        %v1810 = vpack.c.b16 %v1782, %v1781
        %v1811 = vpack.c.b16 %v1784, %v1783
        %v1812 = vpack.c.b16 %v1786, %v1785
        %v1813 = vpack.c.b16 %v1788, %v1787
        %v1814 = vpack.c.b16 %v1790, %v1789
        %v1815 = vpack.c.b16 %v1792, %v1791
        %v1816 = vpack.c.b16 %v1794, %v1793
        %v1817 = vpack.c.b16 %v1796, %v1795
        %v1818 = vpack.c.b16 %v1798, %v1797
        %v1819 = vpack.c.b16 %v1800, %v1799
        %v1820 = vpack.c.b16 %v1802, %v1801
        %v1821 = vpack.c.b16 %v1804, %v1803
        %v1822 = vpack.c.b16 %v1806, %v1805
        %v1855 = vunpack.c.l.b16 %v1711
        %v1856 = vunpack.c.l.b16 %v1712
        %v1857 = vunpack.c.l.b16 %v1713
        %v1858 = vunpack.c.l.b16 %v1714
        %v1859 = vunpack.c.l.b16 %v1715
        %v1860 = vunpack.c.l.b16 %v1716
        %v1861 = vunpack.c.l.b16 %v1717
        %v1862 = vunpack.c.l.b16 %v1718
        %v1863 = vunpack.c.l.b16 %v1719
        %v1864 = vunpack.c.l.b16 %v1720
        %v1865 = vunpack.c.l.b16 %v1721
        %v1866 = vunpack.c.l.b16 %v1722
        %v1867 = vunpack.c.l.b16 %v1723
        %v1868 = vunpack.c.l.b16 %v1724
        %v1869 = vunpack.c.l.b16 %v1725
        %v1870 = vunpack.c.l.b16 %v1726
        %v1871 = vpack.c.b16 %v1855, %v1855
        %v1872 = vpack.c.b16 %v1856, %v1856
        %v1873 = vpack.c.b16 %v1857, %v1857
        %v1874 = vpack.c.b16 %v1858, %v1858
        %v1875 = vpack.c.b16 %v1859, %v1859
        %v1876 = vpack.c.b16 %v1860, %v1860
        %v1877 = vpack.c.b16 %v1861, %v1861
        %v1878 = vpack.c.b16 %v1862, %v1862
        %v1879 = vpack.c.b16 %v1863, %v1863
        %v1880 = vpack.c.b16 %v1864, %v1864
        %v1881 = vpack.c.b16 %v1865, %v1865
        %v1882 = vpack.c.b16 %v1866, %v1866
        %v1883 = vpack.c.b16 %v1867, %v1867
        %v1884 = vpack.c.b16 %v1868, %v1868
        %v1885 = vpack.c.b16 %v1869, %v1869
        %v1886 = vpack.c.b16 %v1870, %v1870
        %vm1887 = vsmask.f32 7424
        %v1889 = vshrl.u32 %v1807, 16
        %v1891 = vshll.u32 %v1807, 16
        %v1893 = vrot.slane %v1891, 1
        %v1894 = vor.u32 %v1889, %v1893
        %v1896 = vshll.u32 %v1871, 16
        %v1898 = vrot.slane %v1896, 1
        %v1899 = vsel %vm1887, %v1894, %v1898
        %v1901 = vshrl.u32 %v1808, 16
        %v1903 = vshll.u32 %v1808, 16
        %v1905 = vrot.slane %v1903, 1
        %v1906 = vor.u32 %v1901, %v1905
        %v1908 = vshll.u32 %v1872, 16
        %v1910 = vrot.slane %v1908, 1
        %v1911 = vsel %vm1887, %v1906, %v1910
        %v1913 = vshrl.u32 %v1809, 16
        %v1915 = vshll.u32 %v1809, 16
        %v1917 = vrot.slane %v1915, 1
        %v1918 = vor.u32 %v1913, %v1917
        %v1920 = vshll.u32 %v1873, 16
        %v1922 = vrot.slane %v1920, 1
        %v1923 = vsel %vm1887, %v1918, %v1922
        %v1925 = vshrl.u32 %v1810, 16
        %v1927 = vshll.u32 %v1810, 16
        %v1929 = vrot.slane %v1927, 1
        %v1930 = vor.u32 %v1925, %v1929
        %v1932 = vshll.u32 %v1874, 16
        %v1934 = vrot.slane %v1932, 1
        %v1935 = vsel %vm1887, %v1930, %v1934
        %v1937 = vshrl.u32 %v1811, 16
        %v1939 = vshll.u32 %v1811, 16
        %v1941 = vrot.slane %v1939, 1
        %v1942 = vor.u32 %v1937, %v1941
        %v1944 = vshll.u32 %v1875, 16
        %v1946 = vrot.slane %v1944, 1
        %v1947 = vsel %vm1887, %v1942, %v1946
        %v1949 = vshrl.u32 %v1812, 16
        %v1951 = vshll.u32 %v1812, 16
        %v1953 = vrot.slane %v1951, 1
        %v1954 = vor.u32 %v1949, %v1953
        %v1956 = vshll.u32 %v1876, 16
        %v1958 = vrot.slane %v1956, 1
        %v1959 = vsel %vm1887, %v1954, %v1958
        %v1961 = vshrl.u32 %v1813, 16
        %v1963 = vshll.u32 %v1813, 16
        %v1965 = vrot.slane %v1963, 1
        %v1966 = vor.u32 %v1961, %v1965
        %v1968 = vshll.u32 %v1877, 16
        %v1970 = vrot.slane %v1968, 1
        %v1971 = vsel %vm1887, %v1966, %v1970
        %v1973 = vshrl.u32 %v1814, 16
        %v1975 = vshll.u32 %v1814, 16
        %v1977 = vrot.slane %v1975, 1
        %v1978 = vor.u32 %v1973, %v1977
        %v1980 = vshll.u32 %v1878, 16
        %v1982 = vrot.slane %v1980, 1
        %v1983 = vsel %vm1887, %v1978, %v1982
        %v1985 = vshrl.u32 %v1815, 16
        %v1987 = vshll.u32 %v1815, 16
        %v1989 = vrot.slane %v1987, 1
        %v1990 = vor.u32 %v1985, %v1989
        %v1992 = vshll.u32 %v1879, 16
        %v1994 = vrot.slane %v1992, 1
        %v1995 = vsel %vm1887, %v1990, %v1994
        %v1997 = vshrl.u32 %v1816, 16
        %v1999 = vshll.u32 %v1816, 16
        %v2001 = vrot.slane %v1999, 1
        %v2002 = vor.u32 %v1997, %v2001
        %v2004 = vshll.u32 %v1880, 16
        %v2006 = vrot.slane %v2004, 1
        %v2007 = vsel %vm1887, %v2002, %v2006
        %v2009 = vshrl.u32 %v1817, 16
        %v2011 = vshll.u32 %v1817, 16
        %v2013 = vrot.slane %v2011, 1
        %v2014 = vor.u32 %v2009, %v2013
        %v2016 = vshll.u32 %v1881, 16
        %v2018 = vrot.slane %v2016, 1
        %v2019 = vsel %vm1887, %v2014, %v2018
        %v2021 = vshrl.u32 %v1818, 16
        %v2023 = vshll.u32 %v1818, 16
        %v2025 = vrot.slane %v2023, 1
        %v2026 = vor.u32 %v2021, %v2025
        %v2028 = vshll.u32 %v1882, 16
        %v2030 = vrot.slane %v2028, 1
        %v2031 = vsel %vm1887, %v2026, %v2030
        %v2033 = vshrl.u32 %v1819, 16
        %v2035 = vshll.u32 %v1819, 16
        %v2037 = vrot.slane %v2035, 1
        %v2038 = vor.u32 %v2033, %v2037
        %v2040 = vshll.u32 %v1883, 16
        %v2042 = vrot.slane %v2040, 1
        %v2043 = vsel %vm1887, %v2038, %v2042
        %v2045 = vshrl.u32 %v1820, 16
        %v2047 = vshll.u32 %v1820, 16
        %v2049 = vrot.slane %v2047, 1
        %v2050 = vor.u32 %v2045, %v2049
        %v2052 = vshll.u32 %v1884, 16
        %v2054 = vrot.slane %v2052, 1
        %v2055 = vsel %vm1887, %v2050, %v2054
        %v2057 = vshrl.u32 %v1821, 16
        %v2059 = vshll.u32 %v1821, 16
        %v2061 = vrot.slane %v2059, 1
        %v2062 = vor.u32 %v2057, %v2061
        %v2064 = vshll.u32 %v1885, 16
        %v2066 = vrot.slane %v2064, 1
        %v2067 = vsel %vm1887, %v2062, %v2066
        %v2069 = vshrl.u32 %v1822, 16
        %v2071 = vshll.u32 %v1822, 16
        %v2073 = vrot.slane %v2071, 1
        %v2074 = vor.u32 %v2069, %v2073
        %v2076 = vshll.u32 %v1886, 16
        %v2078 = vrot.slane %v2076, 1
        %v2079 = vsel %vm1887, %v2074, %v2078
        %v2112 = vunpack.c.l.b16 %v1727
        %v2113 = vunpack.c.l.b16 %v1728
        %v2114 = vunpack.c.l.b16 %v1729
        %v2115 = vunpack.c.l.b16 %v1730
        %v2116 = vunpack.c.l.b16 %v1731
        %v2117 = vunpack.c.l.b16 %v1732
        %v2118 = vunpack.c.l.b16 %v1733
        %v2119 = vunpack.c.l.b16 %v1734
        %v2120 = vunpack.c.l.b16 %v1735
        %v2121 = vunpack.c.l.b16 %v1736
        %v2122 = vunpack.c.l.b16 %v1737
        %v2123 = vunpack.c.l.b16 %v1738
        %v2124 = vunpack.c.l.b16 %v1739
        %v2125 = vunpack.c.l.b16 %v1740
        %v2126 = vunpack.c.l.b16 %v1741
        %v2127 = vunpack.c.l.b16 %v1742
        %v2128 = vpack.c.b16 %v1776, %v2112
        %v2129 = vpack.c.b16 %v1778, %v2113
        %v2130 = vpack.c.b16 %v1780, %v2114
        %v2131 = vpack.c.b16 %v1782, %v2115
        %v2132 = vpack.c.b16 %v1784, %v2116
        %v2133 = vpack.c.b16 %v1786, %v2117
        %v2134 = vpack.c.b16 %v1788, %v2118
        %v2135 = vpack.c.b16 %v1790, %v2119
        %v2136 = vpack.c.b16 %v1792, %v2120
        %v2137 = vpack.c.b16 %v1794, %v2121
        %v2138 = vpack.c.b16 %v1796, %v2122
        %v2139 = vpack.c.b16 %v1798, %v2123
        %v2140 = vpack.c.b16 %v1800, %v2124
        %v2141 = vpack.c.b16 %v1802, %v2125
        %v2142 = vpack.c.b16 %v1804, %v2126
        %v2143 = vpack.c.b16 %v1806, %v2127
        %vm2144 = vcmask 1046528
        %v2145 = vrot.slane %v2128, 1
        %v2146 = vrot.slane %v1871, 1
        %v2147 = vsel %vm2144, %v2145, %v2146
        %v2148 = vrot.slane %v2129, 1
        %v2149 = vrot.slane %v1872, 1
        %v2150 = vsel %vm2144, %v2148, %v2149
        %v2151 = vrot.slane %v2130, 1
        %v2152 = vrot.slane %v1873, 1
        %v2153 = vsel %vm2144, %v2151, %v2152
        %v2154 = vrot.slane %v2131, 1
        %v2155 = vrot.slane %v1874, 1
        %v2156 = vsel %vm2144, %v2154, %v2155
        %v2157 = vrot.slane %v2132, 1
        %v2158 = vrot.slane %v1875, 1
        %v2159 = vsel %vm2144, %v2157, %v2158
        %v2160 = vrot.slane %v2133, 1
        %v2161 = vrot.slane %v1876, 1
        %v2162 = vsel %vm2144, %v2160, %v2161
        %v2163 = vrot.slane %v2134, 1
        %v2164 = vrot.slane %v1877, 1
        %v2165 = vsel %vm2144, %v2163, %v2164
        %v2166 = vrot.slane %v2135, 1
        %v2167 = vrot.slane %v1878, 1
        %v2168 = vsel %vm2144, %v2166, %v2167
        %v2169 = vrot.slane %v2136, 1
        %v2170 = vrot.slane %v1879, 1
        %v2171 = vsel %vm2144, %v2169, %v2170
        %v2172 = vrot.slane %v2137, 1
        %v2173 = vrot.slane %v1880, 1
        %v2174 = vsel %vm2144, %v2172, %v2173
        %v2175 = vrot.slane %v2138, 1
        %v2176 = vrot.slane %v1881, 1
        %v2177 = vsel %vm2144, %v2175, %v2176
        %v2178 = vrot.slane %v2139, 1
        %v2179 = vrot.slane %v1882, 1
        %v2180 = vsel %vm2144, %v2178, %v2179
        %v2181 = vrot.slane %v2140, 1
        %v2182 = vrot.slane %v1883, 1
        %v2183 = vsel %vm2144, %v2181, %v2182
        %v2184 = vrot.slane %v2141, 1
        %v2185 = vrot.slane %v1884, 1
        %v2186 = vsel %vm2144, %v2184, %v2185
        %v2187 = vrot.slane %v2142, 1
        %v2188 = vrot.slane %v1885, 1
        %v2189 = vsel %vm2144, %v2187, %v2188
        %v2190 = vrot.slane %v2143, 1
        %v2191 = vrot.slane %v1886, 1
        %v2192 = vsel %vm2144, %v2190, %v2191
        %v2209 = vld [vmem:[#allocation8] sm:$0xf]
        %v2210 = vld [vmem:[#allocation8 + $0x4] sm:$0xf]
        %v2211 = vld [vmem:[#allocation8 + $0x8] sm:$0xf]
        %v2212 = vld [vmem:[#allocation8 + $0xc] sm:$0xf]
        %v2213 = vld [vmem:[#allocation8 + $0x10] sm:$0xf]
        %v2214 = vld [vmem:[#allocation8 + $0x14] sm:$0xf]
        %v2215 = vld [vmem:[#allocation8 + $0x18] sm:$0xf]
        %v2216 = vld [vmem:[#allocation8 + $0x1c] sm:$0xf]
        %v2217 = vld [vmem:[#allocation8 + $0x20] sm:$0xf]
        %v2218 = vld [vmem:[#allocation8 + $0x24] sm:$0xf]
        %v2219 = vld [vmem:[#allocation8 + $0x28] sm:$0xf]
        %v2220 = vld [vmem:[#allocation8 + $0x2c] sm:$0xf]
        %v2221 = vld [vmem:[#allocation8 + $0x30] sm:$0xf]
        %v2222 = vld [vmem:[#allocation8 + $0x34] sm:$0xf]
        %v2223 = vld [vmem:[#allocation8 + $0x38] sm:$0xf]
        %v2224 = vld [vmem:[#allocation8 + $0x3c] sm:$0xf]
        %v2225 = vld [vmem:[#allocation8 + $0x40] sm:$0xf]
        %v2226 = vld [vmem:[#allocation8 + $0x44] sm:$0xf]
        %v2227 = vld [vmem:[#allocation8 + $0x48] sm:$0xf]
        %v2228 = vld [vmem:[#allocation8 + $0x4c] sm:$0xf]
        %v2229 = vld [vmem:[#allocation8 + $0x50] sm:$0xf]
        %v2230 = vld [vmem:[#allocation8 + $0x54] sm:$0xf]
        %v2231 = vld [vmem:[#allocation8 + $0x58] sm:$0xf]
        %v2232 = vld [vmem:[#allocation8 + $0x5c] sm:$0xf]
        %v2233 = vld [vmem:[#allocation8 + $0x60] sm:$0xf]
        %v2234 = vld [vmem:[#allocation8 + $0x64] sm:$0xf]
        %v2235 = vld [vmem:[#allocation8 + $0x68] sm:$0xf]
        %v2236 = vld [vmem:[#allocation8 + $0x6c] sm:$0xf]
        %v2237 = vld [vmem:[#allocation8 + $0x70] sm:$0xf]
        %v2238 = vld [vmem:[#allocation8 + $0x74] sm:$0xf]
        %v2239 = vld [vmem:[#allocation8 + $0x78] sm:$0xf]
        %v2240 = vld [vmem:[#allocation8 + $0x7c] sm:$0xf]
        %v2241 = vld [vmem:[#allocation8 + $0x80] sm:$0xf]
        %v2242 = vld [vmem:[#allocation8 + $0x84] sm:$0xf]
        %v2243 = vld [vmem:[#allocation8 + $0x88] sm:$0xf]
        %v2244 = vld [vmem:[#allocation8 + $0x8c] sm:$0xf]
        %v2245 = vld [vmem:[#allocation8 + $0x90] sm:$0xf]
        %v2246 = vld [vmem:[#allocation8 + $0x94] sm:$0xf]
        %v2247 = vld [vmem:[#allocation8 + $0x98] sm:$0xf]
        %v2248 = vld [vmem:[#allocation8 + $0x9c] sm:$0xf]
        %v2249 = vld [vmem:[#allocation8 + $0xa0] sm:$0xf]
        %v2250 = vld [vmem:[#allocation8 + $0xa4] sm:$0xf]
        %v2251 = vld [vmem:[#allocation8 + $0xa8] sm:$0xf]
        %v2252 = vld [vmem:[#allocation8 + $0xac] sm:$0xf]
        %v2253 = vld [vmem:[#allocation8 + $0xb0] sm:$0xf]
        %v2254 = vld [vmem:[#allocation8 + $0xb4] sm:$0xf]
        %v2255 = vld [vmem:[#allocation8 + $0xb8] sm:$0xf]
        %v2256 = vld [vmem:[#allocation8 + $0xbc] sm:$0xf]
        %v2305 = vunpack.c.l.b16 %v2209
        %v2306 = vunpack.c.l.b16 %v2210
        %v2307 = vunpack.c.l.b16 %v2211
        %v2308 = vunpack.c.l.b16 %v2212
        %v2309 = vunpack.c.l.b16 %v2213
        %v2310 = vunpack.c.l.b16 %v2214
        %v2311 = vunpack.c.l.b16 %v2215
        %v2312 = vunpack.c.l.b16 %v2216
        %v2313 = vunpack.c.l.b16 %v2217
        %v2314 = vunpack.c.l.b16 %v2218
        %v2315 = vunpack.c.l.b16 %v2219
        %v2316 = vunpack.c.l.b16 %v2220
        %v2317 = vunpack.c.l.b16 %v2221
        %v2318 = vunpack.c.l.b16 %v2222
        %v2319 = vunpack.c.l.b16 %v2223
        %v2320 = vunpack.c.l.b16 %v2224
        %v2321 = vunpack.c.l.b16 %v2225
        %v2322 = vunpack.c.l.b16 %v2226
        %v2323 = vunpack.c.l.b16 %v2227
        %v2324 = vunpack.c.l.b16 %v2228
        %v2325 = vunpack.c.l.b16 %v2229
        %v2326 = vunpack.c.l.b16 %v2230
        %v2327 = vunpack.c.l.b16 %v2231
        %v2328 = vunpack.c.l.b16 %v2232
        %v2329 = vunpack.c.l.b16 %v2233
        %v2330 = vunpack.c.l.b16 %v2234
        %v2331 = vunpack.c.l.b16 %v2235
        %v2332 = vunpack.c.l.b16 %v2236
        %v2333 = vunpack.c.l.b16 %v2237
        %v2334 = vunpack.c.l.b16 %v2238
        %v2335 = vunpack.c.l.b16 %v2239
        %v2336 = vunpack.c.l.b16 %v2240
        %v2337 = vunpack.c.l.b16 %v2241
        %v2338 = vunpack.c.l.b16 %v2242
        %v2339 = vunpack.c.l.b16 %v2243
        %v2340 = vunpack.c.l.b16 %v2244
        %v2341 = vunpack.c.l.b16 %v2245
        %v2342 = vunpack.c.l.b16 %v2246
        %v2343 = vunpack.c.l.b16 %v2247
        %v2344 = vunpack.c.l.b16 %v2248
        %v2345 = vunpack.c.l.b16 %v2249
        %v2346 = vunpack.c.l.b16 %v2250
        %v2347 = vunpack.c.l.b16 %v2251
        %v2348 = vunpack.c.l.b16 %v2252
        %v2349 = vunpack.c.l.b16 %v2253
        %v2350 = vunpack.c.l.b16 %v2254
        %v2351 = vunpack.c.l.b16 %v2255
        %v2352 = vunpack.c.l.b16 %v2256
        %v2353 = vpack.c.b16 %v2306, %v2305
        %v2354 = vpack.c.b16 %v2308, %v2307
        %v2355 = vpack.c.b16 %v2310, %v2309
        %v2356 = vpack.c.b16 %v2312, %v2311
        %v2357 = vpack.c.b16 %v2314, %v2313
        %v2358 = vpack.c.b16 %v2316, %v2315
        %v2359 = vpack.c.b16 %v2318, %v2317
        %v2360 = vpack.c.b16 %v2320, %v2319
        %v2361 = vpack.c.b16 %v2322, %v2321
        %v2362 = vpack.c.b16 %v2324, %v2323
        %v2363 = vpack.c.b16 %v2326, %v2325
        %v2364 = vpack.c.b16 %v2328, %v2327
        %v2365 = vpack.c.b16 %v2330, %v2329
        %v2366 = vpack.c.b16 %v2332, %v2331
        %v2367 = vpack.c.b16 %v2334, %v2333
        %v2368 = vpack.c.b16 %v2336, %v2335
        %v2369 = vpack.c.b16 %v2338, %v2337
        %v2370 = vpack.c.b16 %v2340, %v2339
        %v2371 = vpack.c.b16 %v2342, %v2341
        %v2372 = vpack.c.b16 %v2344, %v2343
        %v2373 = vpack.c.b16 %v2346, %v2345
        %v2374 = vpack.c.b16 %v2348, %v2347
        %v2375 = vpack.c.b16 %v2350, %v2349
        %v2376 = vpack.c.b16 %v2352, %v2351
        %2401 = vmatprep.subr.bf16.mxu0 0
        %2402 = vmatpush1.bf16.msra.mxu0 %v2353
        %2403 = vmatprep.subr.bf16.mxu0 0
        %2404 = vmatpush1.bf16.msra.mxu0 %v2354
        %2405 = vmatprep.subr.bf16.mxu0 0
        %2406 = vmatpush1.bf16.msra.mxu0 %v2355
        %2407 = vmatprep.subr.bf16.mxu0 0
        %2408 = vmatpush1.bf16.msra.mxu0 %v2356
        %2409 = vmatprep.subr.bf16.mxu0 0
        %2410 = vmatpush1.bf16.msra.mxu0 %v2357
        %2411 = vmatprep.subr.bf16.mxu0 0
        %2412 = vmatpush1.bf16.msra.mxu0 %v2358
        %2413 = vmatprep.subr.bf16.mxu0 0
        %2414 = vmatpush1.bf16.msra.mxu0 %v2359
        %2415 = vmatprep.subr.bf16.mxu0 0
        %2416 = vmatpush1.bf16.msra.mxu0 %v2360
        %2417 = vmatprep.subr.bf16.mxu0 0
        %2418 = vmatpush1.bf16.msra.mxu0 %v2361
        %2419 = vmatprep.subr.bf16.mxu0 0
        %2420 = vmatpush1.bf16.msra.mxu0 %v2362
        %2421 = vmatprep.subr.bf16.mxu0 0
        %2422 = vmatpush1.bf16.msra.mxu0 %v2363
        %2423 = vmatprep.subr.bf16.mxu0 0
        %2424 = vmatpush1.bf16.msra.mxu0 %v2364
        %2425 = vmatprep.subr.bf16.mxu0 0
        %2426 = vmatpush1.bf16.msra.mxu0 %v2365
        %2427 = vmatprep.subr.bf16.mxu0 0
        %2428 = vmatpush1.bf16.msra.mxu0 %v2366
        %2429 = vmatprep.subr.bf16.mxu0 0
        %2430 = vmatpush1.bf16.msra.mxu0 %v2367
        %2431 = vmatprep.subr.bf16.mxu0 0
        %2432 = vmatpush1.bf16.msra.mxu0 %v2368
        %2433 = vmatprep.mubr.bf16.mxu0 %v1899
        %2434 = vmatmul.mubr.bf16.gmra.mrb[0].mxu0 %v1807
        %v2435 = vpop.f32.mrb[0].mxu0
        %v2436 = vadd.f32 0.0, %v2435
        %v2437 = vpop.f32.mrb[0].mxu0
        %v2438 = vpop.f32.mrb[0].mxu0
        %v2439 = vadd.f32 0.0, %v2438
        %v2440 = vpop.f32.mrb[0].mxu0
        %2441 = vmatprep.mubr.bf16.mxu0 %v1911
        %2442 = vmatmul.mubr.bf16.gmra.mrb[0].mxu0 %v1808
        %v2443 = vpop.f32.mrb[0].mxu0
        %v2444 = vadd.f32 0.0, %v2443
        %v2445 = vpop.f32.mrb[0].mxu0
        %v2446 = vpop.f32.mrb[0].mxu0
        %v2447 = vadd.f32 0.0, %v2446
        %v2448 = vpop.f32.mrb[0].mxu0
        %2449 = vmatprep.mubr.bf16.mxu0 %v1923
        %2450 = vmatmul.mubr.bf16.gmra.mrb[0].mxu0 %v1809
        %v2451 = vpop.f32.mrb[0].mxu0
        %v2452 = vadd.f32 0.0, %v2451
        %v2453 = vpop.f32.mrb[0].mxu0
        %v2454 = vpop.f32.mrb[0].mxu0
        %v2455 = vadd.f32 0.0, %v2454
        %v2456 = vpop.f32.mrb[0].mxu0
        %2457 = vmatprep.mubr.bf16.mxu0 %v1935
        %2458 = vmatmul.mubr.bf16.gmra.mrb[0].mxu0 %v1810
        %v2459 = vpop.f32.mrb[0].mxu0
        %v2460 = vadd.f32 0.0, %v2459
        %v2461 = vpop.f32.mrb[0].mxu0
        %v2462 = vpop.f32.mrb[0].mxu0
        %v2463 = vadd.f32 0.0, %v2462
        %v2464 = vpop.f32.mrb[0].mxu0
        %2465 = vmatprep.mubr.bf16.mxu0 %v1947
        %2466 = vmatmul.mubr.bf16.gmra.mrb[0].mxu0 %v1811
        %v2467 = vpop.f32.mrb[0].mxu0
        %v2468 = vadd.f32 0.0, %v2467
        %v2469 = vpop.f32.mrb[0].mxu0
        %v2470 = vpop.f32.mrb[0].mxu0
        %v2471 = vadd.f32 0.0, %v2470
        %v2472 = vpop.f32.mrb[0].mxu0
        %2473 = vmatprep.mubr.bf16.mxu0 %v1959
        %2474 = vmatmul.mubr.bf16.gmra.mrb[0].mxu0 %v1812
        %v2475 = vpop.f32.mrb[0].mxu0
        %v2476 = vadd.f32 0.0, %v2475
        %v2477 = vpop.f32.mrb[0].mxu0
        %v2478 = vpop.f32.mrb[0].mxu0
        %v2479 = vadd.f32 0.0, %v2478
        %v2480 = vpop.f32.mrb[0].mxu0
        %2481 = vmatprep.mubr.bf16.mxu0 %v1971
        %2482 = vmatmul.mubr.bf16.gmra.mrb[0].mxu0 %v1813
        %v2483 = vpop.f32.mrb[0].mxu0
        %v2484 = vadd.f32 0.0, %v2483
        %v2485 = vpop.f32.mrb[0].mxu0
        %v2486 = vpop.f32.mrb[0].mxu0
        %v2487 = vadd.f32 0.0, %v2486
        %v2488 = vpop.f32.mrb[0].mxu0
        %2489 = vmatprep.mubr.bf16.mxu0 %v1983
        %2490 = vmatmul.mubr.bf16.gmra.mrb[0].mxu0 %v1814
        %v2491 = vpop.f32.mrb[0].mxu0
        %v2492 = vadd.f32 0.0, %v2491
        %v2493 = vpop.f32.mrb[0].mxu0
        %v2494 = vpop.f32.mrb[0].mxu0
        %v2495 = vadd.f32 0.0, %v2494
        %v2496 = vpop.f32.mrb[0].mxu0
        %2497 = vmatprep.mubr.bf16.mxu0 %v1995
        %2498 = vmatmul.mubr.bf16.gmra.mrb[0].mxu0 %v1815
        %v2499 = vpop.f32.mrb[0].mxu0
        %v2500 = vadd.f32 0.0, %v2499
        %v2501 = vpop.f32.mrb[0].mxu0
        %v2502 = vpop.f32.mrb[0].mxu0
        %v2503 = vadd.f32 0.0, %v2502
        %v2504 = vpop.f32.mrb[0].mxu0
        %2505 = vmatprep.mubr.bf16.mxu0 %v2007
        %2506 = vmatmul.mubr.bf16.gmra.mrb[0].mxu0 %v1816
        %v2507 = vpop.f32.mrb[0].mxu0
        %v2508 = vadd.f32 0.0, %v2507
        %v2509 = vpop.f32.mrb[0].mxu0
        %v2510 = vpop.f32.mrb[0].mxu0
        %v2511 = vadd.f32 0.0, %v2510
        %v2512 = vpop.f32.mrb[0].mxu0
        %2513 = vmatprep.mubr.bf16.mxu0 %v2019
        %2514 = vmatmul.mubr.bf16.gmra.mrb[0].mxu0 %v1817
        %v2515 = vpop.f32.mrb[0].mxu0
        %v2516 = vadd.f32 0.0, %v2515
        %v2517 = vpop.f32.mrb[0].mxu0
        %v2518 = vpop.f32.mrb[0].mxu0
        %v2519 = vadd.f32 0.0, %v2518
        %v2520 = vpop.f32.mrb[0].mxu0
        %2521 = vmatprep.mubr.bf16.mxu0 %v2031
        %2522 = vmatmul.mubr.bf16.gmra.mrb[0].mxu0 %v1818
        %v2523 = vpop.f32.mrb[0].mxu0
        %v2524 = vadd.f32 0.0, %v2523
        %v2525 = vpop.f32.mrb[0].mxu0
        %v2526 = vpop.f32.mrb[0].mxu0
        %v2527 = vadd.f32 0.0, %v2526
        %v2528 = vpop.f32.mrb[0].mxu0
        %2529 = vmatprep.mubr.bf16.mxu0 %v2043
        %2530 = vmatmul.mubr.bf16.gmra.mrb[0].mxu0 %v1819
        %v2531 = vpop.f32.mrb[0].mxu0
        %v2532 = vadd.f32 0.0, %v2531
        %v2533 = vpop.f32.mrb[0].mxu0
        %v2534 = vpop.f32.mrb[0].mxu0
        %v2535 = vadd.f32 0.0, %v2534
        %v2536 = vpop.f32.mrb[0].mxu0
        %2537 = vmatprep.mubr.bf16.mxu0 %v2055
        %2538 = vmatmul.mubr.bf16.gmra.mrb[0].mxu0 %v1820
        %v2539 = vpop.f32.mrb[0].mxu0
        %v2540 = vadd.f32 0.0, %v2539
        %v2541 = vpop.f32.mrb[0].mxu0
        %v2542 = vpop.f32.mrb[0].mxu0
        %v2543 = vadd.f32 0.0, %v2542
        %v2544 = vpop.f32.mrb[0].mxu0
        %2545 = vmatprep.mubr.bf16.mxu0 %v2067
        %2546 = vmatmul.mubr.bf16.gmra.mrb[0].mxu0 %v1821
        %v2547 = vpop.f32.mrb[0].mxu0
        %v2548 = vadd.f32 0.0, %v2547
        %v2549 = vpop.f32.mrb[0].mxu0
        %v2550 = vpop.f32.mrb[0].mxu0
        %v2551 = vadd.f32 0.0, %v2550
        %v2552 = vpop.f32.mrb[0].mxu0
        %2553 = vmatprep.mubr.bf16.mxu0 %v2079
        %2554 = vmatmul.mubr.bf16.gmra.mrb[0].mxu0 %v1822
        %v2555 = vpop.f32.mrb[0].mxu0
        %v2556 = vadd.f32 0.0, %v2555
        %v2557 = vpop.f32.mrb[0].mxu0
        %v2558 = vpop.f32.mrb[0].mxu0
        %v2559 = vadd.f32 0.0, %v2558
        %v2560 = vpop.f32.mrb[0].mxu0
        %2561 = vdwg.mxu0
        %2562 = vmatprep.subr.bf16.mxu0 0
        %2563 = vmatpush1.bf16.msra.mxu0 %v2369
        %2564 = vmatprep.subr.bf16.mxu0 0
        %2565 = vmatpush1.bf16.msra.mxu0 %v2370
        %2566 = vmatprep.subr.bf16.mxu0 0
        %2567 = vmatpush1.bf16.msra.mxu0 %v2371
        %2568 = vmatprep.subr.bf16.mxu0 0
        %2569 = vmatpush1.bf16.msra.mxu0 %v2372
        %2570 = vmatprep.subr.bf16.mxu0 0
        %2571 = vmatpush1.bf16.msra.mxu0 %v2373
        %2572 = vmatprep.subr.bf16.mxu0 0
        %2573 = vmatpush1.bf16.msra.mxu0 %v2374
        %2574 = vmatprep.subr.bf16.mxu0 0
        %2575 = vmatpush1.bf16.msra.mxu0 %v2375
        %2576 = vmatprep.subr.bf16.mxu0 0
        %2577 = vmatpush1.bf16.msra.mxu0 %v2376
        %2578 = vmatprep.subr.bf16.mxu0 0
        %2579 = vmatpush1.bf16.msra.mxu0 0
        %2580 = vmatprep.subr.bf16.mxu0 0
        %2581 = vmatpush1.bf16.msra.mxu0 0
        %2582 = vmatprep.subr.bf16.mxu0 0
        %2583 = vmatpush1.bf16.msra.mxu0 0
        %2584 = vmatprep.subr.bf16.mxu0 0
        %2585 = vmatpush1.bf16.msra.mxu0 0
        %2586 = vmatprep.subr.bf16.mxu0 0
        %2587 = vmatpush1.bf16.msra.mxu0 0
        %2588 = vmatprep.subr.bf16.mxu0 0
        %2589 = vmatpush1.bf16.msra.mxu0 0
        %2590 = vmatprep.subr.bf16.mxu0 0
        %2591 = vmatpush1.bf16.msra.mxu0 0
        %2592 = vmatprep.subr.bf16.mxu0 0
        %2593 = vmatpush1.bf16.msra.mxu0 0
        %2594 = vmatprep.mubr.bf16.mxu0 0
        %2595 = vmatmul.mubr.bf16.gmra.mrb[0].mxu0 %v2147
        %v2596 = vpop.f32.mrb[0].mxu0
        %v2597 = vadd.f32 %v2436, %v2596
        %v2598 = vpop.f32.mrb[0].mxu0
        %v2599 = vpop.f32.mrb[0].mxu0
        %v2600 = vadd.f32 %v2439, %v2599
        %v2601 = vpop.f32.mrb[0].mxu0
        %2602 = vmatprep.mubr.bf16.mxu0 0
        %2603 = vmatmul.mubr.bf16.gmra.mrb[0].mxu0 %v2150
        %v2604 = vpop.f32.mrb[0].mxu0
        %v2605 = vadd.f32 %v2444, %v2604
        %v2606 = vpop.f32.mrb[0].mxu0
        %v2607 = vpop.f32.mrb[0].mxu0
        %v2608 = vadd.f32 %v2447, %v2607
        %v2609 = vpop.f32.mrb[0].mxu0
        %2610 = vmatprep.mubr.bf16.mxu0 0
        %2611 = vmatmul.mubr.bf16.gmra.mrb[0].mxu0 %v2153
        %v2612 = vpop.f32.mrb[0].mxu0
        %v2613 = vadd.f32 %v2452, %v2612
        %v2614 = vpop.f32.mrb[0].mxu0
        %v2615 = vpop.f32.mrb[0].mxu0
        %v2616 = vadd.f32 %v2455, %v2615
        %v2617 = vpop.f32.mrb[0].mxu0
        %2618 = vmatprep.mubr.bf16.mxu0 0
        %2619 = vmatmul.mubr.bf16.gmra.mrb[0].mxu0 %v2156
        %v2620 = vpop.f32.mrb[0].mxu0
        %v2621 = vadd.f32 %v2460, %v2620
        %v2622 = vpop.f32.mrb[0].mxu0
        %v2623 = vpop.f32.mrb[0].mxu0
        %v2624 = vadd.f32 %v2463, %v2623
        %v2625 = vpop.f32.mrb[0].mxu0
        %2626 = vmatprep.mubr.bf16.mxu0 0
        %2627 = vmatmul.mubr.bf16.gmra.mrb[0].mxu0 %v2159
        %v2628 = vpop.f32.mrb[0].mxu0
        %v2629 = vadd.f32 %v2468, %v2628
        %v2630 = vpop.f32.mrb[0].mxu0
        %v2631 = vpop.f32.mrb[0].mxu0
        %v2632 = vadd.f32 %v2471, %v2631
        %v2633 = vpop.f32.mrb[0].mxu0
        %2634 = vmatprep.mubr.bf16.mxu0 0
        %2635 = vmatmul.mubr.bf16.gmra.mrb[0].mxu0 %v2162
        %v2636 = vpop.f32.mrb[0].mxu0
        %v2637 = vadd.f32 %v2476, %v2636
        %v2638 = vpop.f32.mrb[0].mxu0
        %v2639 = vpop.f32.mrb[0].mxu0
        %v2640 = vadd.f32 %v2479, %v2639
        %v2641 = vpop.f32.mrb[0].mxu0
        %2642 = vmatprep.mubr.bf16.mxu0 0
        %2643 = vmatmul.mubr.bf16.gmra.mrb[0].mxu0 %v2165
        %v2644 = vpop.f32.mrb[0].mxu0
        %v2645 = vadd.f32 %v2484, %v2644
        %v2646 = vpop.f32.mrb[0].mxu0
        %v2647 = vpop.f32.mrb[0].mxu0
        %v2648 = vadd.f32 %v2487, %v2647
        %v2649 = vpop.f32.mrb[0].mxu0
        %2650 = vmatprep.mubr.bf16.mxu0 0
        %2651 = vmatmul.mubr.bf16.gmra.mrb[0].mxu0 %v2168
        %v2652 = vpop.f32.mrb[0].mxu0
        %v2653 = vadd.f32 %v2492, %v2652
        %v2654 = vpop.f32.mrb[0].mxu0
        %v2655 = vpop.f32.mrb[0].mxu0
        %v2656 = vadd.f32 %v2495, %v2655
        %v2657 = vpop.f32.mrb[0].mxu0
        %2658 = vmatprep.mubr.bf16.mxu0 0
        %2659 = vmatmul.mubr.bf16.gmra.mrb[0].mxu0 %v2171
        %v2660 = vpop.f32.mrb[0].mxu0
        %v2661 = vadd.f32 %v2500, %v2660
        %v2662 = vpop.f32.mrb[0].mxu0
        %v2663 = vpop.f32.mrb[0].mxu0
        %v2664 = vadd.f32 %v2503, %v2663
        %v2665 = vpop.f32.mrb[0].mxu0
        %2666 = vmatprep.mubr.bf16.mxu0 0
        %2667 = vmatmul.mubr.bf16.gmra.mrb[0].mxu0 %v2174
        %v2668 = vpop.f32.mrb[0].mxu0
        %v2669 = vadd.f32 %v2508, %v2668
        %v2670 = vpop.f32.mrb[0].mxu0
        %v2671 = vpop.f32.mrb[0].mxu0
        %v2672 = vadd.f32 %v2511, %v2671
        %v2673 = vpop.f32.mrb[0].mxu0
        %2674 = vmatprep.mubr.bf16.mxu0 0
        %2675 = vmatmul.mubr.bf16.gmra.mrb[0].mxu0 %v2177
        %v2676 = vpop.f32.mrb[0].mxu0
        %v2677 = vadd.f32 %v2516, %v2676
        %v2678 = vpop.f32.mrb[0].mxu0
        %v2679 = vpop.f32.mrb[0].mxu0
        %v2680 = vadd.f32 %v2519, %v2679
        %v2681 = vpop.f32.mrb[0].mxu0
        %2682 = vmatprep.mubr.bf16.mxu0 0
        %2683 = vmatmul.mubr.bf16.gmra.mrb[0].mxu0 %v2180
        %v2684 = vpop.f32.mrb[0].mxu0
        %v2685 = vadd.f32 %v2524, %v2684
        %v2686 = vpop.f32.mrb[0].mxu0
        %v2687 = vpop.f32.mrb[0].mxu0
        %v2688 = vadd.f32 %v2527, %v2687
        %v2689 = vpop.f32.mrb[0].mxu0
        %2690 = vmatprep.mubr.bf16.mxu0 0
        %2691 = vmatmul.mubr.bf16.gmra.mrb[0].mxu0 %v2183
        %v2692 = vpop.f32.mrb[0].mxu0
        %v2693 = vadd.f32 %v2532, %v2692
        %v2694 = vpop.f32.mrb[0].mxu0
        %v2695 = vpop.f32.mrb[0].mxu0
        %v2696 = vadd.f32 %v2535, %v2695
        %v2697 = vpop.f32.mrb[0].mxu0
        %2698 = vmatprep.mubr.bf16.mxu0 0
        %2699 = vmatmul.mubr.bf16.gmra.mrb[0].mxu0 %v2186
        %v2700 = vpop.f32.mrb[0].mxu0
        %v2701 = vadd.f32 %v2540, %v2700
        %v2702 = vpop.f32.mrb[0].mxu0
        %v2703 = vpop.f32.mrb[0].mxu0
        %v2704 = vadd.f32 %v2543, %v2703
        %v2705 = vpop.f32.mrb[0].mxu0
        %2706 = vmatprep.mubr.bf16.mxu0 0
        %2707 = vmatmul.mubr.bf16.gmra.mrb[0].mxu0 %v2189
        %v2708 = vpop.f32.mrb[0].mxu0
        %v2709 = vadd.f32 %v2548, %v2708
        %v2710 = vpop.f32.mrb[0].mxu0
        %v2711 = vpop.f32.mrb[0].mxu0
        %v2712 = vadd.f32 %v2551, %v2711
        %v2713 = vpop.f32.mrb[0].mxu0
        %2714 = vmatprep.mubr.bf16.mxu0 0
        %2715 = vmatmul.mubr.bf16.gmra.mrb[0].mxu0 %v2192
        %v2716 = vpop.f32.mrb[0].mxu0
        %v2717 = vadd.f32 %v2556, %v2716
        %v2718 = vpop.f32.mrb[0].mxu0
        %v2719 = vpop.f32.mrb[0].mxu0
        %v2720 = vadd.f32 %v2559, %v2719
        %v2721 = vpop.f32.mrb[0].mxu0
        %2722 = vdwg.mxu0
        %v2723 = vadd.f32 %v1678, %v2597
        %v2724 = vadd.f32 %v1678, %v2600
        %v2725 = vadd.f32 %v1678, %v2605
        %v2726 = vadd.f32 %v1678, %v2608
        %v2727 = vadd.f32 %v1678, %v2613
        %v2728 = vadd.f32 %v1678, %v2616
        %v2729 = vadd.f32 %v1678, %v2621
        %v2730 = vadd.f32 %v1678, %v2624
        %v2731 = vadd.f32 %v1678, %v2629
        %v2732 = vadd.f32 %v1678, %v2632
        %v2733 = vadd.f32 %v1678, %v2637
        %v2734 = vadd.f32 %v1678, %v2640
        %v2735 = vadd.f32 %v1678, %v2645
        %v2736 = vadd.f32 %v1678, %v2648
        %v2737 = vadd.f32 %v1678, %v2653
        %v2738 = vadd.f32 %v1678, %v2656
        %v2739 = vadd.f32 %v1678, %v2661
        %v2740 = vadd.f32 %v1678, %v2664
        %v2741 = vadd.f32 %v1678, %v2669
        %v2742 = vadd.f32 %v1678, %v2672
        %v2743 = vadd.f32 %v1678, %v2677
        %v2744 = vadd.f32 %v1678, %v2680
        %v2745 = vadd.f32 %v1678, %v2685
        %v2746 = vadd.f32 %v1678, %v2688
        %v2747 = vadd.f32 %v1678, %v2693
        %v2748 = vadd.f32 %v1678, %v2696
        %v2749 = vadd.f32 %v1678, %v2701
        %v2750 = vadd.f32 %v1678, %v2704
        %v2751 = vadd.f32 %v1678, %v2709
        %v2752 = vadd.f32 %v1678, %v2712
        %v2753 = vadd.f32 %v1678, %v2717
        %v2754 = vadd.f32 %v1678, %v2720
        %v2755 = vld [vmem:[%s1103] sm:$0xf]
        %v2756 = vld [vmem:[%s1103 + $0x4] sm:$0xf]
        %v2757 = vld [vmem:[%s1103 + $0xc] sm:$0xf]
        %v2758 = vld [vmem:[%s1103 + $0x10] sm:$0xf]
        %v2759 = vld [vmem:[%s1103 + $0x18] sm:$0xf]
        %v2760 = vld [vmem:[%s1103 + $0x1c] sm:$0xf]
        %v2761 = vld [vmem:[%s1103 + $0x24] sm:$0xf]
        %v2762 = vld [vmem:[%s1103 + $0x28] sm:$0xf]
        %v2763 = vld [vmem:[%s1103 + $0x30] sm:$0xf]
        %v2764 = vld [vmem:[%s1103 + $0x34] sm:$0xf]
        %v2765 = vld [vmem:[%s1103 + $0x3c] sm:$0xf]
        %v2766 = vld [vmem:[%s1103 + $0x40] sm:$0xf]
        %v2767 = vld [vmem:[%s1103 + $0x48] sm:$0xf]
        %v2768 = vld [vmem:[%s1103 + $0x4c] sm:$0xf]
        %v2769 = vld [vmem:[%s1103 + $0x54] sm:$0xf]
        %v2770 = vld [vmem:[%s1103 + $0x58] sm:$0xf]
        %v2771 = vld [vmem:[%s1103 + $0x60] sm:$0xf]
        %v2772 = vld [vmem:[%s1103 + $0x64] sm:$0xf]
        %v2773 = vld [vmem:[%s1103 + $0x6c] sm:$0xf]
        %v2774 = vld [vmem:[%s1103 + $0x70] sm:$0xf]
        %v2775 = vld [vmem:[%s1103 + $0x78] sm:$0xf]
        %v2776 = vld [vmem:[%s1103 + $0x7c] sm:$0xf]
        %v2777 = vld [vmem:[%s1103 + $0x84] sm:$0xf]
        %v2778 = vld [vmem:[%s1103 + $0x88] sm:$0xf]
        %v2779 = vld [vmem:[%s1103 + $0x90] sm:$0xf]
        %v2780 = vld [vmem:[%s1103 + $0x94] sm:$0xf]
        %v2781 = vld [vmem:[%s1103 + $0x9c] sm:$0xf]
        %v2782 = vld [vmem:[%s1103 + $0xa0] sm:$0xf]
        %v2783 = vld [vmem:[%s1103 + $0xa8] sm:$0xf]
        %v2784 = vld [vmem:[%s1103 + $0xac] sm:$0xf]
        %v2785 = vld [vmem:[%s1103 + $0xb4] sm:$0xf]
        %v2786 = vld [vmem:[%s1103 + $0xb8] sm:$0xf]
        %v2787 = vld [vmem:[%s1103 + $0x8] sm:$0x1]
        %v2788 = vld [vmem:[%s1103 + $0x14] sm:$0x1]
        %v2789 = vld [vmem:[%s1103 + $0x20] sm:$0x1]
        %v2790 = vld [vmem:[%s1103 + $0x2c] sm:$0x1]
        %v2791 = vld [vmem:[%s1103 + $0x38] sm:$0x1]
        %v2792 = vld [vmem:[%s1103 + $0x44] sm:$0x1]
        %v2793 = vld [vmem:[%s1103 + $0x50] sm:$0x1]
        %v2794 = vld [vmem:[%s1103 + $0x5c] sm:$0x1]
        %v2795 = vld [vmem:[%s1103 + $0x68] sm:$0x1]
        %v2796 = vld [vmem:[%s1103 + $0x74] sm:$0x1]
        %v2797 = vld [vmem:[%s1103 + $0x80] sm:$0x1]
        %v2798 = vld [vmem:[%s1103 + $0x8c] sm:$0x1]
        %v2799 = vld [vmem:[%s1103 + $0x98] sm:$0x1]
        %v2800 = vld [vmem:[%s1103 + $0xa4] sm:$0x1]
        %v2801 = vld [vmem:[%s1103 + $0xb0] sm:$0x1]
        %v2802 = vld [vmem:[%s1103 + $0xbc] sm:$0x1]
        %v2803 = vld [vmem:[%s1103] sm:$0xe]
        %v2804 = vld [vmem:[%s1103 + $0xc] sm:$0xe]
        %v2805 = vld [vmem:[%s1103 + $0x18] sm:$0xe]
        %v2806 = vld [vmem:[%s1103 + $0x24] sm:$0xe]
        %v2807 = vld [vmem:[%s1103 + $0x30] sm:$0xe]
        %v2808 = vld [vmem:[%s1103 + $0x3c] sm:$0xe]
        %v2809 = vld [vmem:[%s1103 + $0x48] sm:$0xe]
        %v2810 = vld [vmem:[%s1103 + $0x54] sm:$0xe]
        %v2811 = vld [vmem:[%s1103 + $0x60] sm:$0xe]
        %v2812 = vld [vmem:[%s1103 + $0x6c] sm:$0xe]
        %v2813 = vld [vmem:[%s1103 + $0x78] sm:$0xe]
        %v2814 = vld [vmem:[%s1103 + $0x84] sm:$0xe]
        %v2815 = vld [vmem:[%s1103 + $0x90] sm:$0xe]
        %v2816 = vld [vmem:[%s1103 + $0x9c] sm:$0xe]
        %v2817 = vld [vmem:[%s1103 + $0xa8] sm:$0xe]
        %v2818 = vld [vmem:[%s1103 + $0xb4] sm:$0xe]
        %v2851 = vunpack.c.l.b16 %v2755
        %v2852 = vunpack.c.l.b16 %v2756
        %v2853 = vunpack.c.l.b16 %v2757
        %v2854 = vunpack.c.l.b16 %v2758
        %v2855 = vunpack.c.l.b16 %v2759
        %v2856 = vunpack.c.l.b16 %v2760
        %v2857 = vunpack.c.l.b16 %v2761
        %v2858 = vunpack.c.l.b16 %v2762
        %v2859 = vunpack.c.l.b16 %v2763
        %v2860 = vunpack.c.l.b16 %v2764
        %v2861 = vunpack.c.l.b16 %v2765
        %v2862 = vunpack.c.l.b16 %v2766
        %v2863 = vunpack.c.l.b16 %v2767
        %v2864 = vunpack.c.l.b16 %v2768
        %v2865 = vunpack.c.l.b16 %v2769
        %v2866 = vunpack.c.l.b16 %v2770
        %v2867 = vunpack.c.l.b16 %v2771
        %v2868 = vunpack.c.l.b16 %v2772
        %v2869 = vunpack.c.l.b16 %v2773
        %v2870 = vunpack.c.l.b16 %v2774
        %v2871 = vunpack.c.l.b16 %v2775
        %v2872 = vunpack.c.l.b16 %v2776
        %v2873 = vunpack.c.l.b16 %v2777
        %v2874 = vunpack.c.l.b16 %v2778
        %v2875 = vunpack.c.l.b16 %v2779
        %v2876 = vunpack.c.l.b16 %v2780
        %v2877 = vunpack.c.l.b16 %v2781
        %v2878 = vunpack.c.l.b16 %v2782
        %v2879 = vunpack.c.l.b16 %v2783
        %v2880 = vunpack.c.l.b16 %v2784
        %v2881 = vunpack.c.l.b16 %v2785
        %v2882 = vunpack.c.l.b16 %v2786
        %v2883 = vpack.c.b16 %v2852, %v2851
        %v2884 = vpack.c.b16 %v2854, %v2853
        %v2885 = vpack.c.b16 %v2856, %v2855
        %v2886 = vpack.c.b16 %v2858, %v2857
        %v2887 = vpack.c.b16 %v2860, %v2859
        %v2888 = vpack.c.b16 %v2862, %v2861
        %v2889 = vpack.c.b16 %v2864, %v2863
        %v2890 = vpack.c.b16 %v2866, %v2865
        %v2891 = vpack.c.b16 %v2868, %v2867
        %v2892 = vpack.c.b16 %v2870, %v2869
        %v2893 = vpack.c.b16 %v2872, %v2871
        %v2894 = vpack.c.b16 %v2874, %v2873
        %v2895 = vpack.c.b16 %v2876, %v2875
        %v2896 = vpack.c.b16 %v2878, %v2877
        %v2897 = vpack.c.b16 %v2880, %v2879
        %v2898 = vpack.c.b16 %v2882, %v2881
        %v2931 = vunpack.c.l.b16 %v2787
        %v2932 = vunpack.c.l.b16 %v2788
        %v2933 = vunpack.c.l.b16 %v2789
        %v2934 = vunpack.c.l.b16 %v2790
        %v2935 = vunpack.c.l.b16 %v2791
        %v2936 = vunpack.c.l.b16 %v2792
        %v2937 = vunpack.c.l.b16 %v2793
        %v2938 = vunpack.c.l.b16 %v2794
        %v2939 = vunpack.c.l.b16 %v2795
        %v2940 = vunpack.c.l.b16 %v2796
        %v2941 = vunpack.c.l.b16 %v2797
        %v2942 = vunpack.c.l.b16 %v2798
        %v2943 = vunpack.c.l.b16 %v2799
        %v2944 = vunpack.c.l.b16 %v2800
        %v2945 = vunpack.c.l.b16 %v2801
        %v2946 = vunpack.c.l.b16 %v2802
        %v2947 = vpack.c.b16 %v2931, %v2931
        %v2948 = vpack.c.b16 %v2932, %v2932
        %v2949 = vpack.c.b16 %v2933, %v2933
        %v2950 = vpack.c.b16 %v2934, %v2934
        %v2951 = vpack.c.b16 %v2935, %v2935
        %v2952 = vpack.c.b16 %v2936, %v2936
        %v2953 = vpack.c.b16 %v2937, %v2937
        %v2954 = vpack.c.b16 %v2938, %v2938
        %v2955 = vpack.c.b16 %v2939, %v2939
        %v2956 = vpack.c.b16 %v2940, %v2940
        %v2957 = vpack.c.b16 %v2941, %v2941
        %v2958 = vpack.c.b16 %v2942, %v2942
        %v2959 = vpack.c.b16 %v2943, %v2943
        %v2960 = vpack.c.b16 %v2944, %v2944
        %v2961 = vpack.c.b16 %v2945, %v2945
        %v2962 = vpack.c.b16 %v2946, %v2946
        %v2964 = vshrl.u32 %v2883, 16
        %v2966 = vshll.u32 %v2883, 16
        %v2968 = vrot.slane %v2966, 1
        %v2969 = vor.u32 %v2964, %v2968
        %v2971 = vshll.u32 %v2947, 16
        %v2973 = vrot.slane %v2971, 1
        %v2974 = vsel %vm1887, %v2969, %v2973
        %v2976 = vshrl.u32 %v2884, 16
        %v2978 = vshll.u32 %v2884, 16
        %v2980 = vrot.slane %v2978, 1
        %v2981 = vor.u32 %v2976, %v2980
        %v2983 = vshll.u32 %v2948, 16
        %v2985 = vrot.slane %v2983, 1
        %v2986 = vsel %vm1887, %v2981, %v2985
        %v2988 = vshrl.u32 %v2885, 16
        %v2990 = vshll.u32 %v2885, 16
        %v2992 = vrot.slane %v2990, 1
        %v2993 = vor.u32 %v2988, %v2992
        %v2995 = vshll.u32 %v2949, 16
        %v2997 = vrot.slane %v2995, 1
        %v2998 = vsel %vm1887, %v2993, %v2997
        %v3000 = vshrl.u32 %v2886, 16
        %v3002 = vshll.u32 %v2886, 16
        %v3004 = vrot.slane %v3002, 1
        %v3005 = vor.u32 %v3000, %v3004
        %v3007 = vshll.u32 %v2950, 16
        %v3009 = vrot.slane %v3007, 1
        %v3010 = vsel %vm1887, %v3005, %v3009
        %v3012 = vshrl.u32 %v2887, 16
        %v3014 = vshll.u32 %v2887, 16
        %v3016 = vrot.slane %v3014, 1
        %v3017 = vor.u32 %v3012, %v3016
        %v3019 = vshll.u32 %v2951, 16
        %v3021 = vrot.slane %v3019, 1
        %v3022 = vsel %vm1887, %v3017, %v3021
        %v3024 = vshrl.u32 %v2888, 16
        %v3026 = vshll.u32 %v2888, 16
        %v3028 = vrot.slane %v3026, 1
        %v3029 = vor.u32 %v3024, %v3028
        %v3031 = vshll.u32 %v2952, 16
        %v3033 = vrot.slane %v3031, 1
        %v3034 = vsel %vm1887, %v3029, %v3033
        %v3036 = vshrl.u32 %v2889, 16
        %v3038 = vshll.u32 %v2889, 16
        %v3040 = vrot.slane %v3038, 1
        %v3041 = vor.u32 %v3036, %v3040
        %v3043 = vshll.u32 %v2953, 16
        %v3045 = vrot.slane %v3043, 1
        %v3046 = vsel %vm1887, %v3041, %v3045
        %v3048 = vshrl.u32 %v2890, 16
        %v3050 = vshll.u32 %v2890, 16
        %v3052 = vrot.slane %v3050, 1
        %v3053 = vor.u32 %v3048, %v3052
        %v3055 = vshll.u32 %v2954, 16
        %v3057 = vrot.slane %v3055, 1
        %v3058 = vsel %vm1887, %v3053, %v3057
        %v3060 = vshrl.u32 %v2891, 16
        %v3062 = vshll.u32 %v2891, 16
        %v3064 = vrot.slane %v3062, 1
        %v3065 = vor.u32 %v3060, %v3064
        %v3067 = vshll.u32 %v2955, 16
        %v3069 = vrot.slane %v3067, 1
        %v3070 = vsel %vm1887, %v3065, %v3069
        %v3072 = vshrl.u32 %v2892, 16
        %v3074 = vshll.u32 %v2892, 16
        %v3076 = vrot.slane %v3074, 1
        %v3077 = vor.u32 %v3072, %v3076
        %v3079 = vshll.u32 %v2956, 16
        %v3081 = vrot.slane %v3079, 1
        %v3082 = vsel %vm1887, %v3077, %v3081
        %v3084 = vshrl.u32 %v2893, 16
        %v3086 = vshll.u32 %v2893, 16
        %v3088 = vrot.slane %v3086, 1
        %v3089 = vor.u32 %v3084, %v3088
        %v3091 = vshll.u32 %v2957, 16
        %v3093 = vrot.slane %v3091, 1
        %v3094 = vsel %vm1887, %v3089, %v3093
        %v3096 = vshrl.u32 %v2894, 16
        %v3098 = vshll.u32 %v2894, 16
        %v3100 = vrot.slane %v3098, 1
        %v3101 = vor.u32 %v3096, %v3100
        %v3103 = vshll.u32 %v2958, 16
        %v3105 = vrot.slane %v3103, 1
        %v3106 = vsel %vm1887, %v3101, %v3105
        %v3108 = vshrl.u32 %v2895, 16
        %v3110 = vshll.u32 %v2895, 16
        %v3112 = vrot.slane %v3110, 1
        %v3113 = vor.u32 %v3108, %v3112
        %v3115 = vshll.u32 %v2959, 16
        %v3117 = vrot.slane %v3115, 1
        %v3118 = vsel %vm1887, %v3113, %v3117
        %v3120 = vshrl.u32 %v2896, 16
        %v3122 = vshll.u32 %v2896, 16
        %v3124 = vrot.slane %v3122, 1
        %v3125 = vor.u32 %v3120, %v3124
        %v3127 = vshll.u32 %v2960, 16
        %v3129 = vrot.slane %v3127, 1
        %v3130 = vsel %vm1887, %v3125, %v3129
        %v3132 = vshrl.u32 %v2897, 16
        %v3134 = vshll.u32 %v2897, 16
        %v3136 = vrot.slane %v3134, 1
        %v3137 = vor.u32 %v3132, %v3136
        %v3139 = vshll.u32 %v2961, 16
        %v3141 = vrot.slane %v3139, 1
        %v3142 = vsel %vm1887, %v3137, %v3141
        %v3144 = vshrl.u32 %v2898, 16
        %v3146 = vshll.u32 %v2898, 16
        %v3148 = vrot.slane %v3146, 1
        %v3149 = vor.u32 %v3144, %v3148
        %v3151 = vshll.u32 %v2962, 16
        %v3153 = vrot.slane %v3151, 1
        %v3154 = vsel %vm1887, %v3149, %v3153
        %v3187 = vunpack.c.l.b16 %v2803
        %v3188 = vunpack.c.l.b16 %v2804
        %v3189 = vunpack.c.l.b16 %v2805
        %v3190 = vunpack.c.l.b16 %v2806
        %v3191 = vunpack.c.l.b16 %v2807
        %v3192 = vunpack.c.l.b16 %v2808
        %v3193 = vunpack.c.l.b16 %v2809
        %v3194 = vunpack.c.l.b16 %v2810
        %v3195 = vunpack.c.l.b16 %v2811
        %v3196 = vunpack.c.l.b16 %v2812
        %v3197 = vunpack.c.l.b16 %v2813
        %v3198 = vunpack.c.l.b16 %v2814
        %v3199 = vunpack.c.l.b16 %v2815
        %v3200 = vunpack.c.l.b16 %v2816
        %v3201 = vunpack.c.l.b16 %v2817
        %v3202 = vunpack.c.l.b16 %v2818
        %v3203 = vpack.c.b16 %v2852, %v3187
        %v3204 = vpack.c.b16 %v2854, %v3188
        %v3205 = vpack.c.b16 %v2856, %v3189
        %v3206 = vpack.c.b16 %v2858, %v3190
        %v3207 = vpack.c.b16 %v2860, %v3191
        %v3208 = vpack.c.b16 %v2862, %v3192
        %v3209 = vpack.c.b16 %v2864, %v3193
        %v3210 = vpack.c.b16 %v2866, %v3194
        %v3211 = vpack.c.b16 %v2868, %v3195
        %v3212 = vpack.c.b16 %v2870, %v3196
        %v3213 = vpack.c.b16 %v2872, %v3197
        %v3214 = vpack.c.b16 %v2874, %v3198
        %v3215 = vpack.c.b16 %v2876, %v3199
        %v3216 = vpack.c.b16 %v2878, %v3200
        %v3217 = vpack.c.b16 %v2880, %v3201
        %v3218 = vpack.c.b16 %v2882, %v3202
        %v3219 = vrot.slane %v3203, 1
        %v3220 = vrot.slane %v2947, 1
        %v3221 = vsel %vm2144, %v3219, %v3220
        %v3222 = vrot.slane %v3204, 1
        %v3223 = vrot.slane %v2948, 1
        %v3224 = vsel %vm2144, %v3222, %v3223
        %v3225 = vrot.slane %v3205, 1
        %v3226 = vrot.slane %v2949, 1
        %v3227 = vsel %vm2144, %v3225, %v3226
        %v3228 = vrot.slane %v3206, 1
        %v3229 = vrot.slane %v2950, 1
        %v3230 = vsel %vm2144, %v3228, %v3229
        %v3231 = vrot.slane %v3207, 1
        %v3232 = vrot.slane %v2951, 1
        %v3233 = vsel %vm2144, %v3231, %v3232
        %v3234 = vrot.slane %v3208, 1
        %v3235 = vrot.slane %v2952, 1
        %v3236 = vsel %vm2144, %v3234, %v3235
        %v3237 = vrot.slane %v3209, 1
        %v3238 = vrot.slane %v2953, 1
        %v3239 = vsel %vm2144, %v3237, %v3238
        %v3240 = vrot.slane %v3210, 1
        %v3241 = vrot.slane %v2954, 1
        %v3242 = vsel %vm2144, %v3240, %v3241
        %v3243 = vrot.slane %v3211, 1
        %v3244 = vrot.slane %v2955, 1
        %v3245 = vsel %vm2144, %v3243, %v3244
        %v3246 = vrot.slane %v3212, 1
        %v3247 = vrot.slane %v2956, 1
        %v3248 = vsel %vm2144, %v3246, %v3247
        %v3249 = vrot.slane %v3213, 1
        %v3250 = vrot.slane %v2957, 1
        %v3251 = vsel %vm2144, %v3249, %v3250
        %v3252 = vrot.slane %v3214, 1
        %v3253 = vrot.slane %v2958, 1
        %v3254 = vsel %vm2144, %v3252, %v3253
        %v3255 = vrot.slane %v3215, 1
        %v3256 = vrot.slane %v2959, 1
        %v3257 = vsel %vm2144, %v3255, %v3256
        %v3258 = vrot.slane %v3216, 1
        %v3259 = vrot.slane %v2960, 1
        %v3260 = vsel %vm2144, %v3258, %v3259
        %v3261 = vrot.slane %v3217, 1
        %v3262 = vrot.slane %v2961, 1
        %v3263 = vsel %vm2144, %v3261, %v3262
        %v3264 = vrot.slane %v3218, 1
        %v3265 = vrot.slane %v2962, 1
        %v3266 = vsel %vm2144, %v3264, %v3265
        %s3283 = scalar_lea.vmem [#allocation8], 192
        %v3284 = vld [vmem:[%s3283] sm:$0xf]
        %v3285 = vld [vmem:[%s3283 + $0x4] sm:$0xf]
        %v3286 = vld [vmem:[%s3283 + $0x8] sm:$0xf]
        %v3287 = vld [vmem:[%s3283 + $0xc] sm:$0xf]
        %v3288 = vld [vmem:[%s3283 + $0x10] sm:$0xf]
        %v3289 = vld [vmem:[%s3283 + $0x14] sm:$0xf]
        %v3290 = vld [vmem:[%s3283 + $0x18] sm:$0xf]
        %v3291 = vld [vmem:[%s3283 + $0x1c] sm:$0xf]
        %v3292 = vld [vmem:[%s3283 + $0x20] sm:$0xf]
        %v3293 = vld [vmem:[%s3283 + $0x24] sm:$0xf]
        %v3294 = vld [vmem:[%s3283 + $0x28] sm:$0xf]
        %v3295 = vld [vmem:[%s3283 + $0x2c] sm:$0xf]
        %v3296 = vld [vmem:[%s3283 + $0x30] sm:$0xf]
        %v3297 = vld [vmem:[%s3283 + $0x34] sm:$0xf]
        %v3298 = vld [vmem:[%s3283 + $0x38] sm:$0xf]
        %v3299 = vld [vmem:[%s3283 + $0x3c] sm:$0xf]
        %v3300 = vld [vmem:[%s3283 + $0x40] sm:$0xf]
        %v3301 = vld [vmem:[%s3283 + $0x44] sm:$0xf]
        %v3302 = vld [vmem:[%s3283 + $0x48] sm:$0xf]
        %v3303 = vld [vmem:[%s3283 + $0x4c] sm:$0xf]
        %v3304 = vld [vmem:[%s3283 + $0x50] sm:$0xf]
        %v3305 = vld [vmem:[%s3283 + $0x54] sm:$0xf]
        %v3306 = vld [vmem:[%s3283 + $0x58] sm:$0xf]
        %v3307 = vld [vmem:[%s3283 + $0x5c] sm:$0xf]
        %v3308 = vld [vmem:[%s3283 + $0x60] sm:$0xf]
        %v3309 = vld [vmem:[%s3283 + $0x64] sm:$0xf]
        %v3310 = vld [vmem:[%s3283 + $0x68] sm:$0xf]
        %v3311 = vld [vmem:[%s3283 + $0x6c] sm:$0xf]
        %v3312 = vld [vmem:[%s3283 + $0x70] sm:$0xf]
        %v3313 = vld [vmem:[%s3283 + $0x74] sm:$0xf]
        %v3314 = vld [vmem:[%s3283 + $0x78] sm:$0xf]
        %v3315 = vld [vmem:[%s3283 + $0x7c] sm:$0xf]
        %v3316 = vld [vmem:[%s3283 + $0x80] sm:$0xf]
        %v3317 = vld [vmem:[%s3283 + $0x84] sm:$0xf]
        %v3318 = vld [vmem:[%s3283 + $0x88] sm:$0xf]
        %v3319 = vld [vmem:[%s3283 + $0x8c] sm:$0xf]
        %v3320 = vld [vmem:[%s3283 + $0x90] sm:$0xf]
        %v3321 = vld [vmem:[%s3283 + $0x94] sm:$0xf]
        %v3322 = vld [vmem:[%s3283 + $0x98] sm:$0xf]
        %v3323 = vld [vmem:[%s3283 + $0x9c] sm:$0xf]
        %v3324 = vld [vmem:[%s3283 + $0xa0] sm:$0xf]
        %v3325 = vld [vmem:[%s3283 + $0xa4] sm:$0xf]
        %v3326 = vld [vmem:[%s3283 + $0xa8] sm:$0xf]
        %v3327 = vld [vmem:[%s3283 + $0xac] sm:$0xf]
        %v3328 = vld [vmem:[%s3283 + $0xb0] sm:$0xf]
        %v3329 = vld [vmem:[%s3283 + $0xb4] sm:$0xf]
        %v3330 = vld [vmem:[%s3283 + $0xb8] sm:$0xf]
        %v3331 = vld [vmem:[%s3283 + $0xbc] sm:$0xf]
        %v3380 = vunpack.c.l.b16 %v3284
        %v3381 = vunpack.c.l.b16 %v3285
        %v3382 = vunpack.c.l.b16 %v3286
        %v3383 = vunpack.c.l.b16 %v3287
        %v3384 = vunpack.c.l.b16 %v3288
        %v3385 = vunpack.c.l.b16 %v3289
        %v3386 = vunpack.c.l.b16 %v3290
        %v3387 = vunpack.c.l.b16 %v3291
        %v3388 = vunpack.c.l.b16 %v3292
        %v3389 = vunpack.c.l.b16 %v3293
        %v3390 = vunpack.c.l.b16 %v3294
        %v3391 = vunpack.c.l.b16 %v3295
        %v3392 = vunpack.c.l.b16 %v3296
        %v3393 = vunpack.c.l.b16 %v3297
        %v3394 = vunpack.c.l.b16 %v3298
        %v3395 = vunpack.c.l.b16 %v3299
        %v3396 = vunpack.c.l.b16 %v3300
        %v3397 = vunpack.c.l.b16 %v3301
        %v3398 = vunpack.c.l.b16 %v3302
        %v3399 = vunpack.c.l.b16 %v3303
        %v3400 = vunpack.c.l.b16 %v3304
        %v3401 = vunpack.c.l.b16 %v3305
        %v3402 = vunpack.c.l.b16 %v3306
        %v3403 = vunpack.c.l.b16 %v3307
        %v3404 = vunpack.c.l.b16 %v3308
        %v3405 = vunpack.c.l.b16 %v3309
        %v3406 = vunpack.c.l.b16 %v3310
        %v3407 = vunpack.c.l.b16 %v3311
        %v3408 = vunpack.c.l.b16 %v3312
        %v3409 = vunpack.c.l.b16 %v3313
        %v3410 = vunpack.c.l.b16 %v3314
        %v3411 = vunpack.c.l.b16 %v3315
        %v3412 = vunpack.c.l.b16 %v3316
        %v3413 = vunpack.c.l.b16 %v3317
        %v3414 = vunpack.c.l.b16 %v3318
        %v3415 = vunpack.c.l.b16 %v3319
        %v3416 = vunpack.c.l.b16 %v3320
        %v3417 = vunpack.c.l.b16 %v3321
        %v3418 = vunpack.c.l.b16 %v3322
        %v3419 = vunpack.c.l.b16 %v3323
        %v3420 = vunpack.c.l.b16 %v3324
        %v3421 = vunpack.c.l.b16 %v3325
        %v3422 = vunpack.c.l.b16 %v3326
        %v3423 = vunpack.c.l.b16 %v3327
        %v3424 = vunpack.c.l.b16 %v3328
        %v3425 = vunpack.c.l.b16 %v3329
        %v3426 = vunpack.c.l.b16 %v3330
        %v3427 = vunpack.c.l.b16 %v3331
        %v3428 = vpack.c.b16 %v3381, %v3380
        %v3429 = vpack.c.b16 %v3383, %v3382
        %v3430 = vpack.c.b16 %v3385, %v3384
        %v3431 = vpack.c.b16 %v3387, %v3386
        %v3432 = vpack.c.b16 %v3389, %v3388
        %v3433 = vpack.c.b16 %v3391, %v3390
        %v3434 = vpack.c.b16 %v3393, %v3392
        %v3435 = vpack.c.b16 %v3395, %v3394
        %v3436 = vpack.c.b16 %v3397, %v3396
        %v3437 = vpack.c.b16 %v3399, %v3398
        %v3438 = vpack.c.b16 %v3401, %v3400
        %v3439 = vpack.c.b16 %v3403, %v3402
        %v3440 = vpack.c.b16 %v3405, %v3404
        %v3441 = vpack.c.b16 %v3407, %v3406
        %v3442 = vpack.c.b16 %v3409, %v3408
        %v3443 = vpack.c.b16 %v3411, %v3410
        %v3444 = vpack.c.b16 %v3413, %v3412
        %v3445 = vpack.c.b16 %v3415, %v3414
        %v3446 = vpack.c.b16 %v3417, %v3416
        %v3447 = vpack.c.b16 %v3419, %v3418
        %v3448 = vpack.c.b16 %v3421, %v3420
        %v3449 = vpack.c.b16 %v3423, %v3422
        %v3450 = vpack.c.b16 %v3425, %v3424
        %v3451 = vpack.c.b16 %v3427, %v3426
        %3476 = vmatprep.subr.bf16.mxu0 0
        %3477 = vmatpush1.bf16.msra.mxu0 %v3428
        %3478 = vmatprep.subr.bf16.mxu0 0
        %3479 = vmatpush1.bf16.msra.mxu0 %v3429
        %3480 = vmatprep.subr.bf16.mxu0 0
        %3481 = vmatpush1.bf16.msra.mxu0 %v3430
        %3482 = vmatprep.subr.bf16.mxu0 0
        %3483 = vmatpush1.bf16.msra.mxu0 %v3431
        %3484 = vmatprep.subr.bf16.mxu0 0
        %3485 = vmatpush1.bf16.msra.mxu0 %v3432
        %3486 = vmatprep.subr.bf16.mxu0 0
        %3487 = vmatpush1.bf16.msra.mxu0 %v3433
        %3488 = vmatprep.subr.bf16.mxu0 0
        %3489 = vmatpush1.bf16.msra.mxu0 %v3434
        %3490 = vmatprep.subr.bf16.mxu0 0
        %3491 = vmatpush1.bf16.msra.mxu0 %v3435
        %3492 = vmatprep.subr.bf16.mxu0 0
        %3493 = vmatpush1.bf16.msra.mxu0 %v3436
        %3494 = vmatprep.subr.bf16.mxu0 0
        %3495 = vmatpush1.bf16.msra.mxu0 %v3437
        %3496 = vmatprep.subr.bf16.mxu0 0
        %3497 = vmatpush1.bf16.msra.mxu0 %v3438
        %3498 = vmatprep.subr.bf16.mxu0 0
        %3499 = vmatpush1.bf16.msra.mxu0 %v3439
        %3500 = vmatprep.subr.bf16.mxu0 0
        %3501 = vmatpush1.bf16.msra.mxu0 %v3440
        %3502 = vmatprep.subr.bf16.mxu0 0
        %3503 = vmatpush1.bf16.msra.mxu0 %v3441
        %3504 = vmatprep.subr.bf16.mxu0 0
        %3505 = vmatpush1.bf16.msra.mxu0 %v3442
        %3506 = vmatprep.subr.bf16.mxu0 0
        %3507 = vmatpush1.bf16.msra.mxu0 %v3443
        %3508 = vmatprep.mubr.bf16.mxu0 %v2974
        %3509 = vmatmul.mubr.bf16.gmra.mrb[0].mxu0 %v2883
        %v3510 = vpop.f32.mrb[0].mxu0
        %v3511 = vadd.f32 0.0, %v3510
        %v3512 = vpop.f32.mrb[0].mxu0
        %v3513 = vpop.f32.mrb[0].mxu0
        %v3514 = vadd.f32 0.0, %v3513
        %v3515 = vpop.f32.mrb[0].mxu0
        %3516 = vmatprep.mubr.bf16.mxu0 %v2986
        %3517 = vmatmul.mubr.bf16.gmra.mrb[0].mxu0 %v2884
        %v3518 = vpop.f32.mrb[0].mxu0
        %v3519 = vadd.f32 0.0, %v3518
        %v3520 = vpop.f32.mrb[0].mxu0
        %v3521 = vpop.f32.mrb[0].mxu0
        %v3522 = vadd.f32 0.0, %v3521
        %v3523 = vpop.f32.mrb[0].mxu0
        %3524 = vmatprep.mubr.bf16.mxu0 %v2998
        %3525 = vmatmul.mubr.bf16.gmra.mrb[0].mxu0 %v2885
        %v3526 = vpop.f32.mrb[0].mxu0
        %v3527 = vadd.f32 0.0, %v3526
        %v3528 = vpop.f32.mrb[0].mxu0
        %v3529 = vpop.f32.mrb[0].mxu0
        %v3530 = vadd.f32 0.0, %v3529
        %v3531 = vpop.f32.mrb[0].mxu0
        %3532 = vmatprep.mubr.bf16.mxu0 %v3010
        %3533 = vmatmul.mubr.bf16.gmra.mrb[0].mxu0 %v2886
        %v3534 = vpop.f32.mrb[0].mxu0
        %v3535 = vadd.f32 0.0, %v3534
        %v3536 = vpop.f32.mrb[0].mxu0
        %v3537 = vpop.f32.mrb[0].mxu0
        %v3538 = vadd.f32 0.0, %v3537
        %v3539 = vpop.f32.mrb[0].mxu0
        %3540 = vmatprep.mubr.bf16.mxu0 %v3022
        %3541 = vmatmul.mubr.bf16.gmra.mrb[0].mxu0 %v2887
        %v3542 = vpop.f32.mrb[0].mxu0
        %v3543 = vadd.f32 0.0, %v3542
        %v3544 = vpop.f32.mrb[0].mxu0
        %v3545 = vpop.f32.mrb[0].mxu0
        %v3546 = vadd.f32 0.0, %v3545
        %v3547 = vpop.f32.mrb[0].mxu0
        %3548 = vmatprep.mubr.bf16.mxu0 %v3034
        %3549 = vmatmul.mubr.bf16.gmra.mrb[0].mxu0 %v2888
        %v3550 = vpop.f32.mrb[0].mxu0
        %v3551 = vadd.f32 0.0, %v3550
        %v3552 = vpop.f32.mrb[0].mxu0
        %v3553 = vpop.f32.mrb[0].mxu0
        %v3554 = vadd.f32 0.0, %v3553
        %v3555 = vpop.f32.mrb[0].mxu0
        %3556 = vmatprep.mubr.bf16.mxu0 %v3046
        %3557 = vmatmul.mubr.bf16.gmra.mrb[0].mxu0 %v2889
        %v3558 = vpop.f32.mrb[0].mxu0
        %v3559 = vadd.f32 0.0, %v3558
        %v3560 = vpop.f32.mrb[0].mxu0
        %v3561 = vpop.f32.mrb[0].mxu0
        %v3562 = vadd.f32 0.0, %v3561
        %v3563 = vpop.f32.mrb[0].mxu0
        %3564 = vmatprep.mubr.bf16.mxu0 %v3058
        %3565 = vmatmul.mubr.bf16.gmra.mrb[0].mxu0 %v2890
        %v3566 = vpop.f32.mrb[0].mxu0
        %v3567 = vadd.f32 0.0, %v3566
        %v3568 = vpop.f32.mrb[0].mxu0
        %v3569 = vpop.f32.mrb[0].mxu0
        %v3570 = vadd.f32 0.0, %v3569
        %v3571 = vpop.f32.mrb[0].mxu0
        %3572 = vmatprep.mubr.bf16.mxu0 %v3070
        %3573 = vmatmul.mubr.bf16.gmra.mrb[0].mxu0 %v2891
        %v3574 = vpop.f32.mrb[0].mxu0
        %v3575 = vadd.f32 0.0, %v3574
        %v3576 = vpop.f32.mrb[0].mxu0
        %v3577 = vpop.f32.mrb[0].mxu0
        %v3578 = vadd.f32 0.0, %v3577
        %v3579 = vpop.f32.mrb[0].mxu0
        %3580 = vmatprep.mubr.bf16.mxu0 %v3082
        %3581 = vmatmul.mubr.bf16.gmra.mrb[0].mxu0 %v2892
        %v3582 = vpop.f32.mrb[0].mxu0
        %v3583 = vadd.f32 0.0, %v3582
        %v3584 = vpop.f32.mrb[0].mxu0
        %v3585 = vpop.f32.mrb[0].mxu0
        %v3586 = vadd.f32 0.0, %v3585
        %v3587 = vpop.f32.mrb[0].mxu0
        %3588 = vmatprep.mubr.bf16.mxu0 %v3094
        %3589 = vmatmul.mubr.bf16.gmra.mrb[0].mxu0 %v2893
        %v3590 = vpop.f32.mrb[0].mxu0
        %v3591 = vadd.f32 0.0, %v3590
        %v3592 = vpop.f32.mrb[0].mxu0
        %v3593 = vpop.f32.mrb[0].mxu0
        %v3594 = vadd.f32 0.0, %v3593
        %v3595 = vpop.f32.mrb[0].mxu0
        %3596 = vmatprep.mubr.bf16.mxu0 %v3106
        %3597 = vmatmul.mubr.bf16.gmra.mrb[0].mxu0 %v2894
        %v3598 = vpop.f32.mrb[0].mxu0
        %v3599 = vadd.f32 0.0, %v3598
        %v3600 = vpop.f32.mrb[0].mxu0
        %v3601 = vpop.f32.mrb[0].mxu0
        %v3602 = vadd.f32 0.0, %v3601
        %v3603 = vpop.f32.mrb[0].mxu0
        %3604 = vmatprep.mubr.bf16.mxu0 %v3118
        %3605 = vmatmul.mubr.bf16.gmra.mrb[0].mxu0 %v2895
        %v3606 = vpop.f32.mrb[0].mxu0
        %v3607 = vadd.f32 0.0, %v3606
        %v3608 = vpop.f32.mrb[0].mxu0
        %v3609 = vpop.f32.mrb[0].mxu0
        %v3610 = vadd.f32 0.0, %v3609
        %v3611 = vpop.f32.mrb[0].mxu0
        %3612 = vmatprep.mubr.bf16.mxu0 %v3130
        %3613 = vmatmul.mubr.bf16.gmra.mrb[0].mxu0 %v2896
        %v3614 = vpop.f32.mrb[0].mxu0
        %v3615 = vadd.f32 0.0, %v3614
        %v3616 = vpop.f32.mrb[0].mxu0
        %v3617 = vpop.f32.mrb[0].mxu0
        %v3618 = vadd.f32 0.0, %v3617
        %v3619 = vpop.f32.mrb[0].mxu0
        %3620 = vmatprep.mubr.bf16.mxu0 %v3142
        %3621 = vmatmul.mubr.bf16.gmra.mrb[0].mxu0 %v2897
        %v3622 = vpop.f32.mrb[0].mxu0
        %v3623 = vadd.f32 0.0, %v3622
        %v3624 = vpop.f32.mrb[0].mxu0
        %v3625 = vpop.f32.mrb[0].mxu0
        %v3626 = vadd.f32 0.0, %v3625
        %v3627 = vpop.f32.mrb[0].mxu0
        %3628 = vmatprep.mubr.bf16.mxu0 %v3154
        %3629 = vmatmul.mubr.bf16.gmra.mrb[0].mxu0 %v2898
        %v3630 = vpop.f32.mrb[0].mxu0
        %v3631 = vadd.f32 0.0, %v3630
        %v3632 = vpop.f32.mrb[0].mxu0
        %v3633 = vpop.f32.mrb[0].mxu0
        %v3634 = vadd.f32 0.0, %v3633
        %v3635 = vpop.f32.mrb[0].mxu0
        %3636 = vdwg.mxu0
        %3637 = vmatprep.subr.bf16.mxu0 0
        %3638 = vmatpush1.bf16.msra.mxu0 %v3444
        %3639 = vmatprep.subr.bf16.mxu0 0
        %3640 = vmatpush1.bf16.msra.mxu0 %v3445
        %3641 = vmatprep.subr.bf16.mxu0 0
        %3642 = vmatpush1.bf16.msra.mxu0 %v3446
        %3643 = vmatprep.subr.bf16.mxu0 0
        %3644 = vmatpush1.bf16.msra.mxu0 %v3447
        %3645 = vmatprep.subr.bf16.mxu0 0
        %3646 = vmatpush1.bf16.msra.mxu0 %v3448
        %3647 = vmatprep.subr.bf16.mxu0 0
        %3648 = vmatpush1.bf16.msra.mxu0 %v3449
        %3649 = vmatprep.subr.bf16.mxu0 0
        %3650 = vmatpush1.bf16.msra.mxu0 %v3450
        %3651 = vmatprep.subr.bf16.mxu0 0
        %3652 = vmatpush1.bf16.msra.mxu0 %v3451
        %3653 = vmatprep.subr.bf16.mxu0 0
        %3654 = vmatpush1.bf16.msra.mxu0 0
        %3655 = vmatprep.subr.bf16.mxu0 0
        %3656 = vmatpush1.bf16.msra.mxu0 0
        %3657 = vmatprep.subr.bf16.mxu0 0
        %3658 = vmatpush1.bf16.msra.mxu0 0
        %3659 = vmatprep.subr.bf16.mxu0 0
        %3660 = vmatpush1.bf16.msra.mxu0 0
        %3661 = vmatprep.subr.bf16.mxu0 0
        %3662 = vmatpush1.bf16.msra.mxu0 0
        %3663 = vmatprep.subr.bf16.mxu0 0
        %3664 = vmatpush1.bf16.msra.mxu0 0
        %3665 = vmatprep.subr.bf16.mxu0 0
        %3666 = vmatpush1.bf16.msra.mxu0 0
        %3667 = vmatprep.subr.bf16.mxu0 0
        %3668 = vmatpush1.bf16.msra.mxu0 0
        %3669 = vmatprep.mubr.bf16.mxu0 0
        %3670 = vmatmul.mubr.bf16.gmra.mrb[0].mxu0 %v3221
        %v3671 = vpop.f32.mrb[0].mxu0
        %v3672 = vadd.f32 %v3511, %v3671
        %v3673 = vpop.f32.mrb[0].mxu0
        %v3674 = vpop.f32.mrb[0].mxu0
        %v3675 = vadd.f32 %v3514, %v3674
        %v3676 = vpop.f32.mrb[0].mxu0
        %3677 = vmatprep.mubr.bf16.mxu0 0
        %3678 = vmatmul.mubr.bf16.gmra.mrb[0].mxu0 %v3224
        %v3679 = vpop.f32.mrb[0].mxu0
        %v3680 = vadd.f32 %v3519, %v3679
        %v3681 = vpop.f32.mrb[0].mxu0
        %v3682 = vpop.f32.mrb[0].mxu0
        %v3683 = vadd.f32 %v3522, %v3682
        %v3684 = vpop.f32.mrb[0].mxu0
        %3685 = vmatprep.mubr.bf16.mxu0 0
        %3686 = vmatmul.mubr.bf16.gmra.mrb[0].mxu0 %v3227
        %v3687 = vpop.f32.mrb[0].mxu0
        %v3688 = vadd.f32 %v3527, %v3687
        %v3689 = vpop.f32.mrb[0].mxu0
        %v3690 = vpop.f32.mrb[0].mxu0
        %v3691 = vadd.f32 %v3530, %v3690
        %v3692 = vpop.f32.mrb[0].mxu0
        %3693 = vmatprep.mubr.bf16.mxu0 0
        %3694 = vmatmul.mubr.bf16.gmra.mrb[0].mxu0 %v3230
        %v3695 = vpop.f32.mrb[0].mxu0
        %v3696 = vadd.f32 %v3535, %v3695
        %v3697 = vpop.f32.mrb[0].mxu0
        %v3698 = vpop.f32.mrb[0].mxu0
        %v3699 = vadd.f32 %v3538, %v3698
        %v3700 = vpop.f32.mrb[0].mxu0
        %3701 = vmatprep.mubr.bf16.mxu0 0
        %3702 = vmatmul.mubr.bf16.gmra.mrb[0].mxu0 %v3233
        %v3703 = vpop.f32.mrb[0].mxu0
        %v3704 = vadd.f32 %v3543, %v3703
        %v3705 = vpop.f32.mrb[0].mxu0
        %v3706 = vpop.f32.mrb[0].mxu0
        %v3707 = vadd.f32 %v3546, %v3706
        %v3708 = vpop.f32.mrb[0].mxu0
        %3709 = vmatprep.mubr.bf16.mxu0 0
        %3710 = vmatmul.mubr.bf16.gmra.mrb[0].mxu0 %v3236
        %v3711 = vpop.f32.mrb[0].mxu0
        %v3712 = vadd.f32 %v3551, %v3711
        %v3713 = vpop.f32.mrb[0].mxu0
        %v3714 = vpop.f32.mrb[0].mxu0
        %v3715 = vadd.f32 %v3554, %v3714
        %v3716 = vpop.f32.mrb[0].mxu0
        %3717 = vmatprep.mubr.bf16.mxu0 0
        %3718 = vmatmul.mubr.bf16.gmra.mrb[0].mxu0 %v3239
        %v3719 = vpop.f32.mrb[0].mxu0
        %v3720 = vadd.f32 %v3559, %v3719
        %v3721 = vpop.f32.mrb[0].mxu0
        %v3722 = vpop.f32.mrb[0].mxu0
        %v3723 = vadd.f32 %v3562, %v3722
        %v3724 = vpop.f32.mrb[0].mxu0
        %3725 = vmatprep.mubr.bf16.mxu0 0
        %3726 = vmatmul.mubr.bf16.gmra.mrb[0].mxu0 %v3242
        %v3727 = vpop.f32.mrb[0].mxu0
        %v3728 = vadd.f32 %v3567, %v3727
        %v3729 = vpop.f32.mrb[0].mxu0
        %v3730 = vpop.f32.mrb[0].mxu0
        %v3731 = vadd.f32 %v3570, %v3730
        %v3732 = vpop.f32.mrb[0].mxu0
        %3733 = vmatprep.mubr.bf16.mxu0 0
        %3734 = vmatmul.mubr.bf16.gmra.mrb[0].mxu0 %v3245
        %v3735 = vpop.f32.mrb[0].mxu0
        %v3736 = vadd.f32 %v3575, %v3735
        %v3737 = vpop.f32.mrb[0].mxu0
        %v3738 = vpop.f32.mrb[0].mxu0
        %v3739 = vadd.f32 %v3578, %v3738
        %v3740 = vpop.f32.mrb[0].mxu0
        %3741 = vmatprep.mubr.bf16.mxu0 0
        %3742 = vmatmul.mubr.bf16.gmra.mrb[0].mxu0 %v3248
        %v3743 = vpop.f32.mrb[0].mxu0
        %v3744 = vadd.f32 %v3583, %v3743
        %v3745 = vpop.f32.mrb[0].mxu0
        %v3746 = vpop.f32.mrb[0].mxu0
        %v3747 = vadd.f32 %v3586, %v3746
        %v3748 = vpop.f32.mrb[0].mxu0
        %3749 = vmatprep.mubr.bf16.mxu0 0
        %3750 = vmatmul.mubr.bf16.gmra.mrb[0].mxu0 %v3251
        %v3751 = vpop.f32.mrb[0].mxu0
        %v3752 = vadd.f32 %v3591, %v3751
        %v3753 = vpop.f32.mrb[0].mxu0
        %v3754 = vpop.f32.mrb[0].mxu0
        %v3755 = vadd.f32 %v3594, %v3754
        %v3756 = vpop.f32.mrb[0].mxu0
        %3757 = vmatprep.mubr.bf16.mxu0 0
        %3758 = vmatmul.mubr.bf16.gmra.mrb[0].mxu0 %v3254
        %v3759 = vpop.f32.mrb[0].mxu0
        %v3760 = vadd.f32 %v3599, %v3759
        %v3761 = vpop.f32.mrb[0].mxu0
        %v3762 = vpop.f32.mrb[0].mxu0
        %v3763 = vadd.f32 %v3602, %v3762
        %v3764 = vpop.f32.mrb[0].mxu0
        %3765 = vmatprep.mubr.bf16.mxu0 0
        %3766 = vmatmul.mubr.bf16.gmra.mrb[0].mxu0 %v3257
        %v3767 = vpop.f32.mrb[0].mxu0
        %v3768 = vadd.f32 %v3607, %v3767
        %v3769 = vpop.f32.mrb[0].mxu0
        %v3770 = vpop.f32.mrb[0].mxu0
        %v3771 = vadd.f32 %v3610, %v3770
        %v3772 = vpop.f32.mrb[0].mxu0
        %3773 = vmatprep.mubr.bf16.mxu0 0
        %3774 = vmatmul.mubr.bf16.gmra.mrb[0].mxu0 %v3260
        %v3775 = vpop.f32.mrb[0].mxu0
        %v3776 = vadd.f32 %v3615, %v3775
        %v3777 = vpop.f32.mrb[0].mxu0
        %v3778 = vpop.f32.mrb[0].mxu0
        %v3779 = vadd.f32 %v3618, %v3778
        %v3780 = vpop.f32.mrb[0].mxu0
        %3781 = vmatprep.mubr.bf16.mxu0 0
        %3782 = vmatmul.mubr.bf16.gmra.mrb[0].mxu0 %v3263
        %v3783 = vpop.f32.mrb[0].mxu0
        %v3784 = vadd.f32 %v3623, %v3783
        %v3785 = vpop.f32.mrb[0].mxu0
        %v3786 = vpop.f32.mrb[0].mxu0
        %v3787 = vadd.f32 %v3626, %v3786
        %v3788 = vpop.f32.mrb[0].mxu0
        %3789 = vmatprep.mubr.bf16.mxu0 0
        %3790 = vmatmul.mubr.bf16.gmra.mrb[0].mxu0 %v3266
        %v3791 = vpop.f32.mrb[0].mxu0
        %v3792 = vadd.f32 %v3631, %v3791
        %v3793 = vpop.f32.mrb[0].mxu0
        %v3794 = vpop.f32.mrb[0].mxu0
        %v3795 = vadd.f32 %v3634, %v3794
        %v3796 = vpop.f32.mrb[0].mxu0
        %3797 = vdwg.mxu0
        %v3798 = vadd.f32 %v2723, %v3672
        %v3799 = vadd.f32 %v2724, %v3675
        %v3800 = vadd.f32 %v2725, %v3680
        %v3801 = vadd.f32 %v2726, %v3683
        %v3802 = vadd.f32 %v2727, %v3688
        %v3803 = vadd.f32 %v2728, %v3691
        %v3804 = vadd.f32 %v2729, %v3696
        %v3805 = vadd.f32 %v2730, %v3699
        %v3806 = vadd.f32 %v2731, %v3704
        %v3807 = vadd.f32 %v2732, %v3707
        %v3808 = vadd.f32 %v2733, %v3712
        %v3809 = vadd.f32 %v2734, %v3715
        %v3810 = vadd.f32 %v2735, %v3720
        %v3811 = vadd.f32 %v2736, %v3723
        %v3812 = vadd.f32 %v2737, %v3728
        %v3813 = vadd.f32 %v2738, %v3731
        %v3814 = vadd.f32 %v2739, %v3736
        %v3815 = vadd.f32 %v2740, %v3739
        %v3816 = vadd.f32 %v2741, %v3744
        %v3817 = vadd.f32 %v2742, %v3747
        %v3818 = vadd.f32 %v2743, %v3752
        %v3819 = vadd.f32 %v2744, %v3755
        %v3820 = vadd.f32 %v2745, %v3760
        %v3821 = vadd.f32 %v2746, %v3763
        %v3822 = vadd.f32 %v2747, %v3768
        %v3823 = vadd.f32 %v2748, %v3771
        %v3824 = vadd.f32 %v2749, %v3776
        %v3825 = vadd.f32 %v2750, %v3779
        %v3826 = vadd.f32 %v2751, %v3784
        %v3827 = vadd.f32 %v2752, %v3787
        %v3828 = vadd.f32 %v2753, %v3792
        %v3829 = vadd.f32 %v2754, %v3795
        %s3830 = scalar_lea.vmem [#allocation2], 24
        %v3831 = vld [vmem:[%s3830] sm:$0xf]
        %v3832 = vld [vmem:[%s3830 + $0x4] sm:$0xf]
        %v3833 = vld [vmem:[%s3830 + $0xc] sm:$0xf]
        %v3834 = vld [vmem:[%s3830 + $0x10] sm:$0xf]
        %v3835 = vld [vmem:[%s3830 + $0x18] sm:$0xf]
        %v3836 = vld [vmem:[%s3830 + $0x1c] sm:$0xf]
        %v3837 = vld [vmem:[%s3830 + $0x24] sm:$0xf]
        %v3838 = vld [vmem:[%s3830 + $0x28] sm:$0xf]
        %v3839 = vld [vmem:[%s3830 + $0x30] sm:$0xf]
        %v3840 = vld [vmem:[%s3830 + $0x34] sm:$0xf]
        %v3841 = vld [vmem:[%s3830 + $0x3c] sm:$0xf]
        %v3842 = vld [vmem:[%s3830 + $0x40] sm:$0xf]
        %v3843 = vld [vmem:[%s3830 + $0x48] sm:$0xf]
        %v3844 = vld [vmem:[%s3830 + $0x4c] sm:$0xf]
        %v3845 = vld [vmem:[%s3830 + $0x54] sm:$0xf]
        %v3846 = vld [vmem:[%s3830 + $0x58] sm:$0xf]
        %v3847 = vld [vmem:[%s3830 + $0x60] sm:$0xf]
        %v3848 = vld [vmem:[%s3830 + $0x64] sm:$0xf]
        %v3849 = vld [vmem:[%s3830 + $0x6c] sm:$0xf]
        %v3850 = vld [vmem:[%s3830 + $0x70] sm:$0xf]
        %v3851 = vld [vmem:[%s3830 + $0x78] sm:$0xf]
        %v3852 = vld [vmem:[%s3830 + $0x7c] sm:$0xf]
        %v3853 = vld [vmem:[%s3830 + $0x84] sm:$0xf]
        %v3854 = vld [vmem:[%s3830 + $0x88] sm:$0xf]
        %v3855 = vld [vmem:[%s3830 + $0x90] sm:$0xf]
        %v3856 = vld [vmem:[%s3830 + $0x94] sm:$0xf]
        %v3857 = vld [vmem:[%s3830 + $0x9c] sm:$0xf]
        %v3858 = vld [vmem:[%s3830 + $0xa0] sm:$0xf]
        %v3859 = vld [vmem:[%s3830 + $0xa8] sm:$0xf]
        %v3860 = vld [vmem:[%s3830 + $0xac] sm:$0xf]
        %v3861 = vld [vmem:[%s3830 + $0xb4] sm:$0xf]
        %v3862 = vld [vmem:[%s3830 + $0xb8] sm:$0xf]
        %v3863 = vld [vmem:[%s3830 + $0x8] sm:$0x1]
        %v3864 = vld [vmem:[%s3830 + $0x14] sm:$0x1]
        %v3865 = vld [vmem:[%s3830 + $0x20] sm:$0x1]
        %v3866 = vld [vmem:[%s3830 + $0x2c] sm:$0x1]
        %v3867 = vld [vmem:[%s3830 + $0x38] sm:$0x1]
        %v3868 = vld [vmem:[%s3830 + $0x44] sm:$0x1]
        %v3869 = vld [vmem:[%s3830 + $0x50] sm:$0x1]
        %v3870 = vld [vmem:[%s3830 + $0x5c] sm:$0x1]
        %v3871 = vld [vmem:[%s3830 + $0x68] sm:$0x1]
        %v3872 = vld [vmem:[%s3830 + $0x74] sm:$0x1]
        %v3873 = vld [vmem:[%s3830 + $0x80] sm:$0x1]
        %v3874 = vld [vmem:[%s3830 + $0x8c] sm:$0x1]
        %v3875 = vld [vmem:[%s3830 + $0x98] sm:$0x1]
        %v3876 = vld [vmem:[%s3830 + $0xa4] sm:$0x1]
        %v3877 = vld [vmem:[%s3830 + $0xb0] sm:$0x1]
        %v3878 = vld [vmem:[%s3830 + $0xbc] sm:$0x1]
        %v3879 = vld [vmem:[%s3830] sm:$0xe]
        %v3880 = vld [vmem:[%s3830 + $0xc] sm:$0xe]
        %v3881 = vld [vmem:[%s3830 + $0x18] sm:$0xe]
        %v3882 = vld [vmem:[%s3830 + $0x24] sm:$0xe]
        %v3883 = vld [vmem:[%s3830 + $0x30] sm:$0xe]
        %v3884 = vld [vmem:[%s3830 + $0x3c] sm:$0xe]
        %v3885 = vld [vmem:[%s3830 + $0x48] sm:$0xe]
        %v3886 = vld [vmem:[%s3830 + $0x54] sm:$0xe]
        %v3887 = vld [vmem:[%s3830 + $0x60] sm:$0xe]
        %v3888 = vld [vmem:[%s3830 + $0x6c] sm:$0xe]
        %v3889 = vld [vmem:[%s3830 + $0x78] sm:$0xe]
        %v3890 = vld [vmem:[%s3830 + $0x84] sm:$0xe]
        %v3891 = vld [vmem:[%s3830 + $0x90] sm:$0xe]
        %v3892 = vld [vmem:[%s3830 + $0x9c] sm:$0xe]
        %v3893 = vld [vmem:[%s3830 + $0xa8] sm:$0xe]
        %v3894 = vld [vmem:[%s3830 + $0xb4] sm:$0xe]
        %v3927 = vunpack.c.l.b16 %v3831
        %v3928 = vunpack.c.l.b16 %v3832
        %v3929 = vunpack.c.l.b16 %v3833
        %v3930 = vunpack.c.l.b16 %v3834
        %v3931 = vunpack.c.l.b16 %v3835
        %v3932 = vunpack.c.l.b16 %v3836
        %v3933 = vunpack.c.l.b16 %v3837
        %v3934 = vunpack.c.l.b16 %v3838
        %v3935 = vunpack.c.l.b16 %v3839
        %v3936 = vunpack.c.l.b16 %v3840
        %v3937 = vunpack.c.l.b16 %v3841
        %v3938 = vunpack.c.l.b16 %v3842
        %v3939 = vunpack.c.l.b16 %v3843
        %v3940 = vunpack.c.l.b16 %v3844
        %v3941 = vunpack.c.l.b16 %v3845
        %v3942 = vunpack.c.l.b16 %v3846
        %v3943 = vunpack.c.l.b16 %v3847
        %v3944 = vunpack.c.l.b16 %v3848
        %v3945 = vunpack.c.l.b16 %v3849
        %v3946 = vunpack.c.l.b16 %v3850
        %v3947 = vunpack.c.l.b16 %v3851
        %v3948 = vunpack.c.l.b16 %v3852
        %v3949 = vunpack.c.l.b16 %v3853
        %v3950 = vunpack.c.l.b16 %v3854
        %v3951 = vunpack.c.l.b16 %v3855
        %v3952 = vunpack.c.l.b16 %v3856
        %v3953 = vunpack.c.l.b16 %v3857
        %v3954 = vunpack.c.l.b16 %v3858
        %v3955 = vunpack.c.l.b16 %v3859
        %v3956 = vunpack.c.l.b16 %v3860
        %v3957 = vunpack.c.l.b16 %v3861
        %v3958 = vunpack.c.l.b16 %v3862
        %v3959 = vpack.c.b16 %v3928, %v3927
        %v3960 = vpack.c.b16 %v3930, %v3929
        %v3961 = vpack.c.b16 %v3932, %v3931
        %v3962 = vpack.c.b16 %v3934, %v3933
        %v3963 = vpack.c.b16 %v3936, %v3935
        %v3964 = vpack.c.b16 %v3938, %v3937
        %v3965 = vpack.c.b16 %v3940, %v3939
        %v3966 = vpack.c.b16 %v3942, %v3941
        %v3967 = vpack.c.b16 %v3944, %v3943
        %v3968 = vpack.c.b16 %v3946, %v3945
        %v3969 = vpack.c.b16 %v3948, %v3947
        %v3970 = vpack.c.b16 %v3950, %v3949
        %v3971 = vpack.c.b16 %v3952, %v3951
        %v3972 = vpack.c.b16 %v3954, %v3953
        %v3973 = vpack.c.b16 %v3956, %v3955
        %v3974 = vpack.c.b16 %v3958, %v3957
        %v4007 = vunpack.c.l.b16 %v3863
        %v4008 = vunpack.c.l.b16 %v3864
        %v4009 = vunpack.c.l.b16 %v3865
        %v4010 = vunpack.c.l.b16 %v3866
        %v4011 = vunpack.c.l.b16 %v3867
        %v4012 = vunpack.c.l.b16 %v3868
        %v4013 = vunpack.c.l.b16 %v3869
        %v4014 = vunpack.c.l.b16 %v3870
        %v4015 = vunpack.c.l.b16 %v3871
        %v4016 = vunpack.c.l.b16 %v3872
        %v4017 = vunpack.c.l.b16 %v3873
        %v4018 = vunpack.c.l.b16 %v3874
        %v4019 = vunpack.c.l.b16 %v3875
        %v4020 = vunpack.c.l.b16 %v3876
        %v4021 = vunpack.c.l.b16 %v3877
        %v4022 = vunpack.c.l.b16 %v3878
        %v4023 = vpack.c.b16 %v4007, %v4007
        %v4024 = vpack.c.b16 %v4008, %v4008
        %v4025 = vpack.c.b16 %v4009, %v4009
        %v4026 = vpack.c.b16 %v4010, %v4010
        %v4027 = vpack.c.b16 %v4011, %v4011
        %v4028 = vpack.c.b16 %v4012, %v4012
        %v4029 = vpack.c.b16 %v4013, %v4013
        %v4030 = vpack.c.b16 %v4014, %v4014
        %v4031 = vpack.c.b16 %v4015, %v4015
        %v4032 = vpack.c.b16 %v4016, %v4016
        %v4033 = vpack.c.b16 %v4017, %v4017
        %v4034 = vpack.c.b16 %v4018, %v4018
        %v4035 = vpack.c.b16 %v4019, %v4019
        %v4036 = vpack.c.b16 %v4020, %v4020
        %v4037 = vpack.c.b16 %v4021, %v4021
        %v4038 = vpack.c.b16 %v4022, %v4022
        %v4040 = vshrl.u32 %v3959, 16
        %v4042 = vshll.u32 %v3959, 16
        %v4044 = vrot.slane %v4042, 1
        %v4045 = vor.u32 %v4040, %v4044
        %v4047 = vshll.u32 %v4023, 16
        %v4049 = vrot.slane %v4047, 1
        %v4050 = vsel %vm1887, %v4045, %v4049
        %v4052 = vshrl.u32 %v3960, 16
        %v4054 = vshll.u32 %v3960, 16
        %v4056 = vrot.slane %v4054, 1
        %v4057 = vor.u32 %v4052, %v4056
        %v4059 = vshll.u32 %v4024, 16
        %v4061 = vrot.slane %v4059, 1
        %v4062 = vsel %vm1887, %v4057, %v4061
        %v4064 = vshrl.u32 %v3961, 16
        %v4066 = vshll.u32 %v3961, 16
        %v4068 = vrot.slane %v4066, 1
        %v4069 = vor.u32 %v4064, %v4068
        %v4071 = vshll.u32 %v4025, 16
        %v4073 = vrot.slane %v4071, 1
        %v4074 = vsel %vm1887, %v4069, %v4073
        %v4076 = vshrl.u32 %v3962, 16
        %v4078 = vshll.u32 %v3962, 16
        %v4080 = vrot.slane %v4078, 1
        %v4081 = vor.u32 %v4076, %v4080
        %v4083 = vshll.u32 %v4026, 16
        %v4085 = vrot.slane %v4083, 1
        %v4086 = vsel %vm1887, %v4081, %v4085
        %v4088 = vshrl.u32 %v3963, 16
        %v4090 = vshll.u32 %v3963, 16
        %v4092 = vrot.slane %v4090, 1
        %v4093 = vor.u32 %v4088, %v4092
        %v4095 = vshll.u32 %v4027, 16
        %v4097 = vrot.slane %v4095, 1
        %v4098 = vsel %vm1887, %v4093, %v4097
        %v4100 = vshrl.u32 %v3964, 16
        %v4102 = vshll.u32 %v3964, 16
        %v4104 = vrot.slane %v4102, 1
        %v4105 = vor.u32 %v4100, %v4104
        %v4107 = vshll.u32 %v4028, 16
        %v4109 = vrot.slane %v4107, 1
        %v4110 = vsel %vm1887, %v4105, %v4109
        %v4112 = vshrl.u32 %v3965, 16
        %v4114 = vshll.u32 %v3965, 16
        %v4116 = vrot.slane %v4114, 1
        %v4117 = vor.u32 %v4112, %v4116
        %v4119 = vshll.u32 %v4029, 16
        %v4121 = vrot.slane %v4119, 1
        %v4122 = vsel %vm1887, %v4117, %v4121
        %v4124 = vshrl.u32 %v3966, 16
        %v4126 = vshll.u32 %v3966, 16
        %v4128 = vrot.slane %v4126, 1
        %v4129 = vor.u32 %v4124, %v4128
        %v4131 = vshll.u32 %v4030, 16
        %v4133 = vrot.slane %v4131, 1
        %v4134 = vsel %vm1887, %v4129, %v4133
        %v4136 = vshrl.u32 %v3967, 16
        %v4138 = vshll.u32 %v3967, 16
        %v4140 = vrot.slane %v4138, 1
        %v4141 = vor.u32 %v4136, %v4140
        %v4143 = vshll.u32 %v4031, 16
        %v4145 = vrot.slane %v4143, 1
        %v4146 = vsel %vm1887, %v4141, %v4145
        %v4148 = vshrl.u32 %v3968, 16
        %v4150 = vshll.u32 %v3968, 16
        %v4152 = vrot.slane %v4150, 1
        %v4153 = vor.u32 %v4148, %v4152
        %v4155 = vshll.u32 %v4032, 16
        %v4157 = vrot.slane %v4155, 1
        %v4158 = vsel %vm1887, %v4153, %v4157
        %v4160 = vshrl.u32 %v3969, 16
        %v4162 = vshll.u32 %v3969, 16
        %v4164 = vrot.slane %v4162, 1
        %v4165 = vor.u32 %v4160, %v4164
        %v4167 = vshll.u32 %v4033, 16
        %v4169 = vrot.slane %v4167, 1
        %v4170 = vsel %vm1887, %v4165, %v4169
        %v4172 = vshrl.u32 %v3970, 16
        %v4174 = vshll.u32 %v3970, 16
        %v4176 = vrot.slane %v4174, 1
        %v4177 = vor.u32 %v4172, %v4176
        %v4179 = vshll.u32 %v4034, 16
        %v4181 = vrot.slane %v4179, 1
        %v4182 = vsel %vm1887, %v4177, %v4181
        %v4184 = vshrl.u32 %v3971, 16
        %v4186 = vshll.u32 %v3971, 16
        %v4188 = vrot.slane %v4186, 1
        %v4189 = vor.u32 %v4184, %v4188
        %v4191 = vshll.u32 %v4035, 16
        %v4193 = vrot.slane %v4191, 1
        %v4194 = vsel %vm1887, %v4189, %v4193
        %v4196 = vshrl.u32 %v3972, 16
        %v4198 = vshll.u32 %v3972, 16
        %v4200 = vrot.slane %v4198, 1
        %v4201 = vor.u32 %v4196, %v4200
        %v4203 = vshll.u32 %v4036, 16
        %v4205 = vrot.slane %v4203, 1
        %v4206 = vsel %vm1887, %v4201, %v4205
        %v4208 = vshrl.u32 %v3973, 16
        %v4210 = vshll.u32 %v3973, 16
        %v4212 = vrot.slane %v4210, 1
        %v4213 = vor.u32 %v4208, %v4212
        %v4215 = vshll.u32 %v4037, 16
        %v4217 = vrot.slane %v4215, 1
        %v4218 = vsel %vm1887, %v4213, %v4217
        %v4220 = vshrl.u32 %v3974, 16
        %v4222 = vshll.u32 %v3974, 16
        %v4224 = vrot.slane %v4222, 1
        %v4225 = vor.u32 %v4220, %v4224
        %v4227 = vshll.u32 %v4038, 16
        %v4229 = vrot.slane %v4227, 1
        %v4230 = vsel %vm1887, %v4225, %v4229
        %v4263 = vunpack.c.l.b16 %v3879
        %v4264 = vunpack.c.l.b16 %v3880
        %v4265 = vunpack.c.l.b16 %v3881
        %v4266 = vunpack.c.l.b16 %v3882
        %v4267 = vunpack.c.l.b16 %v3883
        %v4268 = vunpack.c.l.b16 %v3884
        %v4269 = vunpack.c.l.b16 %v3885
        %v4270 = vunpack.c.l.b16 %v3886
        %v4271 = vunpack.c.l.b16 %v3887
        %v4272 = vunpack.c.l.b16 %v3888
        %v4273 = vunpack.c.l.b16 %v3889
        %v4274 = vunpack.c.l.b16 %v3890
        %v4275 = vunpack.c.l.b16 %v3891
        %v4276 = vunpack.c.l.b16 %v3892
        %v4277 = vunpack.c.l.b16 %v3893
        %v4278 = vunpack.c.l.b16 %v3894
        %v4279 = vpack.c.b16 %v3928, %v4263
        %v4280 = vpack.c.b16 %v3930, %v4264
        %v4281 = vpack.c.b16 %v3932, %v4265
        %v4282 = vpack.c.b16 %v3934, %v4266
        %v4283 = vpack.c.b16 %v3936, %v4267
        %v4284 = vpack.c.b16 %v3938, %v4268
        %v4285 = vpack.c.b16 %v3940, %v4269
        %v4286 = vpack.c.b16 %v3942, %v4270
        %v4287 = vpack.c.b16 %v3944, %v4271
        %v4288 = vpack.c.b16 %v3946, %v4272
        %v4289 = vpack.c.b16 %v3948, %v4273
        %v4290 = vpack.c.b16 %v3950, %v4274
        %v4291 = vpack.c.b16 %v3952, %v4275
        %v4292 = vpack.c.b16 %v3954, %v4276
        %v4293 = vpack.c.b16 %v3956, %v4277
        %v4294 = vpack.c.b16 %v3958, %v4278
        %v4295 = vrot.slane %v4279, 1
        %v4296 = vrot.slane %v4023, 1
        %v4297 = vsel %vm2144, %v4295, %v4296
        %v4298 = vrot.slane %v4280, 1
        %v4299 = vrot.slane %v4024, 1
        %v4300 = vsel %vm2144, %v4298, %v4299
        %v4301 = vrot.slane %v4281, 1
        %v4302 = vrot.slane %v4025, 1
        %v4303 = vsel %vm2144, %v4301, %v4302
        %v4304 = vrot.slane %v4282, 1
        %v4305 = vrot.slane %v4026, 1
        %v4306 = vsel %vm2144, %v4304, %v4305
        %v4307 = vrot.slane %v4283, 1
        %v4308 = vrot.slane %v4027, 1
        %v4309 = vsel %vm2144, %v4307, %v4308
        %v4310 = vrot.slane %v4284, 1
        %v4311 = vrot.slane %v4028, 1
        %v4312 = vsel %vm2144, %v4310, %v4311
        %v4313 = vrot.slane %v4285, 1
        %v4314 = vrot.slane %v4029, 1
        %v4315 = vsel %vm2144, %v4313, %v4314
        %v4316 = vrot.slane %v4286, 1
        %v4317 = vrot.slane %v4030, 1
        %v4318 = vsel %vm2144, %v4316, %v4317
        %v4319 = vrot.slane %v4287, 1
        %v4320 = vrot.slane %v4031, 1
        %v4321 = vsel %vm2144, %v4319, %v4320
        %v4322 = vrot.slane %v4288, 1
        %v4323 = vrot.slane %v4032, 1
        %v4324 = vsel %vm2144, %v4322, %v4323
        %v4325 = vrot.slane %v4289, 1
        %v4326 = vrot.slane %v4033, 1
        %v4327 = vsel %vm2144, %v4325, %v4326
        %v4328 = vrot.slane %v4290, 1
        %v4329 = vrot.slane %v4034, 1
        %v4330 = vsel %vm2144, %v4328, %v4329
        %v4331 = vrot.slane %v4291, 1
        %v4332 = vrot.slane %v4035, 1
        %v4333 = vsel %vm2144, %v4331, %v4332
        %v4334 = vrot.slane %v4292, 1
        %v4335 = vrot.slane %v4036, 1
        %v4336 = vsel %vm2144, %v4334, %v4335
        %v4337 = vrot.slane %v4293, 1
        %v4338 = vrot.slane %v4037, 1
        %v4339 = vsel %vm2144, %v4337, %v4338
        %v4340 = vrot.slane %v4294, 1
        %v4341 = vrot.slane %v4038, 1
        %v4342 = vsel %vm2144, %v4340, %v4341
        %s4359 = scalar_lea.vmem [#allocation8], 384
        %v4360 = vld [vmem:[%s4359] sm:$0xf]
        %v4361 = vld [vmem:[%s4359 + $0x4] sm:$0xf]
        %v4362 = vld [vmem:[%s4359 + $0x8] sm:$0xf]
        %v4363 = vld [vmem:[%s4359 + $0xc] sm:$0xf]
        %v4364 = vld [vmem:[%s4359 + $0x10] sm:$0xf]
        %v4365 = vld [vmem:[%s4359 + $0x14] sm:$0xf]
        %v4366 = vld [vmem:[%s4359 + $0x18] sm:$0xf]
        %v4367 = vld [vmem:[%s4359 + $0x1c] sm:$0xf]
        %v4368 = vld [vmem:[%s4359 + $0x20] sm:$0xf]
        %v4369 = vld [vmem:[%s4359 + $0x24] sm:$0xf]
        %v4370 = vld [vmem:[%s4359 + $0x28] sm:$0xf]
        %v4371 = vld [vmem:[%s4359 + $0x2c] sm:$0xf]
        %v4372 = vld [vmem:[%s4359 + $0x30] sm:$0xf]
        %v4373 = vld [vmem:[%s4359 + $0x34] sm:$0xf]
        %v4374 = vld [vmem:[%s4359 + $0x38] sm:$0xf]
        %v4375 = vld [vmem:[%s4359 + $0x3c] sm:$0xf]
        %v4376 = vld [vmem:[%s4359 + $0x40] sm:$0xf]
        %v4377 = vld [vmem:[%s4359 + $0x44] sm:$0xf]
        %v4378 = vld [vmem:[%s4359 + $0x48] sm:$0xf]
        %v4379 = vld [vmem:[%s4359 + $0x4c] sm:$0xf]
        %v4380 = vld [vmem:[%s4359 + $0x50] sm:$0xf]
        %v4381 = vld [vmem:[%s4359 + $0x54] sm:$0xf]
        %v4382 = vld [vmem:[%s4359 + $0x58] sm:$0xf]
        %v4383 = vld [vmem:[%s4359 + $0x5c] sm:$0xf]
        %v4384 = vld [vmem:[%s4359 + $0x60] sm:$0xf]
        %v4385 = vld [vmem:[%s4359 + $0x64] sm:$0xf]
        %v4386 = vld [vmem:[%s4359 + $0x68] sm:$0xf]
        %v4387 = vld [vmem:[%s4359 + $0x6c] sm:$0xf]
        %v4388 = vld [vmem:[%s4359 + $0x70] sm:$0xf]
        %v4389 = vld [vmem:[%s4359 + $0x74] sm:$0xf]
        %v4390 = vld [vmem:[%s4359 + $0x78] sm:$0xf]
        %v4391 = vld [vmem:[%s4359 + $0x7c] sm:$0xf]
        %v4392 = vld [vmem:[%s4359 + $0x80] sm:$0xf]
        %v4393 = vld [vmem:[%s4359 + $0x84] sm:$0xf]
        %v4394 = vld [vmem:[%s4359 + $0x88] sm:$0xf]
        %v4395 = vld [vmem:[%s4359 + $0x8c] sm:$0xf]
        %v4396 = vld [vmem:[%s4359 + $0x90] sm:$0xf]
        %v4397 = vld [vmem:[%s4359 + $0x94] sm:$0xf]
        %v4398 = vld [vmem:[%s4359 + $0x98] sm:$0xf]
        %v4399 = vld [vmem:[%s4359 + $0x9c] sm:$0xf]
        %v4400 = vld [vmem:[%s4359 + $0xa0] sm:$0xf]
        %v4401 = vld [vmem:[%s4359 + $0xa4] sm:$0xf]
        %v4402 = vld [vmem:[%s4359 + $0xa8] sm:$0xf]
        %v4403 = vld [vmem:[%s4359 + $0xac] sm:$0xf]
        %v4404 = vld [vmem:[%s4359 + $0xb0] sm:$0xf]
        %v4405 = vld [vmem:[%s4359 + $0xb4] sm:$0xf]
        %v4406 = vld [vmem:[%s4359 + $0xb8] sm:$0xf]
        %v4407 = vld [vmem:[%s4359 + $0xbc] sm:$0xf]
        %v4456 = vunpack.c.l.b16 %v4360
        %v4457 = vunpack.c.l.b16 %v4361
        %v4458 = vunpack.c.l.b16 %v4362
        %v4459 = vunpack.c.l.b16 %v4363
        %v4460 = vunpack.c.l.b16 %v4364
        %v4461 = vunpack.c.l.b16 %v4365
        %v4462 = vunpack.c.l.b16 %v4366
        %v4463 = vunpack.c.l.b16 %v4367
        %v4464 = vunpack.c.l.b16 %v4368
        %v4465 = vunpack.c.l.b16 %v4369
        %v4466 = vunpack.c.l.b16 %v4370
        %v4467 = vunpack.c.l.b16 %v4371
        %v4468 = vunpack.c.l.b16 %v4372
        %v4469 = vunpack.c.l.b16 %v4373
        %v4470 = vunpack.c.l.b16 %v4374
        %v4471 = vunpack.c.l.b16 %v4375
        %v4472 = vunpack.c.l.b16 %v4376
        %v4473 = vunpack.c.l.b16 %v4377
        %v4474 = vunpack.c.l.b16 %v4378
        %v4475 = vunpack.c.l.b16 %v4379
        %v4476 = vunpack.c.l.b16 %v4380
        %v4477 = vunpack.c.l.b16 %v4381
        %v4478 = vunpack.c.l.b16 %v4382
        %v4479 = vunpack.c.l.b16 %v4383
        %v4480 = vunpack.c.l.b16 %v4384
        %v4481 = vunpack.c.l.b16 %v4385
        %v4482 = vunpack.c.l.b16 %v4386
        %v4483 = vunpack.c.l.b16 %v4387
        %v4484 = vunpack.c.l.b16 %v4388
        %v4485 = vunpack.c.l.b16 %v4389
        %v4486 = vunpack.c.l.b16 %v4390
        %v4487 = vunpack.c.l.b16 %v4391
        %v4488 = vunpack.c.l.b16 %v4392
        %v4489 = vunpack.c.l.b16 %v4393
        %v4490 = vunpack.c.l.b16 %v4394
        %v4491 = vunpack.c.l.b16 %v4395
        %v4492 = vunpack.c.l.b16 %v4396
        %v4493 = vunpack.c.l.b16 %v4397
        %v4494 = vunpack.c.l.b16 %v4398
        %v4495 = vunpack.c.l.b16 %v4399
        %v4496 = vunpack.c.l.b16 %v4400
        %v4497 = vunpack.c.l.b16 %v4401
        %v4498 = vunpack.c.l.b16 %v4402
        %v4499 = vunpack.c.l.b16 %v4403
        %v4500 = vunpack.c.l.b16 %v4404
        %v4501 = vunpack.c.l.b16 %v4405
        %v4502 = vunpack.c.l.b16 %v4406
        %v4503 = vunpack.c.l.b16 %v4407
        %v4504 = vpack.c.b16 %v4457, %v4456
        %v4505 = vpack.c.b16 %v4459, %v4458
        %v4506 = vpack.c.b16 %v4461, %v4460
        %v4507 = vpack.c.b16 %v4463, %v4462
        %v4508 = vpack.c.b16 %v4465, %v4464
        %v4509 = vpack.c.b16 %v4467, %v4466
        %v4510 = vpack.c.b16 %v4469, %v4468
        %v4511 = vpack.c.b16 %v4471, %v4470
        %v4512 = vpack.c.b16 %v4473, %v4472
        %v4513 = vpack.c.b16 %v4475, %v4474
        %v4514 = vpack.c.b16 %v4477, %v4476
        %v4515 = vpack.c.b16 %v4479, %v4478
        %v4516 = vpack.c.b16 %v4481, %v4480
        %v4517 = vpack.c.b16 %v4483, %v4482
        %v4518 = vpack.c.b16 %v4485, %v4484
        %v4519 = vpack.c.b16 %v4487, %v4486
        %v4520 = vpack.c.b16 %v4489, %v4488
        %v4521 = vpack.c.b16 %v4491, %v4490
        %v4522 = vpack.c.b16 %v4493, %v4492
        %v4523 = vpack.c.b16 %v4495, %v4494
        %v4524 = vpack.c.b16 %v4497, %v4496
        %v4525 = vpack.c.b16 %v4499, %v4498
        %v4526 = vpack.c.b16 %v4501, %v4500
        %v4527 = vpack.c.b16 %v4503, %v4502
        %4552 = vmatprep.subr.bf16.mxu0 0
        %4553 = vmatpush1.bf16.msra.mxu0 %v4504
        %4554 = vmatprep.subr.bf16.mxu0 0
        %4555 = vmatpush1.bf16.msra.mxu0 %v4505
        %4556 = vmatprep.subr.bf16.mxu0 0
        %4557 = vmatpush1.bf16.msra.mxu0 %v4506
        %4558 = vmatprep.subr.bf16.mxu0 0
        %4559 = vmatpush1.bf16.msra.mxu0 %v4507
        %4560 = vmatprep.subr.bf16.mxu0 0
        %4561 = vmatpush1.bf16.msra.mxu0 %v4508
        %4562 = vmatprep.subr.bf16.mxu0 0
        %4563 = vmatpush1.bf16.msra.mxu0 %v4509
        %4564 = vmatprep.subr.bf16.mxu0 0
        %4565 = vmatpush1.bf16.msra.mxu0 %v4510
        %4566 = vmatprep.subr.bf16.mxu0 0
        %4567 = vmatpush1.bf16.msra.mxu0 %v4511
        %4568 = vmatprep.subr.bf16.mxu0 0
        %4569 = vmatpush1.bf16.msra.mxu0 %v4512
        %4570 = vmatprep.subr.bf16.mxu0 0
        %4571 = vmatpush1.bf16.msra.mxu0 %v4513
        %4572 = vmatprep.subr.bf16.mxu0 0
        %4573 = vmatpush1.bf16.msra.mxu0 %v4514
        %4574 = vmatprep.subr.bf16.mxu0 0
        %4575 = vmatpush1.bf16.msra.mxu0 %v4515
        %4576 = vmatprep.subr.bf16.mxu0 0
        %4577 = vmatpush1.bf16.msra.mxu0 %v4516
        %4578 = vmatprep.subr.bf16.mxu0 0
        %4579 = vmatpush1.bf16.msra.mxu0 %v4517
        %4580 = vmatprep.subr.bf16.mxu0 0
        %4581 = vmatpush1.bf16.msra.mxu0 %v4518
        %4582 = vmatprep.subr.bf16.mxu0 0
        %4583 = vmatpush1.bf16.msra.mxu0 %v4519
        %4584 = vmatprep.mubr.bf16.mxu0 %v4050
        %4585 = vmatmul.mubr.bf16.gmra.mrb[0].mxu0 %v3959
        %v4586 = vpop.f32.mrb[0].mxu0
        %v4587 = vadd.f32 0.0, %v4586
        %v4588 = vpop.f32.mrb[0].mxu0
        %v4589 = vpop.f32.mrb[0].mxu0
        %v4590 = vadd.f32 0.0, %v4589
        %v4591 = vpop.f32.mrb[0].mxu0
        %4592 = vmatprep.mubr.bf16.mxu0 %v4062
        %4593 = vmatmul.mubr.bf16.gmra.mrb[0].mxu0 %v3960
        %v4594 = vpop.f32.mrb[0].mxu0
        %v4595 = vadd.f32 0.0, %v4594
        %v4596 = vpop.f32.mrb[0].mxu0
        %v4597 = vpop.f32.mrb[0].mxu0
        %v4598 = vadd.f32 0.0, %v4597
        %v4599 = vpop.f32.mrb[0].mxu0
        %4600 = vmatprep.mubr.bf16.mxu0 %v4074
        %4601 = vmatmul.mubr.bf16.gmra.mrb[0].mxu0 %v3961
        %v4602 = vpop.f32.mrb[0].mxu0
        %v4603 = vadd.f32 0.0, %v4602
        %v4604 = vpop.f32.mrb[0].mxu0
        %v4605 = vpop.f32.mrb[0].mxu0
        %v4606 = vadd.f32 0.0, %v4605
        %v4607 = vpop.f32.mrb[0].mxu0
        %4608 = vmatprep.mubr.bf16.mxu0 %v4086
        %4609 = vmatmul.mubr.bf16.gmra.mrb[0].mxu0 %v3962
        %v4610 = vpop.f32.mrb[0].mxu0
        %v4611 = vadd.f32 0.0, %v4610
        %v4612 = vpop.f32.mrb[0].mxu0
        %v4613 = vpop.f32.mrb[0].mxu0
        %v4614 = vadd.f32 0.0, %v4613
        %v4615 = vpop.f32.mrb[0].mxu0
        %4616 = vmatprep.mubr.bf16.mxu0 %v4098
        %4617 = vmatmul.mubr.bf16.gmra.mrb[0].mxu0 %v3963
        %v4618 = vpop.f32.mrb[0].mxu0
        %v4619 = vadd.f32 0.0, %v4618
        %v4620 = vpop.f32.mrb[0].mxu0
        %v4621 = vpop.f32.mrb[0].mxu0
        %v4622 = vadd.f32 0.0, %v4621
        %v4623 = vpop.f32.mrb[0].mxu0
        %4624 = vmatprep.mubr.bf16.mxu0 %v4110
        %4625 = vmatmul.mubr.bf16.gmra.mrb[0].mxu0 %v3964
        %v4626 = vpop.f32.mrb[0].mxu0
        %v4627 = vadd.f32 0.0, %v4626
        %v4628 = vpop.f32.mrb[0].mxu0
        %v4629 = vpop.f32.mrb[0].mxu0
        %v4630 = vadd.f32 0.0, %v4629
        %v4631 = vpop.f32.mrb[0].mxu0
        %4632 = vmatprep.mubr.bf16.mxu0 %v4122
        %4633 = vmatmul.mubr.bf16.gmra.mrb[0].mxu0 %v3965
        %v4634 = vpop.f32.mrb[0].mxu0
        %v4635 = vadd.f32 0.0, %v4634
        %v4636 = vpop.f32.mrb[0].mxu0
        %v4637 = vpop.f32.mrb[0].mxu0
        %v4638 = vadd.f32 0.0, %v4637
        %v4639 = vpop.f32.mrb[0].mxu0
        %4640 = vmatprep.mubr.bf16.mxu0 %v4134
        %4641 = vmatmul.mubr.bf16.gmra.mrb[0].mxu0 %v3966
        %v4642 = vpop.f32.mrb[0].mxu0
        %v4643 = vadd.f32 0.0, %v4642
        %v4644 = vpop.f32.mrb[0].mxu0
        %v4645 = vpop.f32.mrb[0].mxu0
        %v4646 = vadd.f32 0.0, %v4645
        %v4647 = vpop.f32.mrb[0].mxu0
        %4648 = vmatprep.mubr.bf16.mxu0 %v4146
        %4649 = vmatmul.mubr.bf16.gmra.mrb[0].mxu0 %v3967
        %v4650 = vpop.f32.mrb[0].mxu0
        %v4651 = vadd.f32 0.0, %v4650
        %v4652 = vpop.f32.mrb[0].mxu0
        %v4653 = vpop.f32.mrb[0].mxu0
        %v4654 = vadd.f32 0.0, %v4653
        %v4655 = vpop.f32.mrb[0].mxu0
        %4656 = vmatprep.mubr.bf16.mxu0 %v4158
        %4657 = vmatmul.mubr.bf16.gmra.mrb[0].mxu0 %v3968
        %v4658 = vpop.f32.mrb[0].mxu0
        %v4659 = vadd.f32 0.0, %v4658
        %v4660 = vpop.f32.mrb[0].mxu0
        %v4661 = vpop.f32.mrb[0].mxu0
        %v4662 = vadd.f32 0.0, %v4661
        %v4663 = vpop.f32.mrb[0].mxu0
        %4664 = vmatprep.mubr.bf16.mxu0 %v4170
        %4665 = vmatmul.mubr.bf16.gmra.mrb[0].mxu0 %v3969
        %v4666 = vpop.f32.mrb[0].mxu0
        %v4667 = vadd.f32 0.0, %v4666
        %v4668 = vpop.f32.mrb[0].mxu0
        %v4669 = vpop.f32.mrb[0].mxu0
        %v4670 = vadd.f32 0.0, %v4669
        %v4671 = vpop.f32.mrb[0].mxu0
        %4672 = vmatprep.mubr.bf16.mxu0 %v4182
        %4673 = vmatmul.mubr.bf16.gmra.mrb[0].mxu0 %v3970
        %v4674 = vpop.f32.mrb[0].mxu0
        %v4675 = vadd.f32 0.0, %v4674
        %v4676 = vpop.f32.mrb[0].mxu0
        %v4677 = vpop.f32.mrb[0].mxu0
        %v4678 = vadd.f32 0.0, %v4677
        %v4679 = vpop.f32.mrb[0].mxu0
        %4680 = vmatprep.mubr.bf16.mxu0 %v4194
        %4681 = vmatmul.mubr.bf16.gmra.mrb[0].mxu0 %v3971
        %v4682 = vpop.f32.mrb[0].mxu0
        %v4683 = vadd.f32 0.0, %v4682
        %v4684 = vpop.f32.mrb[0].mxu0
        %v4685 = vpop.f32.mrb[0].mxu0
        %v4686 = vadd.f32 0.0, %v4685
        %v4687 = vpop.f32.mrb[0].mxu0
        %4688 = vmatprep.mubr.bf16.mxu0 %v4206
        %4689 = vmatmul.mubr.bf16.gmra.mrb[0].mxu0 %v3972
        %v4690 = vpop.f32.mrb[0].mxu0
        %v4691 = vadd.f32 0.0, %v4690
        %v4692 = vpop.f32.mrb[0].mxu0
        %v4693 = vpop.f32.mrb[0].mxu0
        %v4694 = vadd.f32 0.0, %v4693
        %v4695 = vpop.f32.mrb[0].mxu0
        %4696 = vmatprep.mubr.bf16.mxu0 %v4218
        %4697 = vmatmul.mubr.bf16.gmra.mrb[0].mxu0 %v3973
        %v4698 = vpop.f32.mrb[0].mxu0
        %v4699 = vadd.f32 0.0, %v4698
        %v4700 = vpop.f32.mrb[0].mxu0
        %v4701 = vpop.f32.mrb[0].mxu0
        %v4702 = vadd.f32 0.0, %v4701
        %v4703 = vpop.f32.mrb[0].mxu0
        %4704 = vmatprep.mubr.bf16.mxu0 %v4230
        %4705 = vmatmul.mubr.bf16.gmra.mrb[0].mxu0 %v3974
        %v4706 = vpop.f32.mrb[0].mxu0
        %v4707 = vadd.f32 0.0, %v4706
        %v4708 = vpop.f32.mrb[0].mxu0
        %v4709 = vpop.f32.mrb[0].mxu0
        %v4710 = vadd.f32 0.0, %v4709
        %v4711 = vpop.f32.mrb[0].mxu0
        %4712 = vdwg.mxu0
        %4713 = vmatprep.subr.bf16.mxu0 0
        %4714 = vmatpush1.bf16.msra.mxu0 %v4520
        %4715 = vmatprep.subr.bf16.mxu0 0
        %4716 = vmatpush1.bf16.msra.mxu0 %v4521
        %4717 = vmatprep.subr.bf16.mxu0 0
        %4718 = vmatpush1.bf16.msra.mxu0 %v4522
        %4719 = vmatprep.subr.bf16.mxu0 0
        %4720 = vmatpush1.bf16.msra.mxu0 %v4523
        %4721 = vmatprep.subr.bf16.mxu0 0
        %4722 = vmatpush1.bf16.msra.mxu0 %v4524
        %4723 = vmatprep.subr.bf16.mxu0 0
        %4724 = vmatpush1.bf16.msra.mxu0 %v4525
        %4725 = vmatprep.subr.bf16.mxu0 0
        %4726 = vmatpush1.bf16.msra.mxu0 %v4526
        %4727 = vmatprep.subr.bf16.mxu0 0
        %4728 = vmatpush1.bf16.msra.mxu0 %v4527
        %4729 = vmatprep.subr.bf16.mxu0 0
        %4730 = vmatpush1.bf16.msra.mxu0 0
        %4731 = vmatprep.subr.bf16.mxu0 0
        %4732 = vmatpush1.bf16.msra.mxu0 0
        %4733 = vmatprep.subr.bf16.mxu0 0
        %4734 = vmatpush1.bf16.msra.mxu0 0
        %4735 = vmatprep.subr.bf16.mxu0 0
        %4736 = vmatpush1.bf16.msra.mxu0 0
        %4737 = vmatprep.subr.bf16.mxu0 0
        %4738 = vmatpush1.bf16.msra.mxu0 0
        %4739 = vmatprep.subr.bf16.mxu0 0
        %4740 = vmatpush1.bf16.msra.mxu0 0
        %4741 = vmatprep.subr.bf16.mxu0 0
        %4742 = vmatpush1.bf16.msra.mxu0 0
        %4743 = vmatprep.subr.bf16.mxu0 0
        %4744 = vmatpush1.bf16.msra.mxu0 0
        %4745 = vmatprep.mubr.bf16.mxu0 0
        %4746 = vmatmul.mubr.bf16.gmra.mrb[0].mxu0 %v4297
        %v4747 = vpop.f32.mrb[0].mxu0
        %v4748 = vadd.f32 %v4587, %v4747
        %v4749 = vpop.f32.mrb[0].mxu0
        %v4750 = vpop.f32.mrb[0].mxu0
        %v4751 = vadd.f32 %v4590, %v4750
        %v4752 = vpop.f32.mrb[0].mxu0
        %4753 = vmatprep.mubr.bf16.mxu0 0
        %4754 = vmatmul.mubr.bf16.gmra.mrb[0].mxu0 %v4300
        %v4755 = vpop.f32.mrb[0].mxu0
        %v4756 = vadd.f32 %v4595, %v4755
        %v4757 = vpop.f32.mrb[0].mxu0
        %v4758 = vpop.f32.mrb[0].mxu0
        %v4759 = vadd.f32 %v4598, %v4758
        %v4760 = vpop.f32.mrb[0].mxu0
        %4761 = vmatprep.mubr.bf16.mxu0 0
        %4762 = vmatmul.mubr.bf16.gmra.mrb[0].mxu0 %v4303
        %v4763 = vpop.f32.mrb[0].mxu0
        %v4764 = vadd.f32 %v4603, %v4763
        %v4765 = vpop.f32.mrb[0].mxu0
        %v4766 = vpop.f32.mrb[0].mxu0
        %v4767 = vadd.f32 %v4606, %v4766
        %v4768 = vpop.f32.mrb[0].mxu0
        %4769 = vmatprep.mubr.bf16.mxu0 0
        %4770 = vmatmul.mubr.bf16.gmra.mrb[0].mxu0 %v4306
        %v4771 = vpop.f32.mrb[0].mxu0
        %v4772 = vadd.f32 %v4611, %v4771
        %v4773 = vpop.f32.mrb[0].mxu0
        %v4774 = vpop.f32.mrb[0].mxu0
        %v4775 = vadd.f32 %v4614, %v4774
        %v4776 = vpop.f32.mrb[0].mxu0
        %4777 = vmatprep.mubr.bf16.mxu0 0
        %4778 = vmatmul.mubr.bf16.gmra.mrb[0].mxu0 %v4309
        %v4779 = vpop.f32.mrb[0].mxu0
        %v4780 = vadd.f32 %v4619, %v4779
        %v4781 = vpop.f32.mrb[0].mxu0
        %v4782 = vpop.f32.mrb[0].mxu0
        %v4783 = vadd.f32 %v4622, %v4782
        %v4784 = vpop.f32.mrb[0].mxu0
        %4785 = vmatprep.mubr.bf16.mxu0 0
        %4786 = vmatmul.mubr.bf16.gmra.mrb[0].mxu0 %v4312
        %v4787 = vpop.f32.mrb[0].mxu0
        %v4788 = vadd.f32 %v4627, %v4787
        %v4789 = vpop.f32.mrb[0].mxu0
        %v4790 = vpop.f32.mrb[0].mxu0
        %v4791 = vadd.f32 %v4630, %v4790
        %v4792 = vpop.f32.mrb[0].mxu0
        %4793 = vmatprep.mubr.bf16.mxu0 0
        %4794 = vmatmul.mubr.bf16.gmra.mrb[0].mxu0 %v4315
        %v4795 = vpop.f32.mrb[0].mxu0
        %v4796 = vadd.f32 %v4635, %v4795
        %v4797 = vpop.f32.mrb[0].mxu0
        %v4798 = vpop.f32.mrb[0].mxu0
        %v4799 = vadd.f32 %v4638, %v4798
        %v4800 = vpop.f32.mrb[0].mxu0
        %4801 = vmatprep.mubr.bf16.mxu0 0
        %4802 = vmatmul.mubr.bf16.gmra.mrb[0].mxu0 %v4318
        %v4803 = vpop.f32.mrb[0].mxu0
        %v4804 = vadd.f32 %v4643, %v4803
        %v4805 = vpop.f32.mrb[0].mxu0
        %v4806 = vpop.f32.mrb[0].mxu0
        %v4807 = vadd.f32 %v4646, %v4806
        %v4808 = vpop.f32.mrb[0].mxu0
        %4809 = vmatprep.mubr.bf16.mxu0 0
        %4810 = vmatmul.mubr.bf16.gmra.mrb[0].mxu0 %v4321
        %v4811 = vpop.f32.mrb[0].mxu0
        %v4812 = vadd.f32 %v4651, %v4811
        %v4813 = vpop.f32.mrb[0].mxu0
        %v4814 = vpop.f32.mrb[0].mxu0
        %v4815 = vadd.f32 %v4654, %v4814
        %v4816 = vpop.f32.mrb[0].mxu0
        %4817 = vmatprep.mubr.bf16.mxu0 0
        %4818 = vmatmul.mubr.bf16.gmra.mrb[0].mxu0 %v4324
        %v4819 = vpop.f32.mrb[0].mxu0
        %v4820 = vadd.f32 %v4659, %v4819
        %v4821 = vpop.f32.mrb[0].mxu0
        %v4822 = vpop.f32.mrb[0].mxu0
        %v4823 = vadd.f32 %v4662, %v4822
        %v4824 = vpop.f32.mrb[0].mxu0
        %4825 = vmatprep.mubr.bf16.mxu0 0
        %4826 = vmatmul.mubr.bf16.gmra.mrb[0].mxu0 %v4327
        %v4827 = vpop.f32.mrb[0].mxu0
        %v4828 = vadd.f32 %v4667, %v4827
        %v4829 = vpop.f32.mrb[0].mxu0
        %v4830 = vpop.f32.mrb[0].mxu0
        %v4831 = vadd.f32 %v4670, %v4830
        %v4832 = vpop.f32.mrb[0].mxu0
        %4833 = vmatprep.mubr.bf16.mxu0 0
        %4834 = vmatmul.mubr.bf16.gmra.mrb[0].mxu0 %v4330
        %v4835 = vpop.f32.mrb[0].mxu0
        %v4836 = vadd.f32 %v4675, %v4835
        %v4837 = vpop.f32.mrb[0].mxu0
        %v4838 = vpop.f32.mrb[0].mxu0
        %v4839 = vadd.f32 %v4678, %v4838
        %v4840 = vpop.f32.mrb[0].mxu0
        %4841 = vmatprep.mubr.bf16.mxu0 0
        %4842 = vmatmul.mubr.bf16.gmra.mrb[0].mxu0 %v4333
        %v4843 = vpop.f32.mrb[0].mxu0
        %v4844 = vadd.f32 %v4683, %v4843
        %v4845 = vpop.f32.mrb[0].mxu0
        %v4846 = vpop.f32.mrb[0].mxu0
        %v4847 = vadd.f32 %v4686, %v4846
        %v4848 = vpop.f32.mrb[0].mxu0
        %4849 = vmatprep.mubr.bf16.mxu0 0
        %4850 = vmatmul.mubr.bf16.gmra.mrb[0].mxu0 %v4336
        %v4851 = vpop.f32.mrb[0].mxu0
        %v4852 = vadd.f32 %v4691, %v4851
        %v4853 = vpop.f32.mrb[0].mxu0
        %v4854 = vpop.f32.mrb[0].mxu0
        %v4855 = vadd.f32 %v4694, %v4854
        %v4856 = vpop.f32.mrb[0].mxu0
        %4857 = vmatprep.mubr.bf16.mxu0 0
        %4858 = vmatmul.mubr.bf16.gmra.mrb[0].mxu0 %v4339
        %v4859 = vpop.f32.mrb[0].mxu0
        %v4860 = vadd.f32 %v4699, %v4859
        %v4861 = vpop.f32.mrb[0].mxu0
        %v4862 = vpop.f32.mrb[0].mxu0
        %v4863 = vadd.f32 %v4702, %v4862
        %v4864 = vpop.f32.mrb[0].mxu0
        %4865 = vmatprep.mubr.bf16.mxu0 0
        %4866 = vmatmul.mubr.bf16.gmra.mrb[0].mxu0 %v4342
        %v4867 = vpop.f32.mrb[0].mxu0
        %v4868 = vadd.f32 %v4707, %v4867
        %v4869 = vpop.f32.mrb[0].mxu0
        %v4870 = vpop.f32.mrb[0].mxu0
        %v4871 = vadd.f32 %v4710, %v4870
        %v4872 = vpop.f32.mrb[0].mxu0
        %4873 = vdwg.mxu0
        %v4874 = vadd.f32 %v3798, %v4748
        %v4875 = vadd.f32 %v3799, %v4751
        %v4876 = vadd.f32 %v3800, %v4756
        %v4877 = vadd.f32 %v3801, %v4759
        %v4878 = vadd.f32 %v3802, %v4764
        %v4879 = vadd.f32 %v3803, %v4767
        %v4880 = vadd.f32 %v3804, %v4772
        %v4881 = vadd.f32 %v3805, %v4775
        %v4882 = vadd.f32 %v3806, %v4780
        %v4883 = vadd.f32 %v3807, %v4783
        %v4884 = vadd.f32 %v3808, %v4788
        %v4885 = vadd.f32 %v3809, %v4791
        %v4886 = vadd.f32 %v3810, %v4796
        %v4887 = vadd.f32 %v3811, %v4799
        %v4888 = vadd.f32 %v3812, %v4804
        %v4889 = vadd.f32 %v3813, %v4807
        %v4890 = vadd.f32 %v3814, %v4812
        %v4891 = vadd.f32 %v3815, %v4815
        %v4892 = vadd.f32 %v3816, %v4820
        %v4893 = vadd.f32 %v3817, %v4823
        %v4894 = vadd.f32 %v3818, %v4828
        %v4895 = vadd.f32 %v3819, %v4831
        %v4896 = vadd.f32 %v3820, %v4836
        %v4897 = vadd.f32 %v3821, %v4839
        %v4898 = vadd.f32 %v3822, %v4844
        %v4899 = vadd.f32 %v3823, %v4847
        %v4900 = vadd.f32 %v3824, %v4852
        %v4901 = vadd.f32 %v3825, %v4855
        %v4902 = vadd.f32 %v3826, %v4860
        %v4903 = vadd.f32 %v3827, %v4863
        %v4904 = vadd.f32 %v3828, %v4868
        %v4905 = vadd.f32 %v3829, %v4871
        %v4906 = vmax.f32 %v4874, 0.0
        %v4907 = vmax.f32 %v4875, 0.0
        %v4908 = vmax.f32 %v4876, 0.0
        %v4909 = vmax.f32 %v4877, 0.0
        %v4910 = vmax.f32 %v4878, 0.0
        %v4911 = vmax.f32 %v4879, 0.0
        %v4912 = vmax.f32 %v4880, 0.0
        %v4913 = vmax.f32 %v4881, 0.0
        %v4914 = vmax.f32 %v4882, 0.0
        %v4915 = vmax.f32 %v4883, 0.0
        %v4916 = vmax.f32 %v4884, 0.0
        %v4917 = vmax.f32 %v4885, 0.0
        %v4918 = vmax.f32 %v4886, 0.0
        %v4919 = vmax.f32 %v4887, 0.0
        %v4920 = vmax.f32 %v4888, 0.0
        %v4921 = vmax.f32 %v4889, 0.0
        %v4922 = vmax.f32 %v4890, 0.0
        %v4923 = vmax.f32 %v4891, 0.0
        %v4924 = vmax.f32 %v4892, 0.0
        %v4925 = vmax.f32 %v4893, 0.0
        %v4926 = vmax.f32 %v4894, 0.0
        %v4927 = vmax.f32 %v4895, 0.0
        %v4928 = vmax.f32 %v4896, 0.0
        %v4929 = vmax.f32 %v4897, 0.0
        %v4930 = vmax.f32 %v4898, 0.0
        %v4931 = vmax.f32 %v4899, 0.0
        %v4932 = vmax.f32 %v4900, 0.0
        %v4933 = vmax.f32 %v4901, 0.0
        %v4934 = vmax.f32 %v4902, 0.0
        %v4935 = vmax.f32 %v4903, 0.0
        %v4936 = vmax.f32 %v4904, 0.0
        %v4937 = vmax.f32 %v4905, 0.0
        %v4938 = vpack.c.bf16 %v4907, %v4906
        %v4939 = vpack.c.bf16 %v4909, %v4908
        %v4940 = vpack.c.bf16 %v4911, %v4910
        %v4941 = vpack.c.bf16 %v4913, %v4912
        %v4942 = vpack.c.bf16 %v4915, %v4914
        %v4943 = vpack.c.bf16 %v4917, %v4916
        %v4944 = vpack.c.bf16 %v4919, %v4918
        %v4945 = vpack.c.bf16 %v4921, %v4920
        %v4946 = vpack.c.bf16 %v4923, %v4922
        %v4947 = vpack.c.bf16 %v4925, %v4924
        %v4948 = vpack.c.bf16 %v4927, %v4926
        %v4949 = vpack.c.bf16 %v4929, %v4928
        %v4950 = vpack.c.bf16 %v4931, %v4930
        %v4951 = vpack.c.bf16 %v4933, %v4932
        %v4952 = vpack.c.bf16 %v4935, %v4934
        %v4953 = vpack.c.bf16 %v4937, %v4936
        %v4970 = vunpack.c.l.b16 %v4938
        %v4971 = vunpack.c.h.b16 %v4938
        %v4972 = vunpack.c.l.b16 %v4939
        %v4973 = vunpack.c.h.b16 %v4939
        %v4974 = vunpack.c.l.b16 %v4940
        %v4975 = vunpack.c.h.b16 %v4940
        %v4976 = vunpack.c.l.b16 %v4941
        %v4977 = vunpack.c.h.b16 %v4941
        %v4978 = vunpack.c.l.b16 %v4942
        %v4979 = vunpack.c.h.b16 %v4942
        %v4980 = vunpack.c.l.b16 %v4943
        %v4981 = vunpack.c.h.b16 %v4943
        %v4982 = vunpack.c.l.b16 %v4944
        %v4983 = vunpack.c.h.b16 %v4944
        %v4984 = vunpack.c.l.b16 %v4945
        %v4985 = vunpack.c.h.b16 %v4945
        %v4986 = vunpack.c.l.b16 %v4946
        %v4987 = vunpack.c.h.b16 %v4946
        %v4988 = vunpack.c.l.b16 %v4947
        %v4989 = vunpack.c.h.b16 %v4947
        %v4990 = vunpack.c.l.b16 %v4948
        %v4991 = vunpack.c.h.b16 %v4948
        %v4992 = vunpack.c.l.b16 %v4949
        %v4993 = vunpack.c.h.b16 %v4949
        %v4994 = vunpack.c.l.b16 %v4950
        %v4995 = vunpack.c.h.b16 %v4950
        %v4996 = vunpack.c.l.b16 %v4951
        %v4997 = vunpack.c.h.b16 %v4951
        %v4998 = vunpack.c.l.b16 %v4952
        %v4999 = vunpack.c.h.b16 %v4952
        %v5000 = vunpack.c.l.b16 %v4953
        %v5001 = vunpack.c.h.b16 %v4953
        %v5002 = vpack.c.b16 %v4970, %v4970
        %v5003 = vpack.c.b16 %v4971, %v4971
        %v5004 = vpack.c.b16 %v4972, %v4972
        %v5005 = vpack.c.b16 %v4973, %v4973
        %v5006 = vpack.c.b16 %v4974, %v4974
        %v5007 = vpack.c.b16 %v4975, %v4975
        %v5008 = vpack.c.b16 %v4976, %v4976
        %v5009 = vpack.c.b16 %v4977, %v4977
        %v5010 = vpack.c.b16 %v4978, %v4978
        %v5011 = vpack.c.b16 %v4979, %v4979
        %v5012 = vpack.c.b16 %v4980, %v4980
        %v5013 = vpack.c.b16 %v4981, %v4981
        %v5014 = vpack.c.b16 %v4982, %v4982
        %v5015 = vpack.c.b16 %v4983, %v4983
        %v5016 = vpack.c.b16 %v4984, %v4984
        %v5017 = vpack.c.b16 %v4985, %v4985
        %v5018 = vpack.c.b16 %v4986, %v4986
        %v5019 = vpack.c.b16 %v4987, %v4987
        %v5020 = vpack.c.b16 %v4988, %v4988
        %v5021 = vpack.c.b16 %v4989, %v4989
        %v5022 = vpack.c.b16 %v4990, %v4990
        %v5023 = vpack.c.b16 %v4991, %v4991
        %v5024 = vpack.c.b16 %v4992, %v4992
        %v5025 = vpack.c.b16 %v4993, %v4993
        %v5026 = vpack.c.b16 %v4994, %v4994
        %v5027 = vpack.c.b16 %v4995, %v4995
        %v5028 = vpack.c.b16 %v4996, %v4996
        %v5029 = vpack.c.b16 %v4997, %v4997
        %v5030 = vpack.c.b16 %v4998, %v4998
        %v5031 = vpack.c.b16 %v4999, %v4999
        %v5032 = vpack.c.b16 %v5000, %v5000
        %v5033 = vpack.c.b16 %v5001, %v5001
        %5066 = vst [vmem:[%s285] sm:$0xf] %v5002
        %5067 = vst [vmem:[%s285 + $0x4] sm:$0xf] %v5003
        %5068 = vst [vmem:[%s285 + $0x8] sm:$0xf] %v5004
        %5069 = vst [vmem:[%s285 + $0xc] sm:$0xf] %v5005
        %5070 = vst [vmem:[%s285 + $0x10] sm:$0xf] %v5006
        %5071 = vst [vmem:[%s285 + $0x14] sm:$0xf] %v5007
        %5072 = vst [vmem:[%s285 + $0x18] sm:$0xf] %v5008
        %5073 = vst [vmem:[%s285 + $0x1c] sm:$0xf] %v5009
        %5074 = vst [vmem:[%s285 + $0x20] sm:$0xf] %v5010
        %5075 = vst [vmem:[%s285 + $0x24] sm:$0xf] %v5011
        %5076 = vst [vmem:[%s285 + $0x28] sm:$0xf] %v5012
        %5077 = vst [vmem:[%s285 + $0x2c] sm:$0xf] %v5013
        %5078 = vst [vmem:[%s285 + $0x30] sm:$0xf] %v5014
        %5079 = vst [vmem:[%s285 + $0x34] sm:$0xf] %v5015
        %5080 = vst [vmem:[%s285 + $0x38] sm:$0xf] %v5016
        %5081 = vst [vmem:[%s285 + $0x3c] sm:$0xf] %v5017
        %5082 = vst [vmem:[%s285 + $0x40] sm:$0xf] %v5018
        %5083 = vst [vmem:[%s285 + $0x44] sm:$0xf] %v5019
        %5084 = vst [vmem:[%s285 + $0x48] sm:$0xf] %v5020
        %5085 = vst [vmem:[%s285 + $0x4c] sm:$0xf] %v5021
        %5086 = vst [vmem:[%s285 + $0x50] sm:$0xf] %v5022
        %5087 = vst [vmem:[%s285 + $0x54] sm:$0xf] %v5023
        %5088 = vst [vmem:[%s285 + $0x58] sm:$0xf] %v5024
        %5089 = vst [vmem:[%s285 + $0x5c] sm:$0xf] %v5025
        %5090 = vst [vmem:[%s285 + $0x60] sm:$0xf] %v5026
        %5091 = vst [vmem:[%s285 + $0x64] sm:$0xf] %v5027
        %5092 = vst [vmem:[%s285 + $0x68] sm:$0xf] %v5028
        %5093 = vst [vmem:[%s285 + $0x6c] sm:$0xf] %v5029
        %5094 = vst [vmem:[%s285 + $0x70] sm:$0xf] %v5030
        %5095 = vst [vmem:[%s285 + $0x74] sm:$0xf] %v5031
        %5096 = vst [vmem:[%s285 + $0x78] sm:$0xf] %v5032
        %5097 = vst [vmem:[%s285 + $0x7c] sm:$0xf] %v5033
        %s5098 = sand.u32 %s155, 1
        %s5099 = scalar_lea.sflag [#allocation5], %s5098
        %s5100 = sand.u32 %s155, 1
        %s5101 = smul.addr %s5100, 128
        %s5102 = scalar_lea.vmem [#allocation9], %s5101
        // Predicated region
        $region69: #{tpu_custom_call.1} parent=39 // pred_check
          %p5103 = pneg %p165
        $region70: #{tpu_custom_call.1} parent=39 // pred_check_branch
          %5105 = sbr.rel (%p5103) target = $region72
        $region71: #{tpu_custom_call.1} parent=39 // pred_region
          %s5106 = smul.u32 16, %s28
          %s5108 = ssub.s32 2048, 2048
          %5109 = vsyncadd %s5099, %s5108
          %s5110 = smul.addr %s5106, 2
          %s5111 = smul.addr %s27, 32
          %s5112 = sadd.s32 %s5110, %s5111
          %s5113 = smul.addr %s5112, 64
          %s5114 = scalar_lea.hbm %s5, %s5113
          %s5115 = sshll.u32 %s5102, 4
          %s5116 = int_to_ptr.vmem [resolvable:$true] %s5115
          %5121 = dma.vmem_to_hbm [thread:$0]  %s5116, 2048, %s5114, %s5099, 64, 64, 4
        $region72: #{tpu_custom_call.1} parent=39 // pred_fallthru
          _
      $region40: #{tpu_custom_call.1} parent=5 // pred_fallthru
        _
      %p5122 = scmp.le.s32.totalorder 2, %s18
      // Predicated region
      $region73: #{tpu_custom_call.1} parent=5 // pred_check
        %p5123 = pneg %p5122
      $region74: #{tpu_custom_call.1} parent=5 // pred_check_branch
        %5125 = sbr.rel (%p5123) target = $region76
      $region75: #{tpu_custom_call.1} parent=5 // pred_region
        %s5126 = ssub.s32 %s18, 2
        // Predicated region
        $region77: #{tpu_custom_call.1} parent=75 // pred_check
          %p5127 = pneg %p171
        $region78: #{tpu_custom_call.1} parent=75 // pred_check_branch
          %5129 = sbr.rel (%p5127) target = $region80
        $region79: #{tpu_custom_call.1} parent=75 // pred_region
          %s5130 = sand.u32 %s156, 1
          %s5131 = scalar_lea.sflag [#allocation5], %s5130
          %s5132 = sand.u32 %s156, 1
          %s5133 = smul.addr %s5132, 128
          %s5134 = scalar_lea.vmem [#allocation9], %s5133
          %5135 = dma.done %s5131, 2048
        $region80: #{tpu_custom_call.1} parent=75 // pred_fallthru
          _
      $region76: #{tpu_custom_call.1} parent=5 // pred_fallthru
        _
    $region6: #{tpu_custom_call.1} parent=1 // loop_footer
      %s22 = sadd.s32 1, %s18
    $region7: #{tpu_custom_call.1} parent=1 // loop_footer_branch
      %17 = sbr.rel target = $region3
    $region8: #{tpu_custom_call.1} parent=1 // loop_exit
      _
    %5136 = vsyncpa [#allocation4], 1
    %s5137 = scalar_lea.sflag [#allocation4], 1
    %5138 = vsyncpa %s5137, 1
    %5139 = vsyncpa [#allocation7], 1
    %5140 = vsyncpa [#allocation5], 1
    %s5141 = scalar_lea.sflag [#allocation5], 1
    %5142 = vsyncpa %s5141, 1

</llo_original>
